<compile_context>
chip_gen: v5e
topology: v5e:2x2
jax: 0.10.0
libtpu: 0.0.40
codegen_flags: <defaults>
</compile_context>

<pallas_src>
import functools
import math

import jax
import jax.numpy as jnp
from jax.experimental import pallas as pl
from jax.experimental.pallas import tpu as pltpu


MXU_DTYPE = jnp.bfloat16        # bf16 MXU inputs + f32 accumulation on all gens
APPROX_RECIP = True             # EUP vrcp for the softmax denom (~1e-3 rel err;
                                # set False for tight reference comparisons)
CAUSAL_SELF_ATTENTION = True    # canonical Informer decoder self-attn mask_flag

# Row indices of the packed per-layer [NVEC, D] f32 vector slab.
_BO_S, _BQ_C, _BO_C, _B2 = 0, 1, 2, 3
_LN1_G, _LN1_B, _LN2_G, _LN2_B, _LN3_G, _LN3_B = 4, 5, 6, 7, 8, 9
_NVEC = 10


# ----------------------------------------------------------------------------
# In-kernel helpers
# ----------------------------------------------------------------------------
def _layer_norm(x, g, b, eps):
    # x: [N, D] f32, g/b: [1, D] f32
    mu = jnp.mean(x, axis=-1, keepdims=True)
    xc = x - mu
    var = jnp.mean(xc * xc, axis=-1, keepdims=True)
    return xc * jax.lax.rsqrt(var + eps) * g + b


def _mha(q, k, v, wo, bo, *, B, Lq, Ls, H, dh, causal, mxu_dtype):
    """Head-batched multi-head attention + single fused output projection.

    q: [B*Lq, H*dh] f32, k/v: [B*Ls, H*dh] f32, wo: [D, D] (mxu dtype),
    bo: [1, D] f32.  Returns projected attention output [B*Lq, D] f32
    (no residual).  1/sqrt(dh) is already folded into the Q weights.
    """
    f32 = jnp.float32
    D = H * dh
    if causal:
        row = jax.lax.broadcasted_iota(jnp.int32, (H, Lq, Ls), 1)
        col = jax.lax.broadcasted_iota(jnp.int32, (H, Lq, Ls), 2)
        keep = col <= row

    outs = []
    for b in range(B):                       # static unroll, B is small
        # One head-major relayout per operand (XLU), instead of 3*H per-head
        # lane slices.
        qh = pltpu.einshape("abc->bac", q[b * Lq:(b + 1) * Lq, :].reshape(Lq, H, dh))
        kh = pltpu.einshape("abc->bac", k[b * Ls:(b + 1) * Ls, :].reshape(Ls, H, dh))
        vh = pltpu.einshape("abc->bac", v[b * Ls:(b + 1) * Ls, :].reshape(Ls, H, dh))

        s = jnp.einsum("hld,hsd->hls", qh.astype(mxu_dtype), kh.astype(mxu_dtype),
                       preferred_element_type=f32)            # [H, Lq, Ls]
        if causal:
            s = jnp.where(keep, s, -1e30)
        m = jnp.max(s, axis=-1, keepdims=True)
        p = jnp.exp(s - m)
        denom = jnp.sum(p, axis=-1, keepdims=True)
        p = p * pl.reciprocal(denom, approx=APPROX_RECIP)     # EUP slot
        o = jnp.einsum("hls,hsd->hld", p.astype(mxu_dtype), vh.astype(mxu_dtype),
                       preferred_element_type=f32)            # [H, Lq, dh]
        outs.append(pltpu.einshape("abc->bac", o).reshape(Lq, D))

    cat = jnp.concatenate(outs, axis=0)                        # [B*Lq, D]
    # Single [B*Lq, D] @ [D, D] output projection (replaces H small-K dots).
    return jnp.dot(cat.astype(mxu_dtype), wo, preferred_element_type=f32) + bo


# ----------------------------------------------------------------------------
# Fused whole-decoder kernel: grid axis = layer, x resident in VMEM scratch
# ----------------------------------------------------------------------------
def _decoder_kernel(x_ref, cross_ref,
                    wqkv_ref, bqkv_ref, wo_s_ref,
                    wq_c_ref, wkv_c_ref, bkv_c_ref, wo_c_ref,
                    w1_ref, b1_ref, w2_ref, vecs_ref, fnorm_ref,
                    o_ref, xs_ref,
                    *, B, L, S, H, eps, causal_self, has_final_norm, mxu_dtype):
    f32 = jnp.float32
    layer = pl.program_id(0)
    n_layers = pl.num_programs(0)

    @pl.when(layer == 0)
    def _():
        xs_ref[...] = x_ref[...].astype(f32)

    x = xs_ref[...]                           # [B*L, D] f32, resident
    D = x.shape[-1]
    dh = D // H
    cross = cross_ref[...]                    # [B*S, D] already mxu dtype

    vecs = vecs_ref[...]                      # [NVEC, D] f32

    def vrow(i):                              # -> [1, D]
        return vecs[i:i + 1, :]

    # ---- (causal) self-attention, fused QKV projection ----------------------
    qkv = jnp.dot(x.astype(mxu_dtype), wqkv_ref[...],
                  preferred_element_type=f32) + bqkv_ref[...]  # [B*L, 3D]
    q, k, v = qkv[:, :D], qkv[:, D:2 * D], qkv[:, 2 * D:]
    attn = _mha(q, k, v, wo_s_ref[...], vrow(_BO_S),
                B=B, Lq=L, Ls=L, H=H, dh=dh, causal=causal_self,
                mxu_dtype=mxu_dtype)
    x = _layer_norm(x + attn, vrow(_LN1_G), vrow(_LN1_B), eps)

    # ---- cross-attention, fused KV projection --------------------------------
    qc = jnp.dot(x.astype(mxu_dtype), wq_c_ref[...],
                 preferred_element_type=f32) + vrow(_BQ_C)     # [B*L, D]
    kv = jnp.dot(cross, wkv_c_ref[...],
                 preferred_element_type=f32) + bkv_c_ref[...]  # [B*S, 2D]
    kc, vc = kv[:, :D], kv[:, D:]
    attn = _mha(qc, kc, vc, wo_c_ref[...], vrow(_BO_C),
                B=B, Lq=L, Ls=S, H=H, dh=dh, causal=False,
                mxu_dtype=mxu_dtype)
    x = _layer_norm(x + attn, vrow(_LN2_G), vrow(_LN2_B), eps)

    # ---- Conv1d(k=1) feed-forward == per-token MLP ---------------------------
    y = jnp.dot(x.astype(mxu_dtype), w1_ref[...],
                preferred_element_type=f32) + b1_ref[...]      # [B*L, DFF]
    y = jnp.maximum(y, 0.0)
    y = jnp.dot(y.astype(mxu_dtype), w2_ref[...],
                preferred_element_type=f32) + vrow(_B2)        # [B*L, D]
    x = _layer_norm(x + y, vrow(_LN3_G), vrow(_LN3_B), eps)

    xs_ref[...] = x                           # carry to next layer (VMEM only)

    @pl.when(layer == n_layers - 1)
    def _():
        xf = x
        if has_final_norm:                    # decoder-level norm fused here
            fn = fnorm_ref[...]
            xf = _layer_norm(xf, fn[0:1, :], fn[1:2, :], eps)
        o_ref[...] = xf.astype(o_ref.dtype)


# ----------------------------------------------------------------------------
# Wrapper
# ----------------------------------------------------------------------------
@functools.partial(jax.jit, static_argnums=(3, 4))
def _decoder_forward_jit(x, cross, params, n_heads, final_norm):
    B, L, D = x.shape
    S = cross.shape[1]
    NL = params["wqkv"].shape[0]
    DFF = params["w1"].shape[2]
    NV = params["vecs"].shape[1]

    # Lane-dense 2-D slabs; M = B*L rows for every projection / FFN matmul.
    x2 = x.reshape(B * L, D)
    cross2 = cross.reshape(B * S, D).astype(MXU_DTYPE)

    kernel = functools.partial(
        _decoder_kernel, B=B, L=L, S=S, H=n_heads, eps=1e-5,
        causal_self=CAUSAL_SELF_ATTENTION, has_final_norm=final_norm,
        mxu_dtype=MXU_DTYPE)

    const = lambda l: (0, 0)          # x / cross / fnorm: one DMA, kept resident
    per_layer = lambda l: (l, 0, 0)   # stacked weights: layer l+1 prefetched
                                      # while layer l computes

    out2 = pl.pallas_call(
        kernel,
        out_shape=jax.ShapeDtypeStruct((B * L, D), x.dtype),
        grid=(NL,),
        in_specs=[
            pl.BlockSpec((B * L, D), const),                 # x (read at l==0)
            pl.BlockSpec((B * S, D), const),                 # cross
            pl.BlockSpec((None, D, 3 * D), per_layer),       # wqkv   (self)
            pl.BlockSpec((None, 1, 3 * D), per_layer),       # bqkv   (self)
            pl.BlockSpec((None, D, D), per_layer),           # wo     (self)
            pl.BlockSpec((None, D, D), per_layer),           # wq     (cross)
            pl.BlockSpec((None, D, 2 * D), per_layer),       # wkv    (cross)
            pl.BlockSpec((None, 1, 2 * D), per_layer),       # bkv    (cross)
            pl.BlockSpec((None, D, D), per_layer),           # wo     (cross)
            pl.BlockSpec((None, D, DFF), per_layer),         # w1
            pl.BlockSpec((None, 1, DFF), per_layer),         # b1
            pl.BlockSpec((None, DFF, D), per_layer),         # w2
            pl.BlockSpec((None, NV, D), per_layer),          # packed vectors
            pl.BlockSpec((2, D), const),                     # final-norm g/b
        ],
        out_specs=pl.BlockSpec((B * L, D), const),
        scratch_shapes=[pltpu.VMEM((B * L, D), jnp.float32)],  # resident x
        compiler_params=pltpu.CompilerParams(
            dimension_semantics=("arbitrary",),              # x carried layer->layer
            vmem_limit_bytes=64 * 1024 * 1024),
    )(x2, cross2, params["wqkv"], params["bqkv"], params["wo_s"],
      params["wq_c"], params["wkv_c"], params["bkv_c"], params["wo_c"],
      params["w1"], params["b1"], params["w2"], params["vecs"],
      params["fnorm"])
    return out2.reshape(B, L, D)


def decoder_forward(x, cross, params, n_heads, x_mask=None, cross_mask=None):
    # TODO(synk): explicit x_mask / cross_mask attention-mask tensors are not
    # implemented; the canonical implicit causal self-attention mask is.
    if x_mask is not None or cross_mask is not None:
        raise NotImplementedError("explicit attention masks not supported")
    return _decoder_forward_jit(x, cross, params, n_heads, True)


# ----------------------------------------------------------------------------
# Deterministic parameter init (fused / pre-folded layout)
# ----------------------------------------------------------------------------
def init_params(key, num_layers, d_model, d_ff, n_heads, weight_dtype=MXU_DTYPE):
    dh = d_model // n_heads
    scale = 1.0 / math.sqrt(dh)     # folded into Q projection weights + biases

    def w(k, m, n):
        return 0.05 * jax.random.normal(k, (m, n), jnp.float32)

    def b(k, n):
        return 0.02 * jax.random.normal(k, (n,), jnp.float32)

    acc = {k: [] for k in ("wqkv", "bqkv", "wo_s", "wq_c", "wkv_c", "bkv_c",
                           "wo_c", "w1", "b1", "w2", "vecs")}
    ones = jnp.ones((d_model,), jnp.float32)
    zeros = jnp.zeros((d_model,), jnp.float32)

    for lk in jax.random.split(key, num_layers):
        ks = jax.random.split(lk, 20)
        wq_s, wk_s, wv_s, wo_s = (w(ks[i], d_model, d_model) for i in range(4))
        wq_c, wk_c, wv_c, wo_c = (w(ks[4 + i], d_model, d_model) for i in range(4))
        w1 = w(ks[8], d_model, d_ff)
        w2 = w(ks[9], d_ff, d_model)
        bq_s, bk_s, bv_s, bo_s = (b(ks[10 + i], d_model) for i in range(4))
        bq_c, bk_c, bv_c, bo_c = (b(ks[14 + i], d_model) for i in range(4))
        b1v, b2v = b(ks[18], d_ff), b(ks[19], d_model)

        acc["wqkv"].append(jnp.concatenate([wq_s * scale, wk_s, wv_s], axis=1))
        acc["bqkv"].append(jnp.concatenate([bq_s * scale, bk_s, bv_s])[None, :])
        acc["wo_s"].append(wo_s)
        acc["wq_c"].append(wq_c * scale)
        acc["wkv_c"].append(jnp.concatenate([wk_c, wv_c], axis=1))
        acc["bkv_c"].append(jnp.concatenate([bk_c, bv_c])[None, :])
        acc["wo_c"].append(wo_c)
        acc["w1"].append(w1)
        acc["b1"].append(b1v[None, :])
        acc["w2"].append(w2)
        acc["vecs"].append(jnp.stack(
            [bo_s, bq_c * scale, bo_c, b2v,
             ones, zeros, ones, zeros, ones, zeros], axis=0))     # [_NVEC, D]

    params = {k: jnp.stack(v, axis=0) for k, v in acc.items()}
    for k in ("wqkv", "wo_s", "wq_c", "wkv_c", "wo_c", "w1", "w2"):
        params[k] = params[k].astype(weight_dtype)                # bf16 in HBM
    params["fnorm"] = jnp.stack([ones, zeros], axis=0)            # decoder norm
    return params


# ----------------------------------------------------------------------------
if __name__ == "__main__":
    B, L_dec, L_enc = 2, 8, 12          # batch, decoder seq, encoder (cross) seq
    D, H, DFF, NLAYERS = 32, 4, 64, 2   # d_model, heads, d_ff, decoder layers

    key = jax.random.PRNGKey(0)
    kx, kc, kp = jax.random.split(key, 3)
    x = jax.random.normal(kx, (B, L_dec, D), jnp.float32)
    cross = jax.random.normal(kc, (B, L_enc, D), jnp.float32)
    params = init_params(kp, NLAYERS, D, DFF, H)

    out = decoder_forward(x, cross, params, n_heads=H)
    out = jax.block_until_ready(out)
    assert out.shape == (B, L_dec, D), out.shape
    assert bool(jnp.all(jnp.isfinite(out)))
    print("KERNEL_OK")
</pallas_src>

<mosaic_0001>
module attributes {stable_mosaic.version = 11 : i64} {
  func.func @_decoder_kernel(%arg0: i32, %arg1: memref<16x32xf32, #tpu.memory_space<vmem>>, %arg2: memref<24x32xbf16, #tpu.memory_space<vmem>>, %arg3: memref<1x32x96xbf16, #tpu.memory_space<vmem>>, %arg4: memref<1x1x96xf32, #tpu.memory_space<vmem>>, %arg5: memref<1x32x32xbf16, #tpu.memory_space<vmem>>, %arg6: memref<1x32x32xbf16, #tpu.memory_space<vmem>>, %arg7: memref<1x32x64xbf16, #tpu.memory_space<vmem>>, %arg8: memref<1x1x64xf32, #tpu.memory_space<vmem>>, %arg9: memref<1x32x32xbf16, #tpu.memory_space<vmem>>, %arg10: memref<1x32x64xbf16, #tpu.memory_space<vmem>>, %arg11: memref<1x1x64xf32, #tpu.memory_space<vmem>>, %arg12: memref<1x64x32xbf16, #tpu.memory_space<vmem>>, %arg13: memref<1x10x32xf32, #tpu.memory_space<vmem>>, %arg14: memref<2x32xf32, #tpu.memory_space<vmem>>, %arg15: memref<16x32xf32, #tpu.memory_space<vmem>>, %arg16: memref<16x32xf32, #tpu.memory_space<vmem>>) attributes {dimension_semantics = [#tpu.dimension_semantics<arbitrary>], iteration_bounds = array<i64: 2>, scalar_prefetch = 0 : i64, scratch_operands = 1 : i64, tpu.core_type = #tpu.core_type<tc>, window_params = [{pipeline_mode = #tpu.pipeline_mode<synchronous>, transform_indices = @transform_0, window_bounds = array<i64: 16, 32>}, {pipeline_mode = #tpu.pipeline_mode<synchronous>, transform_indices = @transform_1, window_bounds = array<i64: 24, 32>}, {transform_indices = @transform_2, window_bounds = array<i64: 1, 32, 96>}, {transform_indices = @transform_3, window_bounds = array<i64: 1, 1, 96>}, {transform_indices = @transform_4, window_bounds = array<i64: 1, 32, 32>}, {transform_indices = @transform_5, window_bounds = array<i64: 1, 32, 32>}, {transform_indices = @transform_6, window_bounds = array<i64: 1, 32, 64>}, {transform_indices = @transform_7, window_bounds = array<i64: 1, 1, 64>}, {transform_indices = @transform_8, window_bounds = array<i64: 1, 32, 32>}, {transform_indices = @transform_9, window_bounds = array<i64: 1, 32, 64>}, {transform_indices = @transform_10, window_bounds = array<i64: 1, 1, 64>}, {transform_indices = @transform_11, window_bounds = array<i64: 1, 64, 32>}, {transform_indices = @transform_12, window_bounds = array<i64: 1, 10, 32>}, {pipeline_mode = #tpu.pipeline_mode<synchronous>, transform_indices = @transform_13, window_bounds = array<i64: 2, 32>}, {pipeline_mode = #tpu.pipeline_mode<synchronous>, transform_indices = @transform_14, window_bounds = array<i64: 16, 32>}]} {
    %c0_i32 = arith.constant 0 : i32
    %0 = arith.cmpi eq, %arg0, %c0_i32 : i32
    %1 = arith.extui %0 : i1 to i32
    %c0_i32_0 = arith.constant 0 : i32
    %2 = arith.cmpi ne, %1, %c0_i32_0 : i32
    scf.if %2 {
      %c0_80 = arith.constant 0 : index
      %c0_81 = arith.constant 0 : index
      %255 = vector.load %arg1[%c0_80, %c0_81] : memref<16x32xf32, #tpu.memory_space<vmem>>, vector<16x32xf32>
      %c0_82 = arith.constant 0 : index
      %c0_83 = arith.constant 0 : index
      %256 = vector.load %arg16[%c0_82, %c0_83] : memref<16x32xf32, #tpu.memory_space<vmem>>, vector<16x32xf32>
      tpu.vector_store %arg16[%c0_82, %c0_83], %255 {strides = array<i32>} : memref<16x32xf32, #tpu.memory_space<vmem>>, vector<16x32xf32>,
    } else {
    }
    %c0 = arith.constant 0 : index
    %c0_1 = arith.constant 0 : index
    %3 = vector.load %arg16[%c0, %c0_1] : memref<16x32xf32, #tpu.memory_space<vmem>>, vector<16x32xf32>
    %c0_2 = arith.constant 0 : index
    %c0_3 = arith.constant 0 : index
    %4 = vector.load %arg2[%c0_2, %c0_3] : memref<24x32xbf16, #tpu.memory_space<vmem>>, vector<24x32xbf16>
    %c0_4 = arith.constant 0 : index
    %c0_5 = arith.constant 0 : index
    %c0_6 = arith.constant 0 : index
    %5 = vector.load %arg13[%c0_4, %c0_5, %c0_6] : memref<1x10x32xf32, #tpu.memory_space<vmem>>, vector<1x10x32xf32>
    %6 = vector.shape_cast %5 : vector<1x10x32xf32> to vector<10x32xf32>
    %7 = arith.truncf %3 : vector<16x32xf32> to vector<16x32xbf16>
    %c0_7 = arith.constant 0 : index
    %c0_8 = arith.constant 0 : index
    %c0_9 = arith.constant 0 : index
    %8 = vector.load %arg3[%c0_7, %c0_8, %c0_9] : memref<1x32x96xbf16, #tpu.memory_space<vmem>>, vector<1x32x96xbf16>
    %9 = vector.shape_cast %8 : vector<1x32x96xbf16> to vector<32x96xbf16>
    %cst = arith.constant dense<0.000000e+00> : vector<16x96xf32>
    %10 = tpu.matmul %7, %9, %cst {dimension_numbers = #tpu.dot_dimension_numbers<[1], [0], [0], [1], [0, 0, 1, 1], [], []>} : vector<16x32xbf16>, vector<32x96xbf16>, vector<16x96xf32> -> vector<16x96xf32>
    %c0_10 = arith.constant 0 : index
    %c0_11 = arith.constant 0 : index
    %c0_12 = arith.constant 0 : index
    %11 = vector.load %arg4[%c0_10, %c0_11, %c0_12] : memref<1x1x96xf32, #tpu.memory_space<vmem>>, vector<1x1x96xf32>
    %12 = vector.shape_cast %11 : vector<1x1x96xf32> to vector<1x96xf32>
    %13 = vector.broadcast %12 : vector<1x96xf32> to vector<16x96xf32>
    %14 = arith.addf %10, %13 : vector<16x96xf32>
    %15 = vector.extract_strided_slice %14 {offsets = [0, 0], sizes = [16, 32], strides = [1, 1]} : vector<16x96xf32> to vector<16x32xf32>
    %16 = vector.extract_strided_slice %14 {offsets = [0, 32], sizes = [16, 32], strides = [1, 1]} : vector<16x96xf32> to vector<16x32xf32>
    %17 = vector.extract_strided_slice %14 {offsets = [0, 64], sizes = [16, 32], strides = [1, 1]} : vector<16x96xf32> to vector<16x32xf32>
    %c0_13 = arith.constant 0 : index
    %c0_14 = arith.constant 0 : index
    %c0_15 = arith.constant 0 : index
    %18 = vector.load %arg5[%c0_13, %c0_14, %c0_15] : memref<1x32x32xbf16, #tpu.memory_space<vmem>>, vector<1x32x32xbf16>
    %19 = vector.shape_cast %18 : vector<1x32x32xbf16> to vector<32x32xbf16>
    %20 = vector.extract_strided_slice %6 {offsets = [0, 0], sizes = [1, 32], strides = [1, 1]} : vector<10x32xf32> to vector<1x32xf32>
    %21 = tpu.iota {dimensions = array<i32: 1>} : vector<4x8x8xi32>
    %22 = tpu.iota {dimensions = array<i32: 2>} : vector<4x8x8xi32>
    %23 = arith.cmpi sle, %22, %21 : vector<4x8x8xi32>
    %24 = vector.extract_strided_slice %15 {offsets = [0, 0], sizes = [8, 32], strides = [1, 1]} : vector<16x32xf32> to vector<8x32xf32>
    %25 = vector.shape_cast %24 : vector<8x32xf32> to vector<8x4x8xf32>
    %26 = tpu.transpose %25, [1, 0, 2] : vector<8x4x8xf32> -> vector<4x8x8xf32>
    %27 = vector.extract_strided_slice %16 {offsets = [0, 0], sizes = [8, 32], strides = [1, 1]} : vector<16x32xf32> to vector<8x32xf32>
    %28 = vector.shape_cast %27 : vector<8x32xf32> to vector<8x4x8xf32>
    %29 = tpu.transpose %28, [1, 0, 2] : vector<8x4x8xf32> -> vector<4x8x8xf32>
    %30 = vector.extract_strided_slice %17 {offsets = [0, 0], sizes = [8, 32], strides = [1, 1]} : vector<16x32xf32> to vector<8x32xf32>
    %31 = vector.shape_cast %30 : vector<8x32xf32> to vector<8x4x8xf32>
    %32 = tpu.transpose %31, [1, 0, 2] : vector<8x4x8xf32> -> vector<4x8x8xf32>
    %33 = arith.truncf %26 : vector<4x8x8xf32> to vector<4x8x8xbf16>
    %34 = arith.truncf %29 : vector<4x8x8xf32> to vector<4x8x8xbf16>
    "tpu.trace_start"() <{level = 10 : i32, message = "hld,hsd->hls"}> : () -> ()
    %cst_16 = arith.constant dense<0.000000e+00> : vector<4x8x8xf32>
    %35 = tpu.matmul %33, %34, %cst_16 {dimension_numbers = #tpu.dot_dimension_numbers<[2], [2], [1], [1], [0, 0, 0, 1, 1, 1], [0], [0]>} : vector<4x8x8xbf16>, vector<4x8x8xbf16>, vector<4x8x8xf32> -> vector<4x8x8xf32>
    %cst_17 = arith.constant -1.000000e+30 : f32
    "tpu.trace_stop"() : () -> ()
    %36 = vector.broadcast %cst_17 : f32 to vector<4x8x8xf32>
    %37 = arith.select %23, %35, %36 : vector<4x8x8xi1>, vector<4x8x8xf32>
    %cst_18 = arith.constant dense<0xFF800000> : vector<4x8xf32>
    %38 = vector.multi_reduction <maximumf>, %37, %cst_18 [2] : vector<4x8x8xf32> to vector<4x8xf32>
    %39 = vector.shape_cast %38 : vector<4x8xf32> to vector<4x8x1xf32>
    %40 = vector.broadcast %39 : vector<4x8x1xf32> to vector<4x8x8xf32>
    %41 = arith.subf %37, %40 : vector<4x8x8xf32>
    %42 = math.exp %41 : vector<4x8x8xf32>
    %cst_19 = arith.constant dense<0.000000e+00> : vector<4x8xf32>
    %43 = vector.multi_reduction <add>, %42, %cst_19 [2] : vector<4x8x8xf32> to vector<4x8xf32>
    %44 = vector.shape_cast %43 : vector<4x8xf32> to vector<4x8x1xf32>
    %45 = tpu.reciprocal %44 {approx = true} : vector<4x8x1xf32> -> vector<4x8x1xf32>
    %46 = vector.broadcast %45 : vector<4x8x1xf32> to vector<4x8x8xf32>
    %47 = arith.mulf %42, %46 : vector<4x8x8xf32>
    %48 = arith.truncf %47 : vector<4x8x8xf32> to vector<4x8x8xbf16>
    %49 = arith.truncf %32 : vector<4x8x8xf32> to vector<4x8x8xbf16>
    "tpu.trace_start"() <{level = 10 : i32, message = "hls,hsd->hld"}> : () -> ()
    %cst_20 = arith.constant dense<0.000000e+00> : vector<4x8x8xf32>
    %50 = tpu.matmul %48, %49, %cst_20 {dimension_numbers = #tpu.dot_dimension_numbers<[2], [1], [1], [2], [0, 0, 0, 1, 1, 2], [0], [0]>} : vector<4x8x8xbf16>, vector<4x8x8xbf16>, vector<4x8x8xf32> -> vector<4x8x8xf32>
    "tpu.trace_stop"() : () -> ()
    %51 = tpu.transpose %50, [1, 0, 2] : vector<4x8x8xf32> -> vector<8x4x8xf32>
    %52 = vector.shape_cast %51 : vector<8x4x8xf32> to vector<8x32xf32>
    %53 = vector.extract_strided_slice %15 {offsets = [8, 0], sizes = [8, 32], strides = [1, 1]} : vector<16x32xf32> to vector<8x32xf32>
    %54 = vector.shape_cast %53 : vector<8x32xf32> to vector<8x4x8xf32>
    %55 = tpu.transpose %54, [1, 0, 2] : vector<8x4x8xf32> -> vector<4x8x8xf32>
    %56 = vector.extract_strided_slice %16 {offsets = [8, 0], sizes = [8, 32], strides = [1, 1]} : vector<16x32xf32> to vector<8x32xf32>
    %57 = vector.shape_cast %56 : vector<8x32xf32> to vector<8x4x8xf32>
    %58 = tpu.transpose %57, [1, 0, 2] : vector<8x4x8xf32> -> vector<4x8x8xf32>
    %59 = vector.extract_strided_slice %17 {offsets = [8, 0], sizes = [8, 32], strides = [1, 1]} : vector<16x32xf32> to vector<8x32xf32>
    %60 = vector.shape_cast %59 : vector<8x32xf32> to vector<8x4x8xf32>
    %61 = tpu.transpose %60, [1, 0, 2] : vector<8x4x8xf32> -> vector<4x8x8xf32>
    %62 = arith.truncf %55 : vector<4x8x8xf32> to vector<4x8x8xbf16>
    %63 = arith.truncf %58 : vector<4x8x8xf32> to vector<4x8x8xbf16>
    "tpu.trace_start"() <{level = 10 : i32, message = "hld,hsd->hls"}> : () -> ()
    %cst_21 = arith.constant dense<0.000000e+00> : vector<4x8x8xf32>
    %64 = tpu.matmul %62, %63, %cst_21 {dimension_numbers = #tpu.dot_dimension_numbers<[2], [2], [1], [1], [0, 0, 0, 1, 1, 1], [0], [0]>} : vector<4x8x8xbf16>, vector<4x8x8xbf16>, vector<4x8x8xf32> -> vector<4x8x8xf32>
    %cst_22 = arith.constant -1.000000e+30 : f32
    "tpu.trace_stop"() : () -> ()
    %65 = vector.broadcast %cst_22 : f32 to vector<4x8x8xf32>
    %66 = arith.select %23, %64, %65 : vector<4x8x8xi1>, vector<4x8x8xf32>
    %cst_23 = arith.constant dense<0xFF800000> : vector<4x8xf32>
    %67 = vector.multi_reduction <maximumf>, %66, %cst_23 [2] : vector<4x8x8xf32> to vector<4x8xf32>
    %68 = vector.shape_cast %67 : vector<4x8xf32> to vector<4x8x1xf32>
    %69 = vector.broadcast %68 : vector<4x8x1xf32> to vector<4x8x8xf32>
    %70 = arith.subf %66, %69 : vector<4x8x8xf32>
    %71 = math.exp %70 : vector<4x8x8xf32>
    %cst_24 = arith.constant dense<0.000000e+00> : vector<4x8xf32>
    %72 = vector.multi_reduction <add>, %71, %cst_24 [2] : vector<4x8x8xf32> to vector<4x8xf32>
    %73 = vector.shape_cast %72 : vector<4x8xf32> to vector<4x8x1xf32>
    %74 = tpu.reciprocal %73 {approx = true} : vector<4x8x1xf32> -> vector<4x8x1xf32>
    %75 = vector.broadcast %74 : vector<4x8x1xf32> to vector<4x8x8xf32>
    %76 = arith.mulf %71, %75 : vector<4x8x8xf32>
    %77 = arith.truncf %76 : vector<4x8x8xf32> to vector<4x8x8xbf16>
    %78 = arith.truncf %61 : vector<4x8x8xf32> to vector<4x8x8xbf16>
    "tpu.trace_start"() <{level = 10 : i32, message = "hls,hsd->hld"}> : () -> ()
    %cst_25 = arith.constant dense<0.000000e+00> : vector<4x8x8xf32>
    %79 = tpu.matmul %77, %78, %cst_25 {dimension_numbers = #tpu.dot_dimension_numbers<[2], [1], [1], [2], [0, 0, 0, 1, 1, 2], [0], [0]>} : vector<4x8x8xbf16>, vector<4x8x8xbf16>, vector<4x8x8xf32> -> vector<4x8x8xf32>
    "tpu.trace_stop"() : () -> ()
    %80 = tpu.transpose %79, [1, 0, 2] : vector<4x8x8xf32> -> vector<8x4x8xf32>
    %81 = vector.shape_cast %80 : vector<8x4x8xf32> to vector<8x32xf32>
    %82 = tpu.concatenate %52, %81 in 0 : vector<8x32xf32>, vector<8x32xf32> -> vector<16x32xf32>
    %83 = arith.truncf %82 : vector<16x32xf32> to vector<16x32xbf16>
    %cst_26 = arith.constant dense<0.000000e+00> : vector<16x32xf32>
    %84 = tpu.matmul %83, %19, %cst_26 {dimension_numbers = #tpu.dot_dimension_numbers<[1], [0], [0], [1], [0, 0, 1, 1], [], []>} : vector<16x32xbf16>, vector<32x32xbf16>, vector<16x32xf32> -> vector<16x32xf32>
    %85 = vector.broadcast %20 : vector<1x32xf32> to vector<16x32xf32>
    %86 = arith.addf %84, %85 : vector<16x32xf32>
    %87 = arith.addf %3, %86 : vector<16x32xf32>
    %88 = vector.extract_strided_slice %6 {offsets = [4, 0], sizes = [1, 32], strides = [1, 1]} : vector<10x32xf32> to vector<1x32xf32>
    %89 = vector.extract_strided_slice %6 {offsets = [5, 0], sizes = [1, 32], strides = [1, 1]} : vector<10x32xf32> to vector<1x32xf32>
    %cst_27 = arith.constant dense<0.000000e+00> : vector<16xf32>
    %90 = vector.multi_reduction <add>, %87, %cst_27 [1] : vector<16x32xf32> to vector<16xf32>
    %91 = vector.shape_cast %90 : vector<16xf32> to vector<16x1xf32>
    %cst_28 = arith.constant 3.200000e+01 : f32
    %92 = vector.broadcast %cst_28 : f32 to vector<16x1xf32>
    %93 = arith.divf %91, %92 : vector<16x1xf32>
    %94 = vector.broadcast %93 : vector<16x1xf32> to vector<16x32xf32>
    %95 = arith.subf %87, %94 : vector<16x32xf32>
    %96 = arith.mulf %95, %95 : vector<16x32xf32>
    %cst_29 = arith.constant dense<0.000000e+00> : vector<16xf32>
    %97 = vector.multi_reduction <add>, %96, %cst_29 [1] : vector<16x32xf32> to vector<16xf32>
    %98 = vector.shape_cast %97 : vector<16xf32> to vector<16x1xf32>
    %cst_30 = arith.constant 3.200000e+01 : f32
    %99 = vector.broadcast %cst_30 : f32 to vector<16x1xf32>
    %100 = arith.divf %98, %99 : vector<16x1xf32>
    %cst_31 = arith.constant 9.99999974E-6 : f32
    %101 = vector.broadcast %cst_31 : f32 to vector<16x1xf32>
    %102 = arith.addf %100, %101 : vector<16x1xf32>
    %103 = math.rsqrt %102 : vector<16x1xf32>
    %104 = vector.broadcast %103 : vector<16x1xf32> to vector<16x32xf32>
    %105 = arith.mulf %95, %104 : vector<16x32xf32>
    %106 = vector.broadcast %88 : vector<1x32xf32> to vector<16x32xf32>
    %107 = arith.mulf %105, %106 : vector<16x32xf32>
    %108 = vector.broadcast %89 : vector<1x32xf32> to vector<16x32xf32>
    %109 = arith.addf %107, %108 : vector<16x32xf32>
    %110 = arith.truncf %109 : vector<16x32xf32> to vector<16x32xbf16>
    %c0_32 = arith.constant 0 : index
    %c0_33 = arith.constant 0 : index
    %c0_34 = arith.constant 0 : index
    %111 = vector.load %arg6[%c0_32, %c0_33, %c0_34] : memref<1x32x32xbf16, #tpu.memory_space<vmem>>, vector<1x32x32xbf16>
    %112 = vector.shape_cast %111 : vector<1x32x32xbf16> to vector<32x32xbf16>
    %cst_35 = arith.constant dense<0.000000e+00> : vector<16x32xf32>
    %113 = tpu.matmul %110, %112, %cst_35 {dimension_numbers = #tpu.dot_dimension_numbers<[1], [0], [0], [1], [0, 0, 1, 1], [], []>} : vector<16x32xbf16>, vector<32x32xbf16>, vector<16x32xf32> -> vector<16x32xf32>
    %114 = vector.extract_strided_slice %6 {offsets = [1, 0], sizes = [1, 32], strides = [1, 1]} : vector<10x32xf32> to vector<1x32xf32>
    %115 = vector.broadcast %114 : vector<1x32xf32> to vector<16x32xf32>
    %116 = arith.addf %113, %115 : vector<16x32xf32>
    %c0_36 = arith.constant 0 : index
    %c0_37 = arith.constant 0 : index
    %c0_38 = arith.constant 0 : index
    %117 = vector.load %arg7[%c0_36, %c0_37, %c0_38] : memref<1x32x64xbf16, #tpu.memory_space<vmem>>, vector<1x32x64xbf16>
    %118 = vector.shape_cast %117 : vector<1x32x64xbf16> to vector<32x64xbf16>
    %cst_39 = arith.constant dense<0.000000e+00> : vector<24x64xf32>
    %119 = tpu.matmul %4, %118, %cst_39 {dimension_numbers = #tpu.dot_dimension_numbers<[1], [0], [0], [1], [0, 0, 1, 1], [], []>} : vector<24x32xbf16>, vector<32x64xbf16>, vector<24x64xf32> -> vector<24x64xf32>
    %c0_40 = arith.constant 0 : index
    %c0_41 = arith.constant 0 : index
    %c0_42 = arith.constant 0 : index
    %120 = vector.load %arg8[%c0_40, %c0_41, %c0_42] : memref<1x1x64xf32, #tpu.memory_space<vmem>>, vector<1x1x64xf32>
    %121 = vector.shape_cast %120 : vector<1x1x64xf32> to vector<1x64xf32>
    %122 = vector.broadcast %121 : vector<1x64xf32> to vector<24x64xf32>
    %123 = arith.addf %119, %122 : vector<24x64xf32>
    %124 = vector.extract_strided_slice %123 {offsets = [0, 0], sizes = [24, 32], strides = [1, 1]} : vector<24x64xf32> to vector<24x32xf32>
    %125 = vector.extract_strided_slice %123 {offsets = [0, 32], sizes = [24, 32], strides = [1, 1]} : vector<24x64xf32> to vector<24x32xf32>
    %c0_43 = arith.constant 0 : index
    %c0_44 = arith.constant 0 : index
    %c0_45 = arith.constant 0 : index
    %126 = vector.load %arg9[%c0_43, %c0_44, %c0_45] : memref<1x32x32xbf16, #tpu.memory_space<vmem>>, vector<1x32x32xbf16>
    %127 = vector.shape_cast %126 : vector<1x32x32xbf16> to vector<32x32xbf16>
    %128 = vector.extract_strided_slice %6 {offsets = [2, 0], sizes = [1, 32], strides = [1, 1]} : vector<10x32xf32> to vector<1x32xf32>
    %129 = vector.extract_strided_slice %116 {offsets = [0, 0], sizes = [8, 32], strides = [1, 1]} : vector<16x32xf32> to vector<8x32xf32>
    %130 = vector.shape_cast %129 : vector<8x32xf32> to vector<8x4x8xf32>
    %131 = tpu.transpose %130, [1, 0, 2] : vector<8x4x8xf32> -> vector<4x8x8xf32>
    %132 = vector.extract_strided_slice %124 {offsets = [0, 0], sizes = [12, 32], strides = [1, 1]} : vector<24x32xf32> to vector<12x32xf32>
    %133 = vector.shape_cast %132 : vector<12x32xf32> to vector<12x4x8xf32>
    %134 = tpu.transpose %133, [1, 0, 2] : vector<12x4x8xf32> -> vector<4x12x8xf32>
    %135 = vector.extract_strided_slice %125 {offsets = [0, 0], sizes = [12, 32], strides = [1, 1]} : vector<24x32xf32> to vector<12x32xf32>
    %136 = vector.shape_cast %135 : vector<12x32xf32> to vector<12x4x8xf32>
    %137 = tpu.transpose %136, [1, 0, 2] : vector<12x4x8xf32> -> vector<4x12x8xf32>
    %138 = arith.truncf %131 : vector<4x8x8xf32> to vector<4x8x8xbf16>
    %139 = arith.truncf %134 : vector<4x12x8xf32> to vector<4x12x8xbf16>
    "tpu.trace_start"() <{level = 10 : i32, message = "hld,hsd->hls"}> : () -> ()
    %cst_46 = arith.constant dense<0.000000e+00> : vector<4x8x12xf32>
    %140 = tpu.matmul %138, %139, %cst_46 {dimension_numbers = #tpu.dot_dimension_numbers<[2], [2], [1], [1], [0, 0, 0, 1, 1, 1], [0], [0]>} : vector<4x8x8xbf16>, vector<4x12x8xbf16>, vector<4x8x12xf32> -> vector<4x8x12xf32>
    "tpu.trace_stop"() : () -> ()
    %cst_47 = arith.constant dense<0xFF800000> : vector<4x8xf32>
    %141 = vector.multi_reduction <maximumf>, %140, %cst_47 [2] : vector<4x8x12xf32> to vector<4x8xf32>
    %142 = vector.shape_cast %141 : vector<4x8xf32> to vector<4x8x1xf32>
    %143 = vector.broadcast %142 : vector<4x8x1xf32> to vector<4x8x12xf32>
    %144 = arith.subf %140, %143 : vector<4x8x12xf32>
    %145 = math.exp %144 : vector<4x8x12xf32>
    %cst_48 = arith.constant dense<0.000000e+00> : vector<4x8xf32>
    %146 = vector.multi_reduction <add>, %145, %cst_48 [2] : vector<4x8x12xf32> to vector<4x8xf32>
    %147 = vector.shape_cast %146 : vector<4x8xf32> to vector<4x8x1xf32>
    %148 = tpu.reciprocal %147 {approx = true} : vector<4x8x1xf32> -> vector<4x8x1xf32>
    %149 = vector.broadcast %148 : vector<4x8x1xf32> to vector<4x8x12xf32>
    %150 = arith.mulf %145, %149 : vector<4x8x12xf32>
    %151 = arith.truncf %150 : vector<4x8x12xf32> to vector<4x8x12xbf16>
    %152 = arith.truncf %137 : vector<4x12x8xf32> to vector<4x12x8xbf16>
    "tpu.trace_start"() <{level = 10 : i32, message = "hls,hsd->hld"}> : () -> ()
    %cst_49 = arith.constant dense<0.000000e+00> : vector<4x8x8xf32>
    %153 = tpu.matmul %151, %152, %cst_49 {dimension_numbers = #tpu.dot_dimension_numbers<[2], [1], [1], [2], [0, 0, 0, 1, 1, 2], [0], [0]>} : vector<4x8x12xbf16>, vector<4x12x8xbf16>, vector<4x8x8xf32> -> vector<4x8x8xf32>
    "tpu.trace_stop"() : () -> ()
    %154 = tpu.transpose %153, [1, 0, 2] : vector<4x8x8xf32> -> vector<8x4x8xf32>
    %155 = vector.shape_cast %154 : vector<8x4x8xf32> to vector<8x32xf32>
    %156 = vector.extract_strided_slice %116 {offsets = [8, 0], sizes = [8, 32], strides = [1, 1]} : vector<16x32xf32> to vector<8x32xf32>
    %157 = vector.shape_cast %156 : vector<8x32xf32> to vector<8x4x8xf32>
    %158 = tpu.transpose %157, [1, 0, 2] : vector<8x4x8xf32> -> vector<4x8x8xf32>
    %159 = vector.extract_strided_slice %124 {offsets = [12, 0], sizes = [12, 32], strides = [1, 1]} : vector<24x32xf32> to vector<12x32xf32>
    %160 = vector.shape_cast %159 : vector<12x32xf32> to vector<12x4x8xf32>
    %161 = tpu.transpose %160, [1, 0, 2] : vector<12x4x8xf32> -> vector<4x12x8xf32>
    %162 = vector.extract_strided_slice %125 {offsets = [12, 0], sizes = [12, 32], strides = [1, 1]} : vector<24x32xf32> to vector<12x32xf32>
    %163 = vector.shape_cast %162 : vector<12x32xf32> to vector<12x4x8xf32>
    %164 = tpu.transpose %163, [1, 0, 2] : vector<12x4x8xf32> -> vector<4x12x8xf32>
    %165 = arith.truncf %158 : vector<4x8x8xf32> to vector<4x8x8xbf16>
    %166 = arith.truncf %161 : vector<4x12x8xf32> to vector<4x12x8xbf16>
    "tpu.trace_start"() <{level = 10 : i32, message = "hld,hsd->hls"}> : () -> ()
    %cst_50 = arith.constant dense<0.000000e+00> : vector<4x8x12xf32>
    %167 = tpu.matmul %165, %166, %cst_50 {dimension_numbers = #tpu.dot_dimension_numbers<[2], [2], [1], [1], [0, 0, 0, 1, 1, 1], [0], [0]>} : vector<4x8x8xbf16>, vector<4x12x8xbf16>, vector<4x8x12xf32> -> vector<4x8x12xf32>
    "tpu.trace_stop"() : () -> ()
    %cst_51 = arith.constant dense<0xFF800000> : vector<4x8xf32>
    %168 = vector.multi_reduction <maximumf>, %167, %cst_51 [2] : vector<4x8x12xf32> to vector<4x8xf32>
    %169 = vector.shape_cast %168 : vector<4x8xf32> to vector<4x8x1xf32>
    %170 = vector.broadcast %169 : vector<4x8x1xf32> to vector<4x8x12xf32>
    %171 = arith.subf %167, %170 : vector<4x8x12xf32>
    %172 = math.exp %171 : vector<4x8x12xf32>
    %cst_52 = arith.constant dense<0.000000e+00> : vector<4x8xf32>
    %173 = vector.multi_reduction <add>, %172, %cst_52 [2] : vector<4x8x12xf32> to vector<4x8xf32>
    %174 = vector.shape_cast %173 : vector<4x8xf32> to vector<4x8x1xf32>
    %175 = tpu.reciprocal %174 {approx = true} : vector<4x8x1xf32> -> vector<4x8x1xf32>
    %176 = vector.broadcast %175 : vector<4x8x1xf32> to vector<4x8x12xf32>
    %177 = arith.mulf %172, %176 : vector<4x8x12xf32>
    %178 = arith.truncf %177 : vector<4x8x12xf32> to vector<4x8x12xbf16>
    %179 = arith.truncf %164 : vector<4x12x8xf32> to vector<4x12x8xbf16>
    "tpu.trace_start"() <{level = 10 : i32, message = "hls,hsd->hld"}> : () -> ()
    %cst_53 = arith.constant dense<0.000000e+00> : vector<4x8x8xf32>
    %180 = tpu.matmul %178, %179, %cst_53 {dimension_numbers = #tpu.dot_dimension_numbers<[2], [1], [1], [2], [0, 0, 0, 1, 1, 2], [0], [0]>} : vector<4x8x12xbf16>, vector<4x12x8xbf16>, vector<4x8x8xf32> -> vector<4x8x8xf32>
    "tpu.trace_stop"() : () -> ()
    %181 = tpu.transpose %180, [1, 0, 2] : vector<4x8x8xf32> -> vector<8x4x8xf32>
    %182 = vector.shape_cast %181 : vector<8x4x8xf32> to vector<8x32xf32>
    %183 = tpu.concatenate %155, %182 in 0 : vector<8x32xf32>, vector<8x32xf32> -> vector<16x32xf32>
    %184 = arith.truncf %183 : vector<16x32xf32> to vector<16x32xbf16>
    %cst_54 = arith.constant dense<0.000000e+00> : vector<16x32xf32>
    %185 = tpu.matmul %184, %127, %cst_54 {dimension_numbers = #tpu.dot_dimension_numbers<[1], [0], [0], [1], [0, 0, 1, 1], [], []>} : vector<16x32xbf16>, vector<32x32xbf16>, vector<16x32xf32> -> vector<16x32xf32>
    %186 = vector.broadcast %128 : vector<1x32xf32> to vector<16x32xf32>
    %187 = arith.addf %185, %186 : vector<16x32xf32>
    %188 = arith.addf %109, %187 : vector<16x32xf32>
    %189 = vector.extract_strided_slice %6 {offsets = [6, 0], sizes = [1, 32], strides = [1, 1]} : vector<10x32xf32> to vector<1x32xf32>
    %190 = vector.extract_strided_slice %6 {offsets = [7, 0], sizes = [1, 32], strides = [1, 1]} : vector<10x32xf32> to vector<1x32xf32>
    %cst_55 = arith.constant dense<0.000000e+00> : vector<16xf32>
    %191 = vector.multi_reduction <add>, %188, %cst_55 [1] : vector<16x32xf32> to vector<16xf32>
    %192 = vector.shape_cast %191 : vector<16xf32> to vector<16x1xf32>
    %cst_56 = arith.constant 3.200000e+01 : f32
    %193 = vector.broadcast %cst_56 : f32 to vector<16x1xf32>
    %194 = arith.divf %192, %193 : vector<16x1xf32>
    %195 = vector.broadcast %194 : vector<16x1xf32> to vector<16x32xf32>
    %196 = arith.subf %188, %195 : vector<16x32xf32>
    %197 = arith.mulf %196, %196 : vector<16x32xf32>
    %cst_57 = arith.constant dense<0.000000e+00> : vector<16xf32>
    %198 = vector.multi_reduction <add>, %197, %cst_57 [1] : vector<16x32xf32> to vector<16xf32>
    %199 = vector.shape_cast %198 : vector<16xf32> to vector<16x1xf32>
    %cst_58 = arith.constant 3.200000e+01 : f32
    %200 = vector.broadcast %cst_58 : f32 to vector<16x1xf32>
    %201 = arith.divf %199, %200 : vector<16x1xf32>
    %cst_59 = arith.constant 9.99999974E-6 : f32
    %202 = vector.broadcast %cst_59 : f32 to vector<16x1xf32>
    %203 = arith.addf %201, %202 : vector<16x1xf32>
    %204 = math.rsqrt %203 : vector<16x1xf32>
    %205 = vector.broadcast %204 : vector<16x1xf32> to vector<16x32xf32>
    %206 = arith.mulf %196, %205 : vector<16x32xf32>
    %207 = vector.broadcast %189 : vector<1x32xf32> to vector<16x32xf32>
    %208 = arith.mulf %206, %207 : vector<16x32xf32>
    %209 = vector.broadcast %190 : vector<1x32xf32> to vector<16x32xf32>
    %210 = arith.addf %208, %209 : vector<16x32xf32>
    %211 = arith.truncf %210 : vector<16x32xf32> to vector<16x32xbf16>
    %c0_60 = arith.constant 0 : index
    %c0_61 = arith.constant 0 : index
    %c0_62 = arith.constant 0 : index
    %212 = vector.load %arg10[%c0_60, %c0_61, %c0_62] : memref<1x32x64xbf16, #tpu.memory_space<vmem>>, vector<1x32x64xbf16>
    %213 = vector.shape_cast %212 : vector<1x32x64xbf16> to vector<32x64xbf16>
    %cst_63 = arith.constant dense<0.000000e+00> : vector<16x64xf32>
    %214 = tpu.matmul %211, %213, %cst_63 {dimension_numbers = #tpu.dot_dimension_numbers<[1], [0], [0], [1], [0, 0, 1, 1], [], []>} : vector<16x32xbf16>, vector<32x64xbf16>, vector<16x64xf32> -> vector<16x64xf32>
    %c0_64 = arith.constant 0 : index
    %c0_65 = arith.constant 0 : index
    %c0_66 = arith.constant 0 : index
    %215 = vector.load %arg11[%c0_64, %c0_65, %c0_66] : memref<1x1x64xf32, #tpu.memory_space<vmem>>, vector<1x1x64xf32>
    %216 = vector.shape_cast %215 : vector<1x1x64xf32> to vector<1x64xf32>
    %217 = vector.broadcast %216 : vector<1x64xf32> to vector<16x64xf32>
    %218 = arith.addf %214, %217 : vector<16x64xf32>
    %cst_67 = arith.constant 0.000000e+00 : f32
    %219 = vector.broadcast %cst_67 : f32 to vector<16x64xf32>
    %220 = arith.maximumf %218, %219 : vector<16x64xf32>
    %221 = arith.truncf %220 : vector<16x64xf32> to vector<16x64xbf16>
    %c0_68 = arith.constant 0 : index
    %c0_69 = arith.constant 0 : index
    %c0_70 = arith.constant 0 : index
    %222 = vector.load %arg12[%c0_68, %c0_69, %c0_70] : memref<1x64x32xbf16, #tpu.memory_space<vmem>>, vector<1x64x32xbf16>
    %223 = vector.shape_cast %222 : vector<1x64x32xbf16> to vector<64x32xbf16>
    %cst_71 = arith.constant dense<0.000000e+00> : vector<16x32xf32>
    %224 = tpu.matmul %221, %223, %cst_71 {dimension_numbers = #tpu.dot_dimension_numbers<[1], [0], [0], [1], [0, 0, 1, 1], [], []>} : vector<16x64xbf16>, vector<64x32xbf16>, vector<16x32xf32> -> vector<16x32xf32>
    %225 = vector.extract_strided_slice %6 {offsets = [3, 0], sizes = [1, 32], strides = [1, 1]} : vector<10x32xf32> to vector<1x32xf32>
    %226 = vector.broadcast %225 : vector<1x32xf32> to vector<16x32xf32>
    %227 = arith.addf %224, %226 : vector<16x32xf32>
    %228 = arith.addf %210, %227 : vector<16x32xf32>
    %229 = vector.extract_strided_slice %6 {offsets = [8, 0], sizes = [1, 32], strides = [1, 1]} : vector<10x32xf32> to vector<1x32xf32>
    %230 = vector.extract_strided_slice %6 {offsets = [9, 0], sizes = [1, 32], strides = [1, 1]} : vector<10x32xf32> to vector<1x32xf32>
    %cst_72 = arith.constant dense<0.000000e+00> : vector<16xf32>
    %231 = vector.multi_reduction <add>, %228, %cst_72 [1] : vector<16x32xf32> to vector<16xf32>
    %232 = vector.shape_cast %231 : vector<16xf32> to vector<16x1xf32>
    %cst_73 = arith.constant 3.200000e+01 : f32
    %233 = vector.broadcast %cst_73 : f32 to vector<16x1xf32>
    %234 = arith.divf %232, %233 : vector<16x1xf32>
    %235 = vector.broadcast %234 : vector<16x1xf32> to vector<16x32xf32>
    %236 = arith.subf %228, %235 : vector<16x32xf32>
    %237 = arith.mulf %236, %236 : vector<16x32xf32>
    %cst_74 = arith.constant dense<0.000000e+00> : vector<16xf32>
    %238 = vector.multi_reduction <add>, %237, %cst_74 [1] : vector<16x32xf32> to vector<16xf32>
    %239 = vector.shape_cast %238 : vector<16xf32> to vector<16x1xf32>
    %cst_75 = arith.constant 3.200000e+01 : f32
    %240 = vector.broadcast %cst_75 : f32 to vector<16x1xf32>
    %241 = arith.divf %239, %240 : vector<16x1xf32>
    %cst_76 = arith.constant 9.99999974E-6 : f32
    %242 = vector.broadcast %cst_76 : f32 to vector<16x1xf32>
    %243 = arith.addf %241, %242 : vector<16x1xf32>
    %244 = math.rsqrt %243 : vector<16x1xf32>
    %245 = vector.broadcast %244 : vector<16x1xf32> to vector<16x32xf32>
    %246 = arith.mulf %236, %245 : vector<16x32xf32>
    %247 = vector.broadcast %229 : vector<1x32xf32> to vector<16x32xf32>
    %248 = arith.mulf %246, %247 : vector<16x32xf32>
    %249 = vector.broadcast %230 : vector<1x32xf32> to vector<16x32xf32>
    %250 = arith.addf %248, %249 : vector<16x32xf32>
    %c0_77 = arith.constant 0 : index
    %c0_78 = arith.constant 0 : index
    %251 = vector.load %arg16[%c0_77, %c0_78] : memref<16x32xf32, #tpu.memory_space<vmem>>, vector<16x32xf32>
    tpu.vector_store %arg16[%c0_77, %c0_78], %250 {strides = array<i32>} : memref<16x32xf32, #tpu.memory_space<vmem>>, vector<16x32xf32>,
    %c1_i32 = arith.constant 1 : i32
    %252 = arith.cmpi eq, %arg0, %c1_i32 : i32
    %253 = arith.extui %252 : i1 to i32
    %c0_i32_79 = arith.constant 0 : i32
    %254 = arith.cmpi ne, %253, %c0_i32_79 : i32
    scf.if %254 {
      %c0_80 = arith.constant 0 : index
      %c0_81 = arith.constant 0 : index
      %255 = vector.load %arg14[%c0_80, %c0_81] : memref<2x32xf32, #tpu.memory_space<vmem>>, vector<2x32xf32>
      %256 = vector.extract_strided_slice %255 {offsets = [0, 0], sizes = [1, 32], strides = [1, 1]} : vector<2x32xf32> to vector<1x32xf32>
      %257 = vector.extract_strided_slice %255 {offsets = [1, 0], sizes = [1, 32], strides = [1, 1]} : vector<2x32xf32> to vector<1x32xf32>
      %cst_82 = arith.constant dense<0.000000e+00> : vector<16xf32>
      %258 = vector.multi_reduction <add>, %250, %cst_82 [1] : vector<16x32xf32> to vector<16xf32>
      %259 = vector.shape_cast %258 : vector<16xf32> to vector<16x1xf32>
      %cst_83 = arith.constant 3.200000e+01 : f32
      %260 = vector.broadcast %cst_83 : f32 to vector<16x1xf32>
      %261 = arith.divf %259, %260 : vector<16x1xf32>
      %262 = vector.broadcast %261 : vector<16x1xf32> to vector<16x32xf32>
      %263 = arith.subf %250, %262 : vector<16x32xf32>
      %264 = arith.mulf %263, %263 : vector<16x32xf32>
      %cst_84 = arith.constant dense<0.000000e+00> : vector<16xf32>
      %265 = vector.multi_reduction <add>, %264, %cst_84 [1] : vector<16x32xf32> to vector<16xf32>
      %266 = vector.shape_cast %265 : vector<16xf32> to vector<16x1xf32>
      %cst_85 = arith.constant 3.200000e+01 : f32
      %267 = vector.broadcast %cst_85 : f32 to vector<16x1xf32>
      %268 = arith.divf %266, %267 : vector<16x1xf32>
      %cst_86 = arith.constant 9.99999974E-6 : f32
      %269 = vector.broadcast %cst_86 : f32 to vector<16x1xf32>
      %270 = arith.addf %268, %269 : vector<16x1xf32>
      %271 = math.rsqrt %270 : vector<16x1xf32>
      %272 = vector.broadcast %271 : vector<16x1xf32> to vector<16x32xf32>
      %273 = arith.mulf %263, %272 : vector<16x32xf32>
      %274 = vector.broadcast %256 : vector<1x32xf32> to vector<16x32xf32>
      %275 = arith.mulf %273, %274 : vector<16x32xf32>
      %276 = vector.broadcast %257 : vector<1x32xf32> to vector<16x32xf32>
      %277 = arith.addf %275, %276 : vector<16x32xf32>
      %c0_87 = arith.constant 0 : index
      %c0_88 = arith.constant 0 : index
      %278 = vector.load %arg15[%c0_87, %c0_88] : memref<16x32xf32, #tpu.memory_space<vmem>>, vector<16x32xf32>
      tpu.vector_store %arg15[%c0_87, %c0_88], %277 {strides = array<i32>} : memref<16x32xf32, #tpu.memory_space<vmem>>, vector<16x32xf32>,
    } else {
    }
    return
  }
  func.func @transform_0(%arg0: i32) -> (i32, i32) {
    %c0_i32 = arith.constant 0 : i32
    %c0_i32_0 = arith.constant 0 : i32
    %c0_i32_1 = arith.constant 0 : i32
    return %c0_i32, %c0_i32_0 : i32, i32
  }
  func.func @transform_1(%arg0: i32) -> (i32, i32) {
    %c0_i32 = arith.constant 0 : i32
    %c0_i32_0 = arith.constant 0 : i32
    %c0_i32_1 = arith.constant 0 : i32
    return %c0_i32, %c0_i32_0 : i32, i32
  }
  func.func @transform_2(%arg0: i32) -> (i32, i32, i32) {
    %c0_i32 = arith.constant 0 : i32
    %c0_i32_0 = arith.constant 0 : i32
    %c0_i32_1 = arith.constant 0 : i32
    return %arg0, %c0_i32, %c0_i32_0 : i32, i32, i32
  }
  func.func @transform_3(%arg0: i32) -> (i32, i32, i32) {
    %c0_i32 = arith.constant 0 : i32
    %c0_i32_0 = arith.constant 0 : i32
    %c0_i32_1 = arith.constant 0 : i32
    return %arg0, %c0_i32, %c0_i32_0 : i32, i32, i32
  }
  func.func @transform_4(%arg0: i32) -> (i32, i32, i32) {
    %c0_i32 = arith.constant 0 : i32
    %c0_i32_0 = arith.constant 0 : i32
    %c0_i32_1 = arith.constant 0 : i32
    return %arg0, %c0_i32, %c0_i32_0 : i32, i32, i32
  }
  func.func @transform_5(%arg0: i32) -> (i32, i32, i32) {
    %c0_i32 = arith.constant 0 : i32
    %c0_i32_0 = arith.constant 0 : i32
    %c0_i32_1 = arith.constant 0 : i32
    return %arg0, %c0_i32, %c0_i32_0 : i32, i32, i32
  }
  func.func @transform_6(%arg0: i32) -> (i32, i32, i32) {
    %c0_i32 = arith.constant 0 : i32
    %c0_i32_0 = arith.constant 0 : i32
    %c0_i32_1 = arith.constant 0 : i32
    return %arg0, %c0_i32, %c0_i32_0 : i32, i32, i32
  }
  func.func @transform_7(%arg0: i32) -> (i32, i32, i32) {
    %c0_i32 = arith.constant 0 : i32
    %c0_i32_0 = arith.constant 0 : i32
    %c0_i32_1 = arith.constant 0 : i32
    return %arg0, %c0_i32, %c0_i32_0 : i32, i32, i32
  }
  func.func @transform_8(%arg0: i32) -> (i32, i32, i32) {
    %c0_i32 = arith.constant 0 : i32
    %c0_i32_0 = arith.constant 0 : i32
    %c0_i32_1 = arith.constant 0 : i32
    return %arg0, %c0_i32, %c0_i32_0 : i32, i32, i32
  }
  func.func @transform_9(%arg0: i32) -> (i32, i32, i32) {
    %c0_i32 = arith.constant 0 : i32
    %c0_i32_0 = arith.constant 0 : i32
    %c0_i32_1 = arith.constant 0 : i32
    return %arg0, %c0_i32, %c0_i32_0 : i32, i32, i32
  }
  func.func @transform_10(%arg0: i32) -> (i32, i32, i32) {
    %c0_i32 = arith.constant 0 : i32
    %c0_i32_0 = arith.constant 0 : i32
    %c0_i32_1 = arith.constant 0 : i32
    return %arg0, %c0_i32, %c0_i32_0 : i32, i32, i32
  }
  func.func @transform_11(%arg0: i32) -> (i32, i32, i32) {
    %c0_i32 = arith.constant 0 : i32
    %c0_i32_0 = arith.constant 0 : i32
    %c0_i32_1 = arith.constant 0 : i32
    return %arg0, %c0_i32, %c0_i32_0 : i32, i32, i32
  }
  func.func @transform_12(%arg0: i32) -> (i32, i32, i32) {
    %c0_i32 = arith.constant 0 : i32
    %c0_i32_0 = arith.constant 0 : i32
    %c0_i32_1 = arith.constant 0 : i32
    return %arg0, %c0_i32, %c0_i32_0 : i32, i32, i32
  }
  func.func @transform_13(%arg0: i32) -> (i32, i32) {
    %c0_i32 = arith.constant 0 : i32
    %c0_i32_0 = arith.constant 0 : i32
    %c0_i32_1 = arith.constant 0 : i32
    return %c0_i32, %c0_i32_0 : i32, i32
  }
  func.func @transform_14(%arg0: i32) -> (i32, i32) {
    %c0_i32 = arith.constant 0 : i32
    %c0_i32_0 = arith.constant 0 : i32
    %c0_i32_1 = arith.constant 0 : i32
    return %c0_i32, %c0_i32_0 : i32, i32
  }
}

</mosaic_0001>

<llo_original>
// kernel: _decoder_forward_jit.1
$region0: #{_decoder_forward_jit.1}
  #allocation0 [shape = 'u32[]', space=smem, size = 0x4, offset = 0x4, fixed_abs, tag = 'smem constant byte address 0x4 - core index']
  #allocation1 [shape = 'u32[72,128]{1,0:T(1,128)}', space=vmem, size = 0x9000, scoped, tag = 'internal scratch']
  #allocation2 [shape = 'f32[16,32]{1,0:T(8,128)}', space=vmem, size = 0x2000, scoped, tag = 'scratch operand']
  %s0 = inlined_call_operand.vmem [shape: f32[16,32], index: 0, kind: input, shape index: {}]
  %s1 = inlined_call_operand.vmem [shape: bf16[24,32], index: 1, kind: input, shape index: {}]
  %s2 = inlined_call_operand.vmem [shape: bf16[2,32,96], index: 2, kind: input, shape index: {}]
  %s3 = inlined_call_operand.vmem [shape: f32[2,1,96], index: 3, kind: input, shape index: {}]
  %s4 = inlined_call_operand.vmem [shape: bf16[2,32,32], index: 4, kind: input, shape index: {}]
  %s5 = inlined_call_operand.vmem [shape: bf16[2,32,32], index: 5, kind: input, shape index: {}]
  %s6 = inlined_call_operand.vmem [shape: bf16[2,32,64], index: 6, kind: input, shape index: {}]
  %s7 = inlined_call_operand.vmem [shape: f32[2,1,64], index: 7, kind: input, shape index: {}]
  %s8 = inlined_call_operand.vmem [shape: bf16[2,32,32], index: 8, kind: input, shape index: {}]
  %s9 = inlined_call_operand.hbm [shape: bf16[2,32,64], index: 9, kind: input, shape index: {}]
  %s10 = inlined_call_operand.vmem [shape: f32[2,1,64], index: 10, kind: input, shape index: {}]
  %s11 = inlined_call_operand.vmem [shape: bf16[2,64,32], index: 11, kind: input, shape index: {}]
  %s12 = inlined_call_operand.vmem [shape: f32[2,10,32], index: 12, kind: input, shape index: {}]
  %s13 = inlined_call_operand.vmem [shape: f32[2,32], index: 13, kind: input, shape index: {}]
  %s14 = inlined_call_operand.hbm [shape: f32[16,32], index: 14, kind: output, shape index: {}]
  %s15 = sld [smem:[#allocation0]]
  $region101: #{_decoder_forward_jit.1} parent=0
    _
  %s17 = ssub.s32 1, %s15
  %s18 = scalar_select 0, %s17, %s15
  $region1: #{_decoder_forward_jit.1} parent=0
    #allocation3 [shape = 'u8[16384]{0}', space=vmem, size = 0x4000, scoped, tag = 'input window, operand 9']
    #allocation4 [shape = 's32[2]{0}', space=sflag, size = 0x8, scoped, tag = 'scoped memory for _decoder_forward_jit.1']
    #allocation5 [shape = 's32[2]{0}', space=sflag, size = 0x8, scoped, tag = 'scoped memory for _decoder_forward_jit.1']
    #allocation6 [shape = 'u8[8192]{0}', space=vmem, size = 0x2000, scoped, tag = 'output window, operand 0, single buffered']
    %19 = vsyncpa [#allocation4], 0
    %s20 = scalar_lea.sflag [#allocation4], 1
    %21 = vsyncpa %s20, 0
    %22 = vsyncpa [#allocation5], 0
    loop: start=0, step=1, limit=4
    $region2: #{_decoder_forward_jit.1} parent=1 // loop_pre_header
      _
    $region3: #{_decoder_forward_jit.1} parent=1 // loop_header
      %s24 = sphi 0, %s28
      %p25 = scmp.ge.s32.totalorder %s24, 4
      %s32 = sphi 0, %s32
      %s34 = sphi 0, %s32
      %s35 = sphi 0, %s34
      %s49 = sphi 0, %s35
      %s53 = sphi 0, %s53
      %s55 = sphi 0, %s53
      %s56 = sphi 0, %s55
      %s70 = sphi 0, %s56
      %s76 = sphi 0, %s78
      %s79 = sphi 0, %s76
      %s80 = sphi 0, %s79
      %s96 = sphi 0, %s80
      %s102 = sphi 0, %s104
      %s105 = sphi 0, %s102
      %s106 = sphi 0, %s105
      %s122 = sphi 0, %s106
      %s128 = sphi 0, %s130
      %s131 = sphi 0, %s128
      %s132 = sphi 0, %s131
      %s148 = sphi 0, %s132
      %s154 = sphi 0, %s156
      %s157 = sphi 0, %s154
      %s158 = sphi 0, %s157
      %s174 = sphi 0, %s158
      %s180 = sphi 0, %s182
      %s183 = sphi 0, %s180
      %s184 = sphi 0, %s183
      %s200 = sphi 0, %s184
      %s206 = sphi 0, %s208
      %s209 = sphi 0, %s206
      %s210 = sphi 0, %s209
      %s226 = sphi 0, %s210
      %s232 = sphi 0, %s234
      %s235 = sphi 0, %s232
      %s236 = sphi 0, %s235
      %s252 = sphi 0, %s236
      %s258 = sphi 0, %s260
      %s261 = sphi 0, %s258
      %s262 = sphi 0, %s261
      %s278 = sphi 0, %s262
      %s284 = sphi 0, %s286
      %s287 = sphi 0, %s284
      %s288 = sphi 0, %s287
      %s304 = sphi 0, %s288
      %s310 = sphi 0, %s312
      %s313 = sphi 0, %s310
      %s314 = sphi 0, %s313
      %s330 = sphi 0, %s314
      %s336 = sphi 0, %s338
      %s339 = sphi 0, %s336
      %s340 = sphi 0, %s339
      %s356 = sphi 0, %s340
      %s360 = sphi 0, %s360
      %s362 = sphi 0, %s360
      %s363 = sphi 0, %s362
      %s377 = sphi 0, %s363
      %s381 = sphi 0, %s381
      %s383 = sphi 0, %s381
      %s384 = sphi 0, %s383
      %s398 = sphi 0, %s384
    $region4: #{_decoder_forward_jit.1} parent=1 // loop_header_branch
      %27 = sbr.rel (%p25) target = $region8
    $region5: #{_decoder_forward_jit.1} parent=1 // loop_body
      %s29 = ssub.s32 %s24, 1
      %s30 = ssub.s32 %s24, 2
      %s31 = sadd.s32 %s24, 1
      %s33 = sadd.s32 %s32, 1
      %p36 = scmp.eq.s32.totalorder %s24, 1
      %p37 = scmp.ne.s32.totalorder %s32, %s34
      %p38 = scmp.eq.s32.totalorder %s24, 0
      %p39 = por %p37, %p38
      %p40 = scmp.ne.s32.totalorder %s32, %s34
      %p41 = scmp.eq.s32.totalorder %s29, 1
      %p42 = por %p40, %p41
      %p43 = scmp.ne.s32.totalorder %s34, %s35
      %p44 = scmp.eq.s32.totalorder %s29, 0
      %p45 = por %p43, %p44
      %p46 = scmp.ne.s32.totalorder %s34, %s35
      %p47 = scmp.eq.s32.totalorder %s30, 1
      %p48 = por %p46, %p47
      %p50 = scmp.ne.s32.totalorder %s35, %s49
      %p51 = scmp.eq.s32.totalorder %s30, 0
      %p52 = por %p50, %p51
      %s54 = sadd.s32 %s53, 1
      %p57 = scmp.eq.s32.totalorder %s24, 1
      %p58 = scmp.ne.s32.totalorder %s53, %s55
      %p59 = scmp.eq.s32.totalorder %s24, 0
      %p60 = por %p58, %p59
      %p61 = scmp.ne.s32.totalorder %s53, %s55
      %p62 = scmp.eq.s32.totalorder %s29, 1
      %p63 = por %p61, %p62
      %p64 = scmp.ne.s32.totalorder %s55, %s56
      %p65 = scmp.eq.s32.totalorder %s29, 0
      %p66 = por %p64, %p65
      %p67 = scmp.ne.s32.totalorder %s55, %s56
      %p68 = scmp.eq.s32.totalorder %s30, 1
      %p69 = por %p67, %p68
      %p71 = scmp.ne.s32.totalorder %s56, %s70
      %p72 = scmp.eq.s32.totalorder %s30, 0
      %p73 = por %p71, %p72
      %s74 = ssub.s32 %s24, %s31
      %p75 = scmp.eq.s32.totalorder %s74, 0
      %s77 = sadd.s32 %s76, 1
      %s78 = scalar_select %p75, %s76, %s77
      %p81 = pneg %p75
      %p82 = scmp.eq.s32.totalorder %s24, 1
      %p83 = por %p81, %p82
      %p84 = scmp.ne.s32.totalorder %s76, %s79
      %p85 = scmp.eq.s32.totalorder %s24, 0
      %p86 = por %p84, %p85
      %p87 = scmp.ne.s32.totalorder %s76, %s79
      %p88 = scmp.eq.s32.totalorder %s29, 1
      %p89 = por %p87, %p88
      %p90 = scmp.ne.s32.totalorder %s79, %s80
      %p91 = scmp.eq.s32.totalorder %s29, 0
      %p92 = por %p90, %p91
      %p93 = scmp.ne.s32.totalorder %s79, %s80
      %p94 = scmp.eq.s32.totalorder %s30, 1
      %p95 = por %p93, %p94
      %p97 = scmp.ne.s32.totalorder %s80, %s96
      %p98 = scmp.eq.s32.totalorder %s30, 0
      %p99 = por %p97, %p98
      %s100 = ssub.s32 %s24, %s31
      %p101 = scmp.eq.s32.totalorder %s100, 0
      %s103 = sadd.s32 %s102, 1
      %s104 = scalar_select %p101, %s102, %s103
      %p107 = pneg %p101
      %p108 = scmp.eq.s32.totalorder %s24, 1
      %p109 = por %p107, %p108
      %p110 = scmp.ne.s32.totalorder %s102, %s105
      %p111 = scmp.eq.s32.totalorder %s24, 0
      %p112 = por %p110, %p111
      %p113 = scmp.ne.s32.totalorder %s102, %s105
      %p114 = scmp.eq.s32.totalorder %s29, 1
      %p115 = por %p113, %p114
      %p116 = scmp.ne.s32.totalorder %s105, %s106
      %p117 = scmp.eq.s32.totalorder %s29, 0
      %p118 = por %p116, %p117
      %p119 = scmp.ne.s32.totalorder %s105, %s106
      %p120 = scmp.eq.s32.totalorder %s30, 1
      %p121 = por %p119, %p120
      %p123 = scmp.ne.s32.totalorder %s106, %s122
      %p124 = scmp.eq.s32.totalorder %s30, 0
      %p125 = por %p123, %p124
      %s126 = ssub.s32 %s24, %s31
      %p127 = scmp.eq.s32.totalorder %s126, 0
      %s129 = sadd.s32 %s128, 1
      %s130 = scalar_select %p127, %s128, %s129
      %p133 = pneg %p127
      %p134 = scmp.eq.s32.totalorder %s24, 1
      %p135 = por %p133, %p134
      %p136 = scmp.ne.s32.totalorder %s128, %s131
      %p137 = scmp.eq.s32.totalorder %s24, 0
      %p138 = por %p136, %p137
      %p139 = scmp.ne.s32.totalorder %s128, %s131
      %p140 = scmp.eq.s32.totalorder %s29, 1
      %p141 = por %p139, %p140
      %p142 = scmp.ne.s32.totalorder %s131, %s132
      %p143 = scmp.eq.s32.totalorder %s29, 0
      %p144 = por %p142, %p143
      %p145 = scmp.ne.s32.totalorder %s131, %s132
      %p146 = scmp.eq.s32.totalorder %s30, 1
      %p147 = por %p145, %p146
      %p149 = scmp.ne.s32.totalorder %s132, %s148
      %p150 = scmp.eq.s32.totalorder %s30, 0
      %p151 = por %p149, %p150
      %s152 = ssub.s32 %s24, %s31
      %p153 = scmp.eq.s32.totalorder %s152, 0
      %s155 = sadd.s32 %s154, 1
      %s156 = scalar_select %p153, %s154, %s155
      %p159 = pneg %p153
      %p160 = scmp.eq.s32.totalorder %s24, 1
      %p161 = por %p159, %p160
      %p162 = scmp.ne.s32.totalorder %s154, %s157
      %p163 = scmp.eq.s32.totalorder %s24, 0
      %p164 = por %p162, %p163
      %p165 = scmp.ne.s32.totalorder %s154, %s157
      %p166 = scmp.eq.s32.totalorder %s29, 1
      %p167 = por %p165, %p166
      %p168 = scmp.ne.s32.totalorder %s157, %s158
      %p169 = scmp.eq.s32.totalorder %s29, 0
      %p170 = por %p168, %p169
      %p171 = scmp.ne.s32.totalorder %s157, %s158
      %p172 = scmp.eq.s32.totalorder %s30, 1
      %p173 = por %p171, %p172
      %p175 = scmp.ne.s32.totalorder %s158, %s174
      %p176 = scmp.eq.s32.totalorder %s30, 0
      %p177 = por %p175, %p176
      %s178 = ssub.s32 %s24, %s31
      %p179 = scmp.eq.s32.totalorder %s178, 0
      %s181 = sadd.s32 %s180, 1
      %s182 = scalar_select %p179, %s180, %s181
      %p185 = pneg %p179
      %p186 = scmp.eq.s32.totalorder %s24, 1
      %p187 = por %p185, %p186
      %p188 = scmp.ne.s32.totalorder %s180, %s183
      %p189 = scmp.eq.s32.totalorder %s24, 0
      %p190 = por %p188, %p189
      %p191 = scmp.ne.s32.totalorder %s180, %s183
      %p192 = scmp.eq.s32.totalorder %s29, 1
      %p193 = por %p191, %p192
      %p194 = scmp.ne.s32.totalorder %s183, %s184
      %p195 = scmp.eq.s32.totalorder %s29, 0
      %p196 = por %p194, %p195
      %p197 = scmp.ne.s32.totalorder %s183, %s184
      %p198 = scmp.eq.s32.totalorder %s30, 1
      %p199 = por %p197, %p198
      %p201 = scmp.ne.s32.totalorder %s184, %s200
      %p202 = scmp.eq.s32.totalorder %s30, 0
      %p203 = por %p201, %p202
      %s204 = ssub.s32 %s24, %s31
      %p205 = scmp.eq.s32.totalorder %s204, 0
      %s207 = sadd.s32 %s206, 1
      %s208 = scalar_select %p205, %s206, %s207
      %p211 = pneg %p205
      %p212 = scmp.eq.s32.totalorder %s24, 1
      %p213 = por %p211, %p212
      %p214 = scmp.ne.s32.totalorder %s206, %s209
      %p215 = scmp.eq.s32.totalorder %s24, 0
      %p216 = por %p214, %p215
      %p217 = scmp.ne.s32.totalorder %s206, %s209
      %p218 = scmp.eq.s32.totalorder %s29, 1
      %p219 = por %p217, %p218
      %p220 = scmp.ne.s32.totalorder %s209, %s210
      %p221 = scmp.eq.s32.totalorder %s29, 0
      %p222 = por %p220, %p221
      %p223 = scmp.ne.s32.totalorder %s209, %s210
      %p224 = scmp.eq.s32.totalorder %s30, 1
      %p225 = por %p223, %p224
      %p227 = scmp.ne.s32.totalorder %s210, %s226
      %p228 = scmp.eq.s32.totalorder %s30, 0
      %p229 = por %p227, %p228
      %s230 = ssub.s32 %s24, %s31
      %p231 = scmp.eq.s32.totalorder %s230, 0
      %s233 = sadd.s32 %s232, 1
      %s234 = scalar_select %p231, %s232, %s233
      %p237 = pneg %p231
      %p238 = scmp.eq.s32.totalorder %s24, 1
      %p239 = por %p237, %p238
      %p240 = scmp.ne.s32.totalorder %s232, %s235
      %p241 = scmp.eq.s32.totalorder %s24, 0
      %p242 = por %p240, %p241
      %p243 = scmp.ne.s32.totalorder %s232, %s235
      %p244 = scmp.eq.s32.totalorder %s29, 1
      %p245 = por %p243, %p244
      %p246 = scmp.ne.s32.totalorder %s235, %s236
      %p247 = scmp.eq.s32.totalorder %s29, 0
      %p248 = por %p246, %p247
      %p249 = scmp.ne.s32.totalorder %s235, %s236
      %p250 = scmp.eq.s32.totalorder %s30, 1
      %p251 = por %p249, %p250
      %p253 = scmp.ne.s32.totalorder %s236, %s252
      %p254 = scmp.eq.s32.totalorder %s30, 0
      %p255 = por %p253, %p254
      %s256 = ssub.s32 %s24, %s31
      %p257 = scmp.eq.s32.totalorder %s256, 0
      %s259 = sadd.s32 %s258, 1
      %s260 = scalar_select %p257, %s258, %s259
      %p263 = pneg %p257
      %p264 = scmp.eq.s32.totalorder %s24, 1
      %p265 = por %p263, %p264
      %p266 = scmp.ne.s32.totalorder %s258, %s261
      %p267 = scmp.eq.s32.totalorder %s24, 0
      %p268 = por %p266, %p267
      %p269 = scmp.ne.s32.totalorder %s258, %s261
      %p270 = scmp.eq.s32.totalorder %s29, 1
      %p271 = por %p269, %p270
      %p272 = scmp.ne.s32.totalorder %s261, %s262
      %p273 = scmp.eq.s32.totalorder %s29, 0
      %p274 = por %p272, %p273
      %p275 = scmp.ne.s32.totalorder %s261, %s262
      %p276 = scmp.eq.s32.totalorder %s30, 1
      %p277 = por %p275, %p276
      %p279 = scmp.ne.s32.totalorder %s262, %s278
      %p280 = scmp.eq.s32.totalorder %s30, 0
      %p281 = por %p279, %p280
      %s282 = ssub.s32 %s24, %s31
      %p283 = scmp.eq.s32.totalorder %s282, 0
      %s285 = sadd.s32 %s284, 1
      %s286 = scalar_select %p283, %s284, %s285
      %p289 = pneg %p283
      %p290 = scmp.eq.s32.totalorder %s24, 1
      %p291 = por %p289, %p290
      %p292 = scmp.ne.s32.totalorder %s284, %s287
      %p293 = scmp.eq.s32.totalorder %s24, 0
      %p294 = por %p292, %p293
      %p295 = scmp.ne.s32.totalorder %s284, %s287
      %p296 = scmp.eq.s32.totalorder %s29, 1
      %p297 = por %p295, %p296
      %p298 = scmp.ne.s32.totalorder %s287, %s288
      %p299 = scmp.eq.s32.totalorder %s29, 0
      %p300 = por %p298, %p299
      %p301 = scmp.ne.s32.totalorder %s287, %s288
      %p302 = scmp.eq.s32.totalorder %s30, 1
      %p303 = por %p301, %p302
      %p305 = scmp.ne.s32.totalorder %s288, %s304
      %p306 = scmp.eq.s32.totalorder %s30, 0
      %p307 = por %p305, %p306
      %s308 = ssub.s32 %s24, %s31
      %p309 = scmp.eq.s32.totalorder %s308, 0
      %s311 = sadd.s32 %s310, 1
      %s312 = scalar_select %p309, %s310, %s311
      %p315 = pneg %p309
      %p316 = scmp.eq.s32.totalorder %s24, 1
      %p317 = por %p315, %p316
      %p318 = scmp.ne.s32.totalorder %s310, %s313
      %p319 = scmp.eq.s32.totalorder %s24, 0
      %p320 = por %p318, %p319
      %p321 = scmp.ne.s32.totalorder %s310, %s313
      %p322 = scmp.eq.s32.totalorder %s29, 1
      %p323 = por %p321, %p322
      %p324 = scmp.ne.s32.totalorder %s313, %s314
      %p325 = scmp.eq.s32.totalorder %s29, 0
      %p326 = por %p324, %p325
      %p327 = scmp.ne.s32.totalorder %s313, %s314
      %p328 = scmp.eq.s32.totalorder %s30, 1
      %p329 = por %p327, %p328
      %p331 = scmp.ne.s32.totalorder %s314, %s330
      %p332 = scmp.eq.s32.totalorder %s30, 0
      %p333 = por %p331, %p332
      %s334 = ssub.s32 %s24, %s31
      %p335 = scmp.eq.s32.totalorder %s334, 0
      %s337 = sadd.s32 %s336, 1
      %s338 = scalar_select %p335, %s336, %s337
      %p341 = pneg %p335
      %p342 = scmp.eq.s32.totalorder %s24, 1
      %p343 = por %p341, %p342
      %p344 = scmp.ne.s32.totalorder %s336, %s339
      %p345 = scmp.eq.s32.totalorder %s24, 0
      %p346 = por %p344, %p345
      %p347 = scmp.ne.s32.totalorder %s336, %s339
      %p348 = scmp.eq.s32.totalorder %s29, 1
      %p349 = por %p347, %p348
      %p350 = scmp.ne.s32.totalorder %s339, %s340
      %p351 = scmp.eq.s32.totalorder %s29, 0
      %p352 = por %p350, %p351
      %p353 = scmp.ne.s32.totalorder %s339, %s340
      %p354 = scmp.eq.s32.totalorder %s30, 1
      %p355 = por %p353, %p354
      %p357 = scmp.ne.s32.totalorder %s340, %s356
      %p358 = scmp.eq.s32.totalorder %s30, 0
      %p359 = por %p357, %p358
      %s361 = sadd.s32 %s360, 1
      %p364 = scmp.eq.s32.totalorder %s24, 1
      %p365 = scmp.ne.s32.totalorder %s360, %s362
      %p366 = scmp.eq.s32.totalorder %s24, 0
      %p367 = por %p365, %p366
      %p368 = scmp.ne.s32.totalorder %s360, %s362
      %p369 = scmp.eq.s32.totalorder %s29, 1
      %p370 = por %p368, %p369
      %p371 = scmp.ne.s32.totalorder %s362, %s363
      %p372 = scmp.eq.s32.totalorder %s29, 0
      %p373 = por %p371, %p372
      %p374 = scmp.ne.s32.totalorder %s362, %s363
      %p375 = scmp.eq.s32.totalorder %s30, 1
      %p376 = por %p374, %p375
      %p378 = scmp.ne.s32.totalorder %s363, %s377
      %p379 = scmp.eq.s32.totalorder %s30, 0
      %p380 = por %p378, %p379
      %s382 = sadd.s32 %s381, 1
      %p385 = scmp.eq.s32.totalorder %s24, 1
      %p386 = scmp.ne.s32.totalorder %s381, %s383
      %p387 = scmp.eq.s32.totalorder %s24, 0
      %p388 = por %p386, %p387
      %p389 = scmp.ne.s32.totalorder %s381, %s383
      %p390 = scmp.eq.s32.totalorder %s29, 1
      %p391 = por %p389, %p390
      %p392 = scmp.ne.s32.totalorder %s383, %s384
      %p393 = scmp.eq.s32.totalorder %s29, 0
      %p394 = por %p392, %p393
      %p395 = scmp.ne.s32.totalorder %s383, %s384
      %p396 = scmp.eq.s32.totalorder %s30, 1
      %p397 = por %p395, %p396
      %p399 = scmp.ne.s32.totalorder %s384, %s398
      %p400 = scmp.eq.s32.totalorder %s30, 0
      %p401 = por %p399, %p400
      %p402 = scmp.le.s32.totalorder 1, %s24
      %p403 = scmp.lt.s32.totalorder %s24, 3
      %p404 = pnand %p402, %p403
      %p405 = pneg %p404
      // Predicated region
      $region9: #{_decoder_forward_jit.1} parent=5 // pred_check
        _
      $region10: #{_decoder_forward_jit.1} parent=5 // pred_check_branch
        %407 = sbr.rel (%p404) target = $region12
      $region11: #{_decoder_forward_jit.1} parent=5 // pred_region
        %s408 = ssub.s32 %s24, 1
        // Predicated region
        $region13: #{_decoder_forward_jit.1} parent=11 // pred_check
          %p409 = pneg %p45
        $region14: #{_decoder_forward_jit.1} parent=11 // pred_check_branch
          %411 = sbr.rel (%p409) target = $region16
        $region15: #{_decoder_forward_jit.1} parent=11 // pred_region
          _
        $region16: #{_decoder_forward_jit.1} parent=11 // pred_fallthru
          _
        // Predicated region
        $region17: #{_decoder_forward_jit.1} parent=11 // pred_check
          %p412 = pneg %p66
        $region18: #{_decoder_forward_jit.1} parent=11 // pred_check_branch
          %414 = sbr.rel (%p412) target = $region20
        $region19: #{_decoder_forward_jit.1} parent=11 // pred_region
          _
        $region20: #{_decoder_forward_jit.1} parent=11 // pred_fallthru
          _
        // Predicated region
        $region21: #{_decoder_forward_jit.1} parent=11 // pred_check
          %p415 = pneg %p373
        $region22: #{_decoder_forward_jit.1} parent=11 // pred_check_branch
          %417 = sbr.rel (%p415) target = $region24
        $region23: #{_decoder_forward_jit.1} parent=11 // pred_region
          _
        $region24: #{_decoder_forward_jit.1} parent=11 // pred_fallthru
          _
      $region12: #{_decoder_forward_jit.1} parent=5 // pred_fallthru
        _
      %p418 = scmp.lt.s32.totalorder %s24, 2
      // Predicated region
      $region25: #{_decoder_forward_jit.1} parent=5 // pred_check
        %p419 = pneg %p418
      $region26: #{_decoder_forward_jit.1} parent=5 // pred_check_branch
        %421 = sbr.rel (%p419) target = $region28
      $region27: #{_decoder_forward_jit.1} parent=5 // pred_region
        // Predicated region
        $region29: #{_decoder_forward_jit.1} parent=27 // pred_check
          %p422 = pneg %p86
        $region30: #{_decoder_forward_jit.1} parent=27 // pred_check_branch
          %424 = sbr.rel (%p422) target = $region32
        $region31: #{_decoder_forward_jit.1} parent=27 // pred_region
          %p425 = scmp.lt.s32.totalorder %s24, 1
          %s426 = scalar_select %p425, %s24, 1
          %s427 = smul.addr %s426, 4
          %s428 = smul.addr %s427, 4
          %s429 = scalar_lea.vmem %s2, %s428
        $region32: #{_decoder_forward_jit.1} parent=27 // pred_fallthru
          _
        // Predicated region
        $region33: #{_decoder_forward_jit.1} parent=27 // pred_check
          %p430 = pneg %p112
        $region34: #{_decoder_forward_jit.1} parent=27 // pred_check_branch
          %432 = sbr.rel (%p430) target = $region36
        $region35: #{_decoder_forward_jit.1} parent=27 // pred_region
          %p433 = scmp.lt.s32.totalorder %s24, 1
          %s434 = scalar_select %p433, %s24, 1
          %s435 = scalar_lea.vmem %s3, %s434
        $region36: #{_decoder_forward_jit.1} parent=27 // pred_fallthru
          _
        // Predicated region
        $region37: #{_decoder_forward_jit.1} parent=27 // pred_check
          %p436 = pneg %p138
        $region38: #{_decoder_forward_jit.1} parent=27 // pred_check_branch
          %438 = sbr.rel (%p436) target = $region40
        $region39: #{_decoder_forward_jit.1} parent=27 // pred_region
          %p439 = scmp.lt.s32.totalorder %s24, 1
          %s440 = scalar_select %p439, %s24, 1
          %s441 = smul.addr %s440, 4
          %s442 = smul.addr %s441, 4
          %s443 = scalar_lea.vmem %s4, %s442
        $region40: #{_decoder_forward_jit.1} parent=27 // pred_fallthru
          _
        // Predicated region
        $region41: #{_decoder_forward_jit.1} parent=27 // pred_check
          %p444 = pneg %p164
        $region42: #{_decoder_forward_jit.1} parent=27 // pred_check_branch
          %446 = sbr.rel (%p444) target = $region44
        $region43: #{_decoder_forward_jit.1} parent=27 // pred_region
          %p447 = scmp.lt.s32.totalorder %s24, 1
          %s448 = scalar_select %p447, %s24, 1
          %s449 = smul.addr %s448, 4
          %s450 = smul.addr %s449, 4
          %s451 = scalar_lea.vmem %s5, %s450
        $region44: #{_decoder_forward_jit.1} parent=27 // pred_fallthru
          _
        // Predicated region
        $region45: #{_decoder_forward_jit.1} parent=27 // pred_check
          %p452 = pneg %p190
        $region46: #{_decoder_forward_jit.1} parent=27 // pred_check_branch
          %454 = sbr.rel (%p452) target = $region48
        $region47: #{_decoder_forward_jit.1} parent=27 // pred_region
          %p455 = scmp.lt.s32.totalorder %s24, 1
          %s456 = scalar_select %p455, %s24, 1
          %s457 = smul.addr %s456, 4
          %s458 = smul.addr %s457, 4
          %s459 = scalar_lea.vmem %s6, %s458
        $region48: #{_decoder_forward_jit.1} parent=27 // pred_fallthru
          _
        // Predicated region
        $region49: #{_decoder_forward_jit.1} parent=27 // pred_check
          %p460 = pneg %p216
        $region50: #{_decoder_forward_jit.1} parent=27 // pred_check_branch
          %462 = sbr.rel (%p460) target = $region52
        $region51: #{_decoder_forward_jit.1} parent=27 // pred_region
          %p463 = scmp.lt.s32.totalorder %s24, 1
          %s464 = scalar_select %p463, %s24, 1
          %s465 = scalar_lea.vmem %s7, %s464
        $region52: #{_decoder_forward_jit.1} parent=27 // pred_fallthru
          _
        // Predicated region
        $region53: #{_decoder_forward_jit.1} parent=27 // pred_check
          %p466 = pneg %p242
        $region54: #{_decoder_forward_jit.1} parent=27 // pred_check_branch
          %468 = sbr.rel (%p466) target = $region56
        $region55: #{_decoder_forward_jit.1} parent=27 // pred_region
          %p469 = scmp.lt.s32.totalorder %s24, 1
          %s470 = scalar_select %p469, %s24, 1
          %s471 = smul.addr %s470, 4
          %s472 = smul.addr %s471, 4
          %s473 = scalar_lea.vmem %s8, %s472
        $region56: #{_decoder_forward_jit.1} parent=27 // pred_fallthru
          _
        // Predicated region
        $region57: #{_decoder_forward_jit.1} parent=27 // pred_check
          %p474 = pneg %p268
        $region58: #{_decoder_forward_jit.1} parent=27 // pred_check_branch
          %476 = sbr.rel (%p474) target = $region60
        $region59: #{_decoder_forward_jit.1} parent=27 // pred_region
          %s477 = sand.u32 %s258, 1
          %s478 = scalar_lea.sflag [#allocation4], %s477
          %s479 = sand.u32 %s258, 1
          %s480 = smul.addr %s479, 16
          %s481 = scalar_lea.vmem [#allocation3], %s480
          %483 = vsyncadd %s478, 0
          %s484 = smul.addr %s24, 4
          %s485 = smul.addr %s484, 4
          %s486 = scalar_lea.hbm %s9, %s485
          %s487 = sshll.u32 %s486, 4
          %s488 = int_to_ptr.hbm [resolvable:$true] %s487
          %s489 = sshll.u32 %s481, 4
          %s490 = int_to_ptr.vmem [resolvable:$true] %s489
          %495 = dma.hbm_to_vmem [thread:$0]  %s488, 256, %s490, %s478, 64, 64, 4
        $region60: #{_decoder_forward_jit.1} parent=27 // pred_fallthru
          _
        // Predicated region
        $region61: #{_decoder_forward_jit.1} parent=27 // pred_check
          %p496 = pneg %p294
        $region62: #{_decoder_forward_jit.1} parent=27 // pred_check_branch
          %498 = sbr.rel (%p496) target = $region64
        $region63: #{_decoder_forward_jit.1} parent=27 // pred_region
          %p499 = scmp.lt.s32.totalorder %s24, 1
          %s500 = scalar_select %p499, %s24, 1
          %s501 = scalar_lea.vmem %s10, %s500
        $region64: #{_decoder_forward_jit.1} parent=27 // pred_fallthru
          _
        // Predicated region
        $region65: #{_decoder_forward_jit.1} parent=27 // pred_check
          %p502 = pneg %p320
        $region66: #{_decoder_forward_jit.1} parent=27 // pred_check_branch
          %504 = sbr.rel (%p502) target = $region68
        $region67: #{_decoder_forward_jit.1} parent=27 // pred_region
          %p505 = scmp.lt.s32.totalorder %s24, 1
          %s506 = scalar_select %p505, %s24, 1
          %s507 = smul.addr %s506, 8
          %s508 = smul.addr %s507, 4
          %s509 = scalar_lea.vmem %s11, %s508
        $region68: #{_decoder_forward_jit.1} parent=27 // pred_fallthru
          _
        // Predicated region
        $region69: #{_decoder_forward_jit.1} parent=27 // pred_check
          %p510 = pneg %p346
        $region70: #{_decoder_forward_jit.1} parent=27 // pred_check_branch
          %512 = sbr.rel (%p510) target = $region72
        $region71: #{_decoder_forward_jit.1} parent=27 // pred_region
          %p513 = scmp.lt.s32.totalorder %s24, 1
          %s514 = scalar_select %p513, %s24, 1
          %s515 = smul.addr %s514, 2
          %s516 = smul.addr %s515, 8
          %s517 = scalar_lea.vmem %s12, %s516
        $region72: #{_decoder_forward_jit.1} parent=27 // pred_fallthru
          _
      $region28: #{_decoder_forward_jit.1} parent=5 // pred_fallthru
        _
      %p518 = scmp.le.s32.totalorder 1, %s24
      %p519 = scmp.lt.s32.totalorder %s24, 3
      %p520 = pnand %p518, %p519
      %p521 = pneg %p520
      // Predicated region
      $region73: #{_decoder_forward_jit.1} parent=5 // pred_check
        _
      $region74: #{_decoder_forward_jit.1} parent=5 // pred_check_branch
        %523 = sbr.rel (%p520) target = $region76
      $region75: #{_decoder_forward_jit.1} parent=5 // pred_region
        %s524 = ssub.s32 %s24, 1
        %s525 = sand.u32 %s261, 1
        %s526 = scalar_lea.sflag [#allocation4], %s525
        %s527 = sand.u32 %s261, 1
        %s528 = smul.addr %s527, 16
        %s529 = scalar_lea.vmem [#allocation3], %s528
        // Predicated region
        $region77: #{_decoder_forward_jit.1} parent=75 // pred_check
          %p530 = pneg %p274
        $region78: #{_decoder_forward_jit.1} parent=75 // pred_check_branch
          %532 = sbr.rel (%p530) target = $region80
        $region79: #{_decoder_forward_jit.1} parent=75 // pred_region
          %534 = dma.done %s526, 256
        $region80: #{_decoder_forward_jit.1} parent=75 // pred_fallthru
          _
        %p535 = pneg %p45
        %p536 = pneg %p42
        %p537 = pneg %p66
        %p538 = pneg %p63
        %p539 = scmp.lt.s32.totalorder %s29, 1
        %s540 = scalar_select %p539, %s29, 1
        %s541 = smul.addr %s540, 4
        %s542 = smul.addr %s541, 4
        %s543 = scalar_lea.vmem %s2, %s542
        %p544 = pneg %p92
        %p545 = pneg %p89
        %p546 = scmp.lt.s32.totalorder %s29, 1
        %s547 = scalar_select %p546, %s29, 1
        %s548 = scalar_lea.vmem %s3, %s547
        %p549 = pneg %p118
        %p550 = pneg %p115
        %p551 = scmp.lt.s32.totalorder %s29, 1
        %s552 = scalar_select %p551, %s29, 1
        %s553 = smul.addr %s552, 4
        %s554 = smul.addr %s553, 4
        %s555 = scalar_lea.vmem %s4, %s554
        %p556 = pneg %p144
        %p557 = pneg %p141
        %p558 = scmp.lt.s32.totalorder %s29, 1
        %s559 = scalar_select %p558, %s29, 1
        %s560 = smul.addr %s559, 4
        %s561 = smul.addr %s560, 4
        %s562 = scalar_lea.vmem %s5, %s561
        %p563 = pneg %p170
        %p564 = pneg %p167
        %p565 = scmp.lt.s32.totalorder %s29, 1
        %s566 = scalar_select %p565, %s29, 1
        %s567 = smul.addr %s566, 4
        %s568 = smul.addr %s567, 4
        %s569 = scalar_lea.vmem %s6, %s568
        %p570 = pneg %p196
        %p571 = pneg %p193
        %p572 = scmp.lt.s32.totalorder %s29, 1
        %s573 = scalar_select %p572, %s29, 1
        %s574 = scalar_lea.vmem %s7, %s573
        %p575 = pneg %p222
        %p576 = pneg %p219
        %p577 = scmp.lt.s32.totalorder %s29, 1
        %s578 = scalar_select %p577, %s29, 1
        %s579 = smul.addr %s578, 4
        %s580 = smul.addr %s579, 4
        %s581 = scalar_lea.vmem %s8, %s580
        %p582 = pneg %p248
        %p583 = pneg %p245
        %s584 = sand.u32 %s261, 1
        %s585 = scalar_lea.sflag [#allocation4], %s584
        %s586 = sand.u32 %s261, 1
        %s587 = smul.addr %s586, 16
        %s588 = scalar_lea.vmem [#allocation3], %s587
        %p589 = pneg %p274
        %p590 = pneg %p271
        %p591 = scmp.lt.s32.totalorder %s29, 1
        %s592 = scalar_select %p591, %s29, 1
        %s593 = scalar_lea.vmem %s10, %s592
        %p594 = pneg %p300
        %p595 = pneg %p297
        %p596 = scmp.lt.s32.totalorder %s29, 1
        %s597 = scalar_select %p596, %s29, 1
        %s598 = smul.addr %s597, 8
        %s599 = smul.addr %s598, 4
        %s600 = scalar_lea.vmem %s11, %s599
        %p601 = pneg %p326
        %p602 = pneg %p323
        %p603 = scmp.lt.s32.totalorder %s29, 1
        %s604 = scalar_select %p603, %s29, 1
        %s605 = smul.addr %s604, 2
        %s606 = smul.addr %s605, 8
        %s607 = scalar_lea.vmem %s12, %s606
        %p608 = pneg %p352
        %p609 = pneg %p349
        %p610 = pneg %p373
        %p611 = pneg %p370
        %p612 = pneg %p394
        %p613 = pneg %p391
        %p614 = scmp.lt.s32.totalorder %s29, 1
        %s615 = scalar_select %p614, %s29, 1
        %s616 = smul.addr %s615, 4
        %s617 = smul.addr %s616, 4
        %s618 = scalar_lea.vmem %s2, %s617
        %p619 = scmp.lt.s32.totalorder %s29, 1
        %s620 = scalar_select %p619, %s29, 1
        %s621 = scalar_lea.vmem %s3, %s620
        %p622 = scmp.lt.s32.totalorder %s29, 1
        %s623 = scalar_select %p622, %s29, 1
        %s624 = smul.addr %s623, 4
        %s625 = smul.addr %s624, 4
        %s626 = scalar_lea.vmem %s4, %s625
        %p627 = scmp.lt.s32.totalorder %s29, 1
        %s628 = scalar_select %p627, %s29, 1
        %s629 = smul.addr %s628, 4
        %s630 = smul.addr %s629, 4
        %s631 = scalar_lea.vmem %s5, %s630
        %p632 = scmp.lt.s32.totalorder %s29, 1
        %s633 = scalar_select %p632, %s29, 1
        %s634 = smul.addr %s633, 4
        %s635 = smul.addr %s634, 4
        %s636 = scalar_lea.vmem %s6, %s635
        %p637 = scmp.lt.s32.totalorder %s29, 1
        %s638 = scalar_select %p637, %s29, 1
        %s639 = scalar_lea.vmem %s7, %s638
        %p640 = scmp.lt.s32.totalorder %s29, 1
        %s641 = scalar_select %p640, %s29, 1
        %s642 = smul.addr %s641, 4
        %s643 = smul.addr %s642, 4
        %s644 = scalar_lea.vmem %s8, %s643
        %p645 = scmp.lt.s32.totalorder %s29, 1
        %s646 = scalar_select %p645, %s29, 1
        %s647 = scalar_lea.vmem %s10, %s646
        %p648 = scmp.lt.s32.totalorder %s29, 1
        %s649 = scalar_select %p648, %s29, 1
        %s650 = smul.addr %s649, 8
        %s651 = smul.addr %s650, 4
        %s652 = scalar_lea.vmem %s11, %s651
        %p653 = scmp.lt.s32.totalorder %s29, 1
        %s654 = scalar_select %p653, %s29, 1
        %s655 = smul.addr %s654, 2
        %s656 = smul.addr %s655, 8
        %s657 = scalar_lea.vmem %s12, %s656
        %p659 = scmp.eq.s32.totalorder %s29, 0
        // Predicated region
        $region81: #{_decoder_forward_jit.1} parent=75 // pred_check
          %p660 = pneg %p659
        $region82: #{_decoder_forward_jit.1} parent=75 // pred_check_branch
          %662 = sbr.rel (%p660) target = $region84
        $region83: #{_decoder_forward_jit.1} parent=75 // pred_region
          %v663 = vld [vmem:[%s0] sm:$0xff]
          %v664 = vld [vmem:[%s0 + $0x8] sm:$0xff]
          %vm665 = vcmask 261120
          %666 = vst.msk [vmem:[#allocation2] sm:$0xff] %vm665, %v663
          %667 = vst.msk [vmem:[#allocation2 + $0x8] sm:$0xff] %vm665, %v664
        $region84: #{_decoder_forward_jit.1} parent=75 // pred_fallthru
          _
        %v668 = vld [vmem:[#allocation2] sm:$0xff]
        %v669 = vld [vmem:[#allocation2 + $0x8] sm:$0xff]
        %v670 = vld [vmem:[%s1] sm:$0xf]
        %v671 = vld [vmem:[%s1 + $0x4] sm:$0xf]
        %v672 = vld [vmem:[%s1 + $0x8] sm:$0xf]
        %v673 = vld [vmem:[%s657] sm:$0xff]
        %v674 = vld [vmem:[%s657 + $0x8] sm:$0x3]
        %v675 = vpack.c.bf16 %v669, %v668
        %v676 = vld [vmem:[%s618] sm:$0xf]
        %v677 = vld [vmem:[%s618 + $0x4] sm:$0xf]
        %v678 = vld [vmem:[%s618 + $0x8] sm:$0xf]
        %v679 = vld [vmem:[%s618 + $0xc] sm:$0xf]
        %v680 = vld [vmem:[%s621] sm:$0x1]
        %v682 = vperm.slane %v680, 0
        %v688 = vunpack.c.l.b16 %v676
        %v689 = vunpack.c.l.b16 %v677
        %v690 = vunpack.c.l.b16 %v678
        %v691 = vunpack.c.l.b16 %v679
        %v692 = vpack.c.b16 %v689, %v688
        %v693 = vpack.c.b16 %v691, %v690
        %vm696 = vcmask 261120
        %v698 = vsel %vm696, %v675, 0
        %700 = vmatpush.bf16.msra.mxu0 0
        %701 = vmatpush.bf16.msra.mxu0 0
        %702 = vmatpush.bf16.msra.mxu0 0
        %703 = vmatpush.bf16.msra.mxu0 0
        %704 = vmatpush.bf16.msra.mxu0 0
        %705 = vmatpush.bf16.msra.mxu0 0
        %706 = vmatpush.bf16.msra.mxu0 %v693
        %707 = vmatpush.bf16.msra.mxu0 %v692
        %708 = vmatmul.bf16.gmra.mxu0 %v698
        %v709 = vpop.f32.mrf.mxu0
        %v710 = vadd.f32 %v682, %v709
        %v711 = vpop.f32.mrf.mxu0
        %v712 = vadd.f32 %v682, %v711
        %713 = vdwg.mxu0
        %v714 = vld [vmem:[%s626] sm:$0xf]
        %v715 = vld [vmem:[%s626 + $0x4] sm:$0xf]
        %v716 = vld [vmem:[%s626 + $0x8] sm:$0xf]
        %v717 = vld [vmem:[%s626 + $0xc] sm:$0xf]
        %v718 = vlaneseq
        %v719 = vshrl.u32 %v718, 7
        %v720 = vlaneseq
        %v721 = vand.u32 %v720, 127
        %vm722 = vcmp.le.s32.totalorder %v721, %v719
        %724 = vrot.lane.b32.xlu0 %v710, 120
        %v725 = vpop.permute.xlu0 %724
        %727 = vrot.lane.b32.xlu0 %v710, 112
        %v728 = vpop.permute.xlu0 %727
        %730 = vrot.lane.b32.xlu0 %v710, 104
        %v731 = vpop.permute.xlu0 %730
        %v733 = vrot.slane %v728, 4
        %vm734 = vcmask 1047556
        %v735 = vsel %vm734, %v733, %v710
        %v736 = vrot.slane %v710, 4
        %v737 = vsel %vm734, %v728, %v736
        %v739 = vunpack.c.l.s4 1983009808
        %v740 = vunpack.c.0.s8 %v739
        %v741 = vperm.slane %v735, %v740
        %v743 = vunpack.c.l.s4 1983009808
        %v744 = vunpack.c.0.s8 %v743
        %v745 = vperm.slane %v737, %v744
        %v746 = vrot.slane %v731, 4
        %v747 = vsel %vm734, %v746, %v725
        %v748 = vrot.slane %v725, 4
        %v749 = vsel %vm734, %v731, %v748
        %v751 = vunpack.c.l.s4 1983009808
        %v752 = vunpack.c.0.s8 %v751
        %v753 = vperm.slane %v747, %v752
        %v755 = vunpack.c.l.s4 1983009808
        %v756 = vunpack.c.0.s8 %v755
        %v757 = vperm.slane %v749, %v756
        %v758 = vrot.slane %v753, 4
        %v759 = vsel %vm734, %v758, %v741
        %v760 = vrot.slane %v741, 4
        %v761 = vsel %vm734, %v753, %v760
        %v763 = vunpack.c.l.s4 1934713408
        %v764 = vunpack.c.0.s8 %v763
        %v765 = vperm.slane %v759, %v764
        %v767 = vunpack.c.l.s4 1934713408
        %v768 = vunpack.c.0.s8 %v767
        %v769 = vperm.slane %v761, %v768
        %v770 = vrot.slane %v757, 4
        %v771 = vsel %vm734, %v770, %v745
        %v772 = vrot.slane %v745, 4
        %v773 = vsel %vm734, %v757, %v772
        %v775 = vunpack.c.l.s4 1934713408
        %v776 = vunpack.c.0.s8 %v775
        %v777 = vperm.slane %v771, %v776
        %v779 = vunpack.c.l.s4 1934713408
        %v780 = vunpack.c.0.s8 %v779
        %v781 = vperm.slane %v773, %v780
        %v782 = vrot.slane %v765, 4
        %v783 = vsel %vm734, 0.0, %v782
        %v784 = vrot.slane %v769, 4
        %v785 = vsel %vm734, 0.0, %v784
        %v786 = vrot.slane %v777, 4
        %v787 = vsel %vm734, 0.0, %v786
        %v788 = vrot.slane %v781, 4
        %v789 = vsel %vm734, 0.0, %v788
        %v790 = vsel %vm734, %v784, %v765
        %v792 = vunpack.c.l.s4 1983009808
        %v793 = vunpack.c.0.s8 %v792
        %v794 = vperm.slane %v790, %v793
        %v795 = vrot.slane %v785, 4
        %v796 = vsel %vm734, %v795, %v783
        %v798 = vunpack.c.l.s4 1983009808
        %v799 = vunpack.c.0.s8 %v798
        %v800 = vperm.slane %v796, %v799
        %v801 = vsel %vm734, %v788, %v777
        %v803 = vunpack.c.l.s4 1983009808
        %v804 = vunpack.c.0.s8 %v803
        %v805 = vperm.slane %v801, %v804
        %v806 = vrot.slane %v789, 4
        %v807 = vsel %vm734, %v806, %v787
        %v809 = vunpack.c.l.s4 1983009808
        %v810 = vunpack.c.0.s8 %v809
        %v811 = vperm.slane %v807, %v810
        %v812 = vrot.slane %v800, 4
        %v813 = vsel %vm734, %v812, %v794
        %v814 = vrot.slane %v794, 4
        %v815 = vsel %vm734, %v800, %v814
        %v817 = vunpack.c.l.s4 1934713408
        %v818 = vunpack.c.0.s8 %v817
        %v819 = vperm.slane %v813, %v818
        %v821 = vunpack.c.l.s4 1934713408
        %v822 = vunpack.c.0.s8 %v821
        %v823 = vperm.slane %v815, %v822
        %v824 = vrot.slane %v811, 4
        %v825 = vsel %vm734, %v824, %v805
        %v826 = vrot.slane %v805, 4
        %v827 = vsel %vm734, %v811, %v826
        %v829 = vunpack.c.l.s4 1934713408
        %v830 = vunpack.c.0.s8 %v829
        %v831 = vperm.slane %v825, %v830
        %v833 = vunpack.c.l.s4 1934713408
        %v834 = vunpack.c.0.s8 %v833
        %v835 = vperm.slane %v827, %v834
        %v836 = vrot.slane %v831, 4
        %v837 = vsel %vm734, %v836, %v819
        %v838 = vrot.slane %v819, 4
        %v839 = vsel %vm734, %v831, %v838
        %v840 = vrot.slane %v835, 4
        %v841 = vsel %vm734, %v840, %v823
        %v842 = vrot.slane %v823, 4
        %v843 = vsel %vm734, %v835, %v842
        %844 = vrot.lane.b32.xlu0 %v710, 96
        %v845 = vpop.permute.xlu0 %844
        %846 = vrot.lane.b32.xlu0 %v725, 96
        %v847 = vpop.permute.xlu0 %846
        %848 = vrot.lane.b32.xlu0 %v728, 96
        %v849 = vpop.permute.xlu0 %848
        %850 = vrot.lane.b32.xlu0 %v731, 96
        %v851 = vpop.permute.xlu0 %850
        %v856 = vrot.slane %v849, 4
        %v857 = vsel %vm734, %v856, %v845
        %v858 = vrot.slane %v845, 4
        %v859 = vsel %vm734, %v849, %v858
        %v861 = vunpack.c.l.s4 1983009808
        %v862 = vunpack.c.0.s8 %v861
        %v863 = vperm.slane %v857, %v862
        %v865 = vunpack.c.l.s4 1983009808
        %v866 = vunpack.c.0.s8 %v865
        %v867 = vperm.slane %v859, %v866
        %v868 = vrot.slane %v851, 4
        %v869 = vsel %vm734, %v868, %v847
        %v870 = vrot.slane %v847, 4
        %v871 = vsel %vm734, %v851, %v870
        %v873 = vunpack.c.l.s4 1983009808
        %v874 = vunpack.c.0.s8 %v873
        %v875 = vperm.slane %v869, %v874
        %v877 = vunpack.c.l.s4 1983009808
        %v878 = vunpack.c.0.s8 %v877
        %v879 = vperm.slane %v871, %v878
        %v880 = vrot.slane %v875, 4
        %v881 = vsel %vm734, %v880, %v863
        %v882 = vrot.slane %v863, 4
        %v883 = vsel %vm734, %v875, %v882
        %v885 = vunpack.c.l.s4 1934713408
        %v886 = vunpack.c.0.s8 %v885
        %v887 = vperm.slane %v881, %v886
        %v889 = vunpack.c.l.s4 1934713408
        %v890 = vunpack.c.0.s8 %v889
        %v891 = vperm.slane %v883, %v890
        %v892 = vrot.slane %v879, 4
        %v893 = vsel %vm734, %v892, %v867
        %v894 = vrot.slane %v867, 4
        %v895 = vsel %vm734, %v879, %v894
        %v897 = vunpack.c.l.s4 1934713408
        %v898 = vunpack.c.0.s8 %v897
        %v899 = vperm.slane %v893, %v898
        %v901 = vunpack.c.l.s4 1934713408
        %v902 = vunpack.c.0.s8 %v901
        %v903 = vperm.slane %v895, %v902
        %v904 = vrot.slane %v887, 4
        %v905 = vsel %vm734, 0.0, %v904
        %v906 = vrot.slane %v891, 4
        %v907 = vsel %vm734, 0.0, %v906
        %v908 = vrot.slane %v899, 4
        %v909 = vsel %vm734, 0.0, %v908
        %v910 = vrot.slane %v903, 4
        %v911 = vsel %vm734, 0.0, %v910
        %v912 = vsel %vm734, %v906, %v887
        %v914 = vunpack.c.l.s4 1983009808
        %v915 = vunpack.c.0.s8 %v914
        %v916 = vperm.slane %v912, %v915
        %v917 = vrot.slane %v907, 4
        %v918 = vsel %vm734, %v917, %v905
        %v920 = vunpack.c.l.s4 1983009808
        %v921 = vunpack.c.0.s8 %v920
        %v922 = vperm.slane %v918, %v921
        %v923 = vsel %vm734, %v910, %v899
        %v925 = vunpack.c.l.s4 1983009808
        %v926 = vunpack.c.0.s8 %v925
        %v927 = vperm.slane %v923, %v926
        %v928 = vrot.slane %v911, 4
        %v929 = vsel %vm734, %v928, %v909
        %v931 = vunpack.c.l.s4 1983009808
        %v932 = vunpack.c.0.s8 %v931
        %v933 = vperm.slane %v929, %v932
        %v934 = vrot.slane %v922, 4
        %v935 = vsel %vm734, %v934, %v916
        %v936 = vrot.slane %v916, 4
        %v937 = vsel %vm734, %v922, %v936
        %v939 = vunpack.c.l.s4 1934713408
        %v940 = vunpack.c.0.s8 %v939
        %v941 = vperm.slane %v935, %v940
        %v943 = vunpack.c.l.s4 1934713408
        %v944 = vunpack.c.0.s8 %v943
        %v945 = vperm.slane %v937, %v944
        %v946 = vrot.slane %v933, 4
        %v947 = vsel %vm734, %v946, %v927
        %v948 = vrot.slane %v927, 4
        %v949 = vsel %vm734, %v933, %v948
        %v951 = vunpack.c.l.s4 1934713408
        %v952 = vunpack.c.0.s8 %v951
        %v953 = vperm.slane %v947, %v952
        %v955 = vunpack.c.l.s4 1934713408
        %v956 = vunpack.c.0.s8 %v955
        %v957 = vperm.slane %v949, %v956
        %v958 = vrot.slane %v953, 4
        %v959 = vsel %vm734, %v958, %v941
        %v960 = vrot.slane %v941, 4
        %v961 = vsel %vm734, %v953, %v960
        %v962 = vrot.slane %v957, 4
        %v963 = vsel %vm734, %v962, %v945
        %v964 = vrot.slane %v945, 4
        %v965 = vsel %vm734, %v957, %v964
        %966 = vrot.lane.b32.xlu0 %v710, 64
        %v967 = vpop.permute.xlu0 %966
        %968 = vrot.lane.b32.xlu0 %v725, 64
        %v969 = vpop.permute.xlu0 %968
        %970 = vrot.lane.b32.xlu0 %v728, 64
        %v971 = vpop.permute.xlu0 %970
        %972 = vrot.lane.b32.xlu0 %v731, 64
        %v973 = vpop.permute.xlu0 %972
        %v978 = vrot.slane %v971, 4
        %v979 = vsel %vm734, %v978, %v967
        %v980 = vrot.slane %v967, 4
        %v981 = vsel %vm734, %v971, %v980
        %v983 = vunpack.c.l.s4 1983009808
        %v984 = vunpack.c.0.s8 %v983
        %v985 = vperm.slane %v979, %v984
        %v987 = vunpack.c.l.s4 1983009808
        %v988 = vunpack.c.0.s8 %v987
        %v989 = vperm.slane %v981, %v988
        %v990 = vrot.slane %v973, 4
        %v991 = vsel %vm734, %v990, %v969
        %v992 = vrot.slane %v969, 4
        %v993 = vsel %vm734, %v973, %v992
        %v995 = vunpack.c.l.s4 1983009808
        %v996 = vunpack.c.0.s8 %v995
        %v997 = vperm.slane %v991, %v996
        %v999 = vunpack.c.l.s4 1983009808
        %v1000 = vunpack.c.0.s8 %v999
        %v1001 = vperm.slane %v993, %v1000
        %v1002 = vrot.slane %v997, 4
        %v1003 = vsel %vm734, %v1002, %v985
        %v1004 = vrot.slane %v985, 4
        %v1005 = vsel %vm734, %v997, %v1004
        %v1007 = vunpack.c.l.s4 1934713408
        %v1008 = vunpack.c.0.s8 %v1007
        %v1009 = vperm.slane %v1003, %v1008
        %v1011 = vunpack.c.l.s4 1934713408
        %v1012 = vunpack.c.0.s8 %v1011
        %v1013 = vperm.slane %v1005, %v1012
        %v1014 = vrot.slane %v1001, 4
        %v1015 = vsel %vm734, %v1014, %v989
        %v1016 = vrot.slane %v989, 4
        %v1017 = vsel %vm734, %v1001, %v1016
        %v1019 = vunpack.c.l.s4 1934713408
        %v1020 = vunpack.c.0.s8 %v1019
        %v1021 = vperm.slane %v1015, %v1020
        %v1023 = vunpack.c.l.s4 1934713408
        %v1024 = vunpack.c.0.s8 %v1023
        %v1025 = vperm.slane %v1017, %v1024
        %v1026 = vrot.slane %v1009, 4
        %v1027 = vsel %vm734, 0.0, %v1026
        %v1028 = vrot.slane %v1013, 4
        %v1029 = vsel %vm734, 0.0, %v1028
        %v1030 = vrot.slane %v1021, 4
        %v1031 = vsel %vm734, 0.0, %v1030
        %v1032 = vrot.slane %v1025, 4
        %v1033 = vsel %vm734, 0.0, %v1032
        %v1034 = vsel %vm734, %v1028, %v1009
        %v1036 = vunpack.c.l.s4 1983009808
        %v1037 = vunpack.c.0.s8 %v1036
        %v1038 = vperm.slane %v1034, %v1037
        %v1039 = vrot.slane %v1029, 4
        %v1040 = vsel %vm734, %v1039, %v1027
        %v1042 = vunpack.c.l.s4 1983009808
        %v1043 = vunpack.c.0.s8 %v1042
        %v1044 = vperm.slane %v1040, %v1043
        %v1045 = vsel %vm734, %v1032, %v1021
        %v1047 = vunpack.c.l.s4 1983009808
        %v1048 = vunpack.c.0.s8 %v1047
        %v1049 = vperm.slane %v1045, %v1048
        %v1050 = vrot.slane %v1033, 4
        %v1051 = vsel %vm734, %v1050, %v1031
        %v1053 = vunpack.c.l.s4 1983009808
        %v1054 = vunpack.c.0.s8 %v1053
        %v1055 = vperm.slane %v1051, %v1054
        %v1056 = vrot.slane %v1044, 4
        %v1057 = vsel %vm734, %v1056, %v1038
        %v1058 = vrot.slane %v1038, 4
        %v1059 = vsel %vm734, %v1044, %v1058
        %v1061 = vunpack.c.l.s4 1934713408
        %v1062 = vunpack.c.0.s8 %v1061
        %v1063 = vperm.slane %v1057, %v1062
        %v1065 = vunpack.c.l.s4 1934713408
        %v1066 = vunpack.c.0.s8 %v1065
        %v1067 = vperm.slane %v1059, %v1066
        %v1068 = vrot.slane %v1055, 4
        %v1069 = vsel %vm734, %v1068, %v1049
        %v1070 = vrot.slane %v1049, 4
        %v1071 = vsel %vm734, %v1055, %v1070
        %v1073 = vunpack.c.l.s4 1934713408
        %v1074 = vunpack.c.0.s8 %v1073
        %v1075 = vperm.slane %v1069, %v1074
        %v1077 = vunpack.c.l.s4 1934713408
        %v1078 = vunpack.c.0.s8 %v1077
        %v1079 = vperm.slane %v1071, %v1078
        %v1080 = vrot.slane %v1075, 4
        %v1081 = vsel %vm734, %v1080, %v1063
        %v1082 = vrot.slane %v1063, 4
        %v1083 = vsel %vm734, %v1075, %v1082
        %v1084 = vrot.slane %v1079, 4
        %v1085 = vsel %vm734, %v1084, %v1067
        %v1086 = vrot.slane %v1067, 4
        %v1087 = vsel %vm734, %v1079, %v1086
        %v1088 = vpack.c.bf16 %v837, %v837
        %v1089 = vpack.c.bf16 %v839, %v839
        %v1090 = vpack.c.bf16 %v841, %v841
        %v1091 = vpack.c.bf16 %v843, %v843
        %v1092 = vpack.c.bf16 %v959, %v959
        %v1093 = vpack.c.bf16 %v961, %v961
        %v1094 = vpack.c.bf16 %v963, %v963
        %v1095 = vpack.c.bf16 %v965, %v965
        %vm1096 = vcmask 64512
        %v1098 = vsel %vm1096, %v1088, 0
        %v1101 = vsel %vm1096, %v1092, 0
        %1103 = vmatpush.bf16.xpose.msra.mxu0 0
        %1104 = vmatpush.bf16.xpose.msra.mxu0 0
        %1105 = vmatpush.bf16.xpose.msra.mxu0 0
        %1106 = vmatpush.bf16.xpose.msra.mxu0 0
        %1107 = vmatpush.bf16.xpose.msra.mxu0 0
        %1108 = vmatpush.bf16.xpose.msra.mxu0 0
        %1109 = vmatpush.bf16.xpose.msra.mxu0 0
        %1110 = vmatpush.bf16.xpose.msra.mxu0 %v1101
        %1111 = vmatmul.bf16.gmra.mxu0 %v1098
        %v1112 = vpop.f32.mrf.mxu0
        %v1113 = vadd.f32 0.0, %v1112
        %v1114 = vpop.f32.mrf.mxu0
        %1115 = vdwg.mxu0
        %v1117 = vsel %vm1096, %v1089, 0
        %v1120 = vsel %vm1096, %v1093, 0
        %1122 = vmatpush.bf16.xpose.msra.mxu0 0
        %1123 = vmatpush.bf16.xpose.msra.mxu0 0
        %1124 = vmatpush.bf16.xpose.msra.mxu0 0
        %1125 = vmatpush.bf16.xpose.msra.mxu0 0
        %1126 = vmatpush.bf16.xpose.msra.mxu0 0
        %1127 = vmatpush.bf16.xpose.msra.mxu0 0
        %1128 = vmatpush.bf16.xpose.msra.mxu0 0
        %1129 = vmatpush.bf16.xpose.msra.mxu0 %v1120
        %1130 = vmatmul.bf16.gmra.mxu0 %v1117
        %v1131 = vpop.f32.mrf.mxu0
        %v1132 = vadd.f32 0.0, %v1131
        %v1133 = vpop.f32.mrf.mxu0
        %1134 = vdwg.mxu0
        %v1136 = vsel %vm1096, %v1090, 0
        %v1139 = vsel %vm1096, %v1094, 0
        %1141 = vmatpush.bf16.xpose.msra.mxu0 0
        %1142 = vmatpush.bf16.xpose.msra.mxu0 0
        %1143 = vmatpush.bf16.xpose.msra.mxu0 0
        %1144 = vmatpush.bf16.xpose.msra.mxu0 0
        %1145 = vmatpush.bf16.xpose.msra.mxu0 0
        %1146 = vmatpush.bf16.xpose.msra.mxu0 0
        %1147 = vmatpush.bf16.xpose.msra.mxu0 0
        %1148 = vmatpush.bf16.xpose.msra.mxu0 %v1139
        %1149 = vmatmul.bf16.gmra.mxu0 %v1136
        %v1150 = vpop.f32.mrf.mxu0
        %v1151 = vadd.f32 0.0, %v1150
        %v1152 = vpop.f32.mrf.mxu0
        %1153 = vdwg.mxu0
        %v1155 = vsel %vm1096, %v1091, 0
        %v1158 = vsel %vm1096, %v1095, 0
        %1160 = vmatpush.bf16.xpose.msra.mxu0 0
        %1161 = vmatpush.bf16.xpose.msra.mxu0 0
        %1162 = vmatpush.bf16.xpose.msra.mxu0 0
        %1163 = vmatpush.bf16.xpose.msra.mxu0 0
        %1164 = vmatpush.bf16.xpose.msra.mxu0 0
        %1165 = vmatpush.bf16.xpose.msra.mxu0 0
        %1166 = vmatpush.bf16.xpose.msra.mxu0 0
        %1167 = vmatpush.bf16.xpose.msra.mxu0 %v1158
        %1168 = vmatmul.bf16.gmra.mxu0 %v1155
        %v1169 = vpop.f32.mrf.mxu0
        %v1170 = vadd.f32 0.0, %v1169
        %v1171 = vpop.f32.mrf.mxu0
        %1172 = vdwg.mxu0
        %v1173 = vsel %vm722, %v1113, -1e+30
        %v1174 = vsel %vm722, %v1132, -1e+30
        %v1175 = vsel %vm722, %v1151, -1e+30
        %v1176 = vsel %vm722, %v1170, -1e+30
        %v1177 = vsel %vm1096, %v1173, -inf
        %1178 = vmax.xlane.f32.xlu0 %v1177
        %v1179 = vpop.xlane.xlu0 %1178
        %v1180 = vsel %vm1096, %v1174, -inf
        %1181 = vmax.xlane.f32.xlu0 %v1180
        %v1182 = vpop.xlane.xlu0 %1181
        %v1183 = vsel %vm1096, %v1175, -inf
        %1184 = vmax.xlane.f32.xlu0 %v1183
        %v1185 = vpop.xlane.xlu0 %1184
        %v1186 = vsel %vm1096, %v1176, -inf
        %1187 = vmax.xlane.f32.xlu0 %v1186
        %v1188 = vpop.xlane.xlu0 %1187
        %v1189 = vsub.f32 %v1173, %v1179
        %v1190 = vsub.f32 %v1174, %v1182
        %v1191 = vsub.f32 %v1175, %v1185
        %v1192 = vsub.f32 %v1176, %v1188
        %v1193 = vmul.f32 %v1189, 1.442695
        %v1194 = vpow.pop %v1193
        %v1195 = vmul.f32 %v1190, 1.442695
        %v1196 = vpow.pop %v1195
        %v1197 = vmul.f32 %v1191, 1.442695
        %v1198 = vpow.pop %v1197
        %v1199 = vmul.f32 %v1192, 1.442695
        %v1200 = vpow.pop %v1199
        %v1201 = vsel %vm1096, %v1194, 0.0
        %1202 = vadd.xlane.f32.xlu0 %v1201
        %v1203 = vpop.xlane.xlu0 %1202
        %v1204 = vsel %vm1096, %v1196, 0.0
        %1205 = vadd.xlane.f32.xlu0 %v1204
        %v1206 = vpop.xlane.xlu0 %1205
        %v1207 = vsel %vm1096, %v1198, 0.0
        %1208 = vadd.xlane.f32.xlu0 %v1207
        %v1209 = vpop.xlane.xlu0 %1208
        %v1210 = vsel %vm1096, %v1200, 0.0
        %1211 = vadd.xlane.f32.xlu0 %v1210
        %v1212 = vpop.xlane.xlu0 %1211
        %v1213 = vrcp.pop %v1203
        %v1214 = vrcp.pop %v1206
        %v1215 = vrcp.pop %v1209
        %v1216 = vrcp.pop %v1212
        %v1217 = vmul.f32 %v1194, %v1213
        %v1218 = vmul.f32 %v1196, %v1214
        %v1219 = vmul.f32 %v1198, %v1215
        %v1220 = vmul.f32 %v1200, %v1216
        %v1221 = vpack.c.bf16 %v1217, %v1217
        %v1222 = vpack.c.bf16 %v1218, %v1218
        %v1223 = vpack.c.bf16 %v1219, %v1219
        %v1224 = vpack.c.bf16 %v1220, %v1220
        %v1225 = vpack.c.bf16 %v1081, %v1081
        %v1226 = vpack.c.bf16 %v1083, %v1083
        %v1227 = vpack.c.bf16 %v1085, %v1085
        %v1228 = vpack.c.bf16 %v1087, %v1087
        %v1230 = vsel %vm1096, %v1221, 0
        %vm1232 = vcmask 1043456
        %v1234 = vsel %vm1232, %v1225, 0
        %1236 = vmatpush.bf16.msra.mxu0 0
        %1237 = vmatpush.bf16.msra.mxu0 0
        %1238 = vmatpush.bf16.msra.mxu0 0
        %1239 = vmatpush.bf16.msra.mxu0 0
        %1240 = vmatpush.bf16.msra.mxu0 0
        %1241 = vmatpush.bf16.msra.mxu0 0
        %1242 = vmatpush.bf16.msra.mxu0 0
        %1243 = vmatpush.bf16.msra.mxu0 %v1234
        %1244 = vmatmul.bf16.gmra.mxu0 %v1230
        %v1245 = vpop.f32.mrf.mxu0
        %v1246 = vadd.f32 0.0, %v1245
        %v1247 = vpop.f32.mrf.mxu0
        %1248 = vdwg.mxu0
        %v1250 = vsel %vm1096, %v1222, 0
        %v1253 = vsel %vm1232, %v1226, 0
        %1255 = vmatpush.bf16.msra.mxu0 0
        %1256 = vmatpush.bf16.msra.mxu0 0
        %1257 = vmatpush.bf16.msra.mxu0 0
        %1258 = vmatpush.bf16.msra.mxu0 0
        %1259 = vmatpush.bf16.msra.mxu0 0
        %1260 = vmatpush.bf16.msra.mxu0 0
        %1261 = vmatpush.bf16.msra.mxu0 0
        %1262 = vmatpush.bf16.msra.mxu0 %v1253
        %1263 = vmatmul.bf16.gmra.mxu0 %v1250
        %v1264 = vpop.f32.mrf.mxu0
        %v1265 = vadd.f32 0.0, %v1264
        %v1266 = vpop.f32.mrf.mxu0
        %1267 = vdwg.mxu0
        %v1269 = vsel %vm1096, %v1223, 0
        %v1272 = vsel %vm1232, %v1227, 0
        %1274 = vmatpush.bf16.msra.mxu0 0
        %1275 = vmatpush.bf16.msra.mxu0 0
        %1276 = vmatpush.bf16.msra.mxu0 0
        %1277 = vmatpush.bf16.msra.mxu0 0
        %1278 = vmatpush.bf16.msra.mxu0 0
        %1279 = vmatpush.bf16.msra.mxu0 0
        %1280 = vmatpush.bf16.msra.mxu0 0
        %1281 = vmatpush.bf16.msra.mxu0 %v1272
        %1282 = vmatmul.bf16.gmra.mxu0 %v1269
        %v1283 = vpop.f32.mrf.mxu0
        %v1284 = vadd.f32 0.0, %v1283
        %v1285 = vpop.f32.mrf.mxu0
        %1286 = vdwg.mxu0
        %v1288 = vsel %vm1096, %v1224, 0
        %v1291 = vsel %vm1232, %v1228, 0
        %1293 = vmatpush.bf16.msra.mxu0 0
        %1294 = vmatpush.bf16.msra.mxu0 0
        %1295 = vmatpush.bf16.msra.mxu0 0
        %1296 = vmatpush.bf16.msra.mxu0 0
        %1297 = vmatpush.bf16.msra.mxu0 0
        %1298 = vmatpush.bf16.msra.mxu0 0
        %1299 = vmatpush.bf16.msra.mxu0 0
        %1300 = vmatpush.bf16.msra.mxu0 %v1291
        %1301 = vmatmul.bf16.gmra.mxu0 %v1288
        %v1302 = vpop.f32.mrf.mxu0
        %v1303 = vadd.f32 0.0, %v1302
        %v1304 = vpop.f32.mrf.mxu0
        %1305 = vdwg.mxu0
        %v1306 = vrot.slane %v1284, 4
        %v1307 = vsel %vm734, %v1306, %v1246
        %v1308 = vrot.slane %v1246, 4
        %v1309 = vsel %vm734, %v1284, %v1308
        %v1311 = vunpack.c.l.s4 1983009808
        %v1312 = vunpack.c.0.s8 %v1311
        %v1313 = vperm.slane %v1307, %v1312
        %v1315 = vunpack.c.l.s4 1983009808
        %v1316 = vunpack.c.0.s8 %v1315
        %v1317 = vperm.slane %v1309, %v1316
        %v1318 = vrot.slane %v1303, 4
        %v1319 = vsel %vm734, %v1318, %v1265
        %v1320 = vrot.slane %v1265, 4
        %v1321 = vsel %vm734, %v1303, %v1320
        %v1323 = vunpack.c.l.s4 1983009808
        %v1324 = vunpack.c.0.s8 %v1323
        %v1325 = vperm.slane %v1319, %v1324
        %v1327 = vunpack.c.l.s4 1983009808
        %v1328 = vunpack.c.0.s8 %v1327
        %v1329 = vperm.slane %v1321, %v1328
        %v1330 = vrot.slane %v1325, 4
        %v1331 = vsel %vm734, %v1330, %v1313
        %v1332 = vrot.slane %v1313, 4
        %v1333 = vsel %vm734, %v1325, %v1332
        %v1335 = vunpack.c.l.s4 1934713408
        %v1336 = vunpack.c.0.s8 %v1335
        %v1337 = vperm.slane %v1331, %v1336
        %v1339 = vunpack.c.l.s4 1934713408
        %v1340 = vunpack.c.0.s8 %v1339
        %v1341 = vperm.slane %v1333, %v1340
        %v1342 = vrot.slane %v1329, 4
        %v1343 = vsel %vm734, %v1342, %v1317
        %v1344 = vrot.slane %v1317, 4
        %v1345 = vsel %vm734, %v1329, %v1344
        %v1347 = vunpack.c.l.s4 1934713408
        %v1348 = vunpack.c.0.s8 %v1347
        %v1349 = vperm.slane %v1343, %v1348
        %v1351 = vunpack.c.l.s4 1934713408
        %v1352 = vunpack.c.0.s8 %v1351
        %v1353 = vperm.slane %v1345, %v1352
        %v1354 = vrot.slane %v1337, 4
        %v1355 = vsel %vm734, 0.0, %v1354
        %v1356 = vrot.slane %v1341, 4
        %v1357 = vsel %vm734, 0.0, %v1356
        %v1358 = vrot.slane %v1349, 4
        %v1359 = vsel %vm734, 0.0, %v1358
        %v1360 = vrot.slane %v1353, 4
        %v1361 = vsel %vm734, 0.0, %v1360
        %v1362 = vsel %vm734, %v1356, %v1337
        %v1364 = vunpack.c.l.s4 1983009808
        %v1365 = vunpack.c.0.s8 %v1364
        %v1366 = vperm.slane %v1362, %v1365
        %v1367 = vrot.slane %v1357, 4
        %v1368 = vsel %vm734, %v1367, %v1355
        %v1370 = vunpack.c.l.s4 1983009808
        %v1371 = vunpack.c.0.s8 %v1370
        %v1372 = vperm.slane %v1368, %v1371
        %v1373 = vsel %vm734, %v1360, %v1349
        %v1375 = vunpack.c.l.s4 1983009808
        %v1376 = vunpack.c.0.s8 %v1375
        %v1377 = vperm.slane %v1373, %v1376
        %v1378 = vrot.slane %v1361, 4
        %v1379 = vsel %vm734, %v1378, %v1359
        %v1381 = vunpack.c.l.s4 1983009808
        %v1382 = vunpack.c.0.s8 %v1381
        %v1383 = vperm.slane %v1379, %v1382
        %v1384 = vrot.slane %v1372, 4
        %v1385 = vsel %vm734, %v1384, %v1366
        %v1386 = vrot.slane %v1366, 4
        %v1387 = vsel %vm734, %v1372, %v1386
        %v1389 = vunpack.c.l.s4 1934713408
        %v1390 = vunpack.c.0.s8 %v1389
        %v1391 = vperm.slane %v1385, %v1390
        %v1393 = vunpack.c.l.s4 1934713408
        %v1394 = vunpack.c.0.s8 %v1393
        %v1395 = vperm.slane %v1387, %v1394
        %v1396 = vrot.slane %v1383, 4
        %v1397 = vsel %vm734, %v1396, %v1377
        %v1398 = vrot.slane %v1377, 4
        %v1399 = vsel %vm734, %v1383, %v1398
        %v1401 = vunpack.c.l.s4 1934713408
        %v1402 = vunpack.c.0.s8 %v1401
        %v1403 = vperm.slane %v1397, %v1402
        %v1405 = vunpack.c.l.s4 1934713408
        %v1406 = vunpack.c.0.s8 %v1405
        %v1407 = vperm.slane %v1399, %v1406
        %v1408 = vrot.slane %v1403, 4
        %v1409 = vsel %vm734, %v1408, %v1391
        %v1410 = vrot.slane %v1391, 4
        %v1411 = vsel %vm734, %v1403, %v1410
        %v1412 = vrot.slane %v1407, 4
        %v1413 = vsel %vm734, %v1412, %v1395
        %v1414 = vrot.slane %v1395, 4
        %v1415 = vsel %vm734, %v1407, %v1414
        %1417 = vrot.lane.b32.xlu0 %v1411, 8
        %v1418 = vpop.permute.xlu0 %1417
        %1421 = vrot.lane.b32.xlu0 %v1413, 16
        %v1422 = vpop.permute.xlu0 %1421
        %1425 = vrot.lane.b32.xlu0 %v1415, 24
        %v1426 = vpop.permute.xlu0 %1425
        %v1428 = vsel %vm1096, %v1409, %v1418
        %vm1429 = vcmask 130048
        %v1430 = vsel %vm1429, %v1428, %v1422
        %vm1431 = vcmask 195584
        %v1432 = vsel %vm1431, %v1430, %v1426
        %1434 = vrot.lane.b32.xlu0 %v712, 120
        %v1435 = vpop.permute.xlu0 %1434
        %1437 = vrot.lane.b32.xlu0 %v712, 112
        %v1438 = vpop.permute.xlu0 %1437
        %1440 = vrot.lane.b32.xlu0 %v712, 104
        %v1441 = vpop.permute.xlu0 %1440
        %v1443 = vrot.slane %v1438, 4
        %v1444 = vsel %vm734, %v1443, %v712
        %v1445 = vrot.slane %v712, 4
        %v1446 = vsel %vm734, %v1438, %v1445
        %v1448 = vunpack.c.l.s4 1983009808
        %v1449 = vunpack.c.0.s8 %v1448
        %v1450 = vperm.slane %v1444, %v1449
        %v1452 = vunpack.c.l.s4 1983009808
        %v1453 = vunpack.c.0.s8 %v1452
        %v1454 = vperm.slane %v1446, %v1453
        %v1455 = vrot.slane %v1441, 4
        %v1456 = vsel %vm734, %v1455, %v1435
        %v1457 = vrot.slane %v1435, 4
        %v1458 = vsel %vm734, %v1441, %v1457
        %v1460 = vunpack.c.l.s4 1983009808
        %v1461 = vunpack.c.0.s8 %v1460
        %v1462 = vperm.slane %v1456, %v1461
        %v1464 = vunpack.c.l.s4 1983009808
        %v1465 = vunpack.c.0.s8 %v1464
        %v1466 = vperm.slane %v1458, %v1465
        %v1467 = vrot.slane %v1462, 4
        %v1468 = vsel %vm734, %v1467, %v1450
        %v1469 = vrot.slane %v1450, 4
        %v1470 = vsel %vm734, %v1462, %v1469
        %v1472 = vunpack.c.l.s4 1934713408
        %v1473 = vunpack.c.0.s8 %v1472
        %v1474 = vperm.slane %v1468, %v1473
        %v1476 = vunpack.c.l.s4 1934713408
        %v1477 = vunpack.c.0.s8 %v1476
        %v1478 = vperm.slane %v1470, %v1477
        %v1479 = vrot.slane %v1466, 4
        %v1480 = vsel %vm734, %v1479, %v1454
        %v1481 = vrot.slane %v1454, 4
        %v1482 = vsel %vm734, %v1466, %v1481
        %v1484 = vunpack.c.l.s4 1934713408
        %v1485 = vunpack.c.0.s8 %v1484
        %v1486 = vperm.slane %v1480, %v1485
        %v1488 = vunpack.c.l.s4 1934713408
        %v1489 = vunpack.c.0.s8 %v1488
        %v1490 = vperm.slane %v1482, %v1489
        %v1491 = vrot.slane %v1474, 4
        %v1492 = vsel %vm734, 0.0, %v1491
        %v1493 = vrot.slane %v1478, 4
        %v1494 = vsel %vm734, 0.0, %v1493
        %v1495 = vrot.slane %v1486, 4
        %v1496 = vsel %vm734, 0.0, %v1495
        %v1497 = vrot.slane %v1490, 4
        %v1498 = vsel %vm734, 0.0, %v1497
        %v1499 = vsel %vm734, %v1493, %v1474
        %v1501 = vunpack.c.l.s4 1983009808
        %v1502 = vunpack.c.0.s8 %v1501
        %v1503 = vperm.slane %v1499, %v1502
        %v1504 = vrot.slane %v1494, 4
        %v1505 = vsel %vm734, %v1504, %v1492
        %v1507 = vunpack.c.l.s4 1983009808
        %v1508 = vunpack.c.0.s8 %v1507
        %v1509 = vperm.slane %v1505, %v1508
        %v1510 = vsel %vm734, %v1497, %v1486
        %v1512 = vunpack.c.l.s4 1983009808
        %v1513 = vunpack.c.0.s8 %v1512
        %v1514 = vperm.slane %v1510, %v1513
        %v1515 = vrot.slane %v1498, 4
        %v1516 = vsel %vm734, %v1515, %v1496
        %v1518 = vunpack.c.l.s4 1983009808
        %v1519 = vunpack.c.0.s8 %v1518
        %v1520 = vperm.slane %v1516, %v1519
        %v1521 = vrot.slane %v1509, 4
        %v1522 = vsel %vm734, %v1521, %v1503
        %v1523 = vrot.slane %v1503, 4
        %v1524 = vsel %vm734, %v1509, %v1523
        %v1526 = vunpack.c.l.s4 1934713408
        %v1527 = vunpack.c.0.s8 %v1526
        %v1528 = vperm.slane %v1522, %v1527
        %v1530 = vunpack.c.l.s4 1934713408
        %v1531 = vunpack.c.0.s8 %v1530
        %v1532 = vperm.slane %v1524, %v1531
        %v1533 = vrot.slane %v1520, 4
        %v1534 = vsel %vm734, %v1533, %v1514
        %v1535 = vrot.slane %v1514, 4
        %v1536 = vsel %vm734, %v1520, %v1535
        %v1538 = vunpack.c.l.s4 1934713408
        %v1539 = vunpack.c.0.s8 %v1538
        %v1540 = vperm.slane %v1534, %v1539
        %v1542 = vunpack.c.l.s4 1934713408
        %v1543 = vunpack.c.0.s8 %v1542
        %v1544 = vperm.slane %v1536, %v1543
        %v1545 = vrot.slane %v1540, 4
        %v1546 = vsel %vm734, %v1545, %v1528
        %v1547 = vrot.slane %v1528, 4
        %v1548 = vsel %vm734, %v1540, %v1547
        %v1549 = vrot.slane %v1544, 4
        %v1550 = vsel %vm734, %v1549, %v1532
        %v1551 = vrot.slane %v1532, 4
        %v1552 = vsel %vm734, %v1544, %v1551
        %1553 = vrot.lane.b32.xlu0 %v712, 96
        %v1554 = vpop.permute.xlu0 %1553
        %1555 = vrot.lane.b32.xlu0 %v1435, 96
        %v1556 = vpop.permute.xlu0 %1555
        %1557 = vrot.lane.b32.xlu0 %v1438, 96
        %v1558 = vpop.permute.xlu0 %1557
        %1559 = vrot.lane.b32.xlu0 %v1441, 96
        %v1560 = vpop.permute.xlu0 %1559
        %v1565 = vrot.slane %v1558, 4
        %v1566 = vsel %vm734, %v1565, %v1554
        %v1567 = vrot.slane %v1554, 4
        %v1568 = vsel %vm734, %v1558, %v1567
        %v1570 = vunpack.c.l.s4 1983009808
        %v1571 = vunpack.c.0.s8 %v1570
        %v1572 = vperm.slane %v1566, %v1571
        %v1574 = vunpack.c.l.s4 1983009808
        %v1575 = vunpack.c.0.s8 %v1574
        %v1576 = vperm.slane %v1568, %v1575
        %v1577 = vrot.slane %v1560, 4
        %v1578 = vsel %vm734, %v1577, %v1556
        %v1579 = vrot.slane %v1556, 4
        %v1580 = vsel %vm734, %v1560, %v1579
        %v1582 = vunpack.c.l.s4 1983009808
        %v1583 = vunpack.c.0.s8 %v1582
        %v1584 = vperm.slane %v1578, %v1583
        %v1586 = vunpack.c.l.s4 1983009808
        %v1587 = vunpack.c.0.s8 %v1586
        %v1588 = vperm.slane %v1580, %v1587
        %v1589 = vrot.slane %v1584, 4
        %v1590 = vsel %vm734, %v1589, %v1572
        %v1591 = vrot.slane %v1572, 4
        %v1592 = vsel %vm734, %v1584, %v1591
        %v1594 = vunpack.c.l.s4 1934713408
        %v1595 = vunpack.c.0.s8 %v1594
        %v1596 = vperm.slane %v1590, %v1595
        %v1598 = vunpack.c.l.s4 1934713408
        %v1599 = vunpack.c.0.s8 %v1598
        %v1600 = vperm.slane %v1592, %v1599
        %v1601 = vrot.slane %v1588, 4
        %v1602 = vsel %vm734, %v1601, %v1576
        %v1603 = vrot.slane %v1576, 4
        %v1604 = vsel %vm734, %v1588, %v1603
        %v1606 = vunpack.c.l.s4 1934713408
        %v1607 = vunpack.c.0.s8 %v1606
        %v1608 = vperm.slane %v1602, %v1607
        %v1610 = vunpack.c.l.s4 1934713408
        %v1611 = vunpack.c.0.s8 %v1610
        %v1612 = vperm.slane %v1604, %v1611
        %v1613 = vrot.slane %v1596, 4
        %v1614 = vsel %vm734, 0.0, %v1613
        %v1615 = vrot.slane %v1600, 4
        %v1616 = vsel %vm734, 0.0, %v1615
        %v1617 = vrot.slane %v1608, 4
        %v1618 = vsel %vm734, 0.0, %v1617
        %v1619 = vrot.slane %v1612, 4
        %v1620 = vsel %vm734, 0.0, %v1619
        %v1621 = vsel %vm734, %v1615, %v1596
        %v1623 = vunpack.c.l.s4 1983009808
        %v1624 = vunpack.c.0.s8 %v1623
        %v1625 = vperm.slane %v1621, %v1624
        %v1626 = vrot.slane %v1616, 4
        %v1627 = vsel %vm734, %v1626, %v1614
        %v1629 = vunpack.c.l.s4 1983009808
        %v1630 = vunpack.c.0.s8 %v1629
        %v1631 = vperm.slane %v1627, %v1630
        %v1632 = vsel %vm734, %v1619, %v1608
        %v1634 = vunpack.c.l.s4 1983009808
        %v1635 = vunpack.c.0.s8 %v1634
        %v1636 = vperm.slane %v1632, %v1635
        %v1637 = vrot.slane %v1620, 4
        %v1638 = vsel %vm734, %v1637, %v1618
        %v1640 = vunpack.c.l.s4 1983009808
        %v1641 = vunpack.c.0.s8 %v1640
        %v1642 = vperm.slane %v1638, %v1641
        %v1643 = vrot.slane %v1631, 4
        %v1644 = vsel %vm734, %v1643, %v1625
        %v1645 = vrot.slane %v1625, 4
        %v1646 = vsel %vm734, %v1631, %v1645
        %v1648 = vunpack.c.l.s4 1934713408
        %v1649 = vunpack.c.0.s8 %v1648
        %v1650 = vperm.slane %v1644, %v1649
        %v1652 = vunpack.c.l.s4 1934713408
        %v1653 = vunpack.c.0.s8 %v1652
        %v1654 = vperm.slane %v1646, %v1653
        %v1655 = vrot.slane %v1642, 4
        %v1656 = vsel %vm734, %v1655, %v1636
        %v1657 = vrot.slane %v1636, 4
        %v1658 = vsel %vm734, %v1642, %v1657
        %v1660 = vunpack.c.l.s4 1934713408
        %v1661 = vunpack.c.0.s8 %v1660
        %v1662 = vperm.slane %v1656, %v1661
        %v1664 = vunpack.c.l.s4 1934713408
        %v1665 = vunpack.c.0.s8 %v1664
        %v1666 = vperm.slane %v1658, %v1665
        %v1667 = vrot.slane %v1662, 4
        %v1668 = vsel %vm734, %v1667, %v1650
        %v1669 = vrot.slane %v1650, 4
        %v1670 = vsel %vm734, %v1662, %v1669
        %v1671 = vrot.slane %v1666, 4
        %v1672 = vsel %vm734, %v1671, %v1654
        %v1673 = vrot.slane %v1654, 4
        %v1674 = vsel %vm734, %v1666, %v1673
        %1675 = vrot.lane.b32.xlu0 %v712, 64
        %v1676 = vpop.permute.xlu0 %1675
        %1677 = vrot.lane.b32.xlu0 %v1435, 64
        %v1678 = vpop.permute.xlu0 %1677
        %1679 = vrot.lane.b32.xlu0 %v1438, 64
        %v1680 = vpop.permute.xlu0 %1679
        %1681 = vrot.lane.b32.xlu0 %v1441, 64
        %v1682 = vpop.permute.xlu0 %1681
        %v1687 = vrot.slane %v1680, 4
        %v1688 = vsel %vm734, %v1687, %v1676
        %v1689 = vrot.slane %v1676, 4
        %v1690 = vsel %vm734, %v1680, %v1689
        %v1692 = vunpack.c.l.s4 1983009808
        %v1693 = vunpack.c.0.s8 %v1692
        %v1694 = vperm.slane %v1688, %v1693
        %v1696 = vunpack.c.l.s4 1983009808
        %v1697 = vunpack.c.0.s8 %v1696
        %v1698 = vperm.slane %v1690, %v1697
        %v1699 = vrot.slane %v1682, 4
        %v1700 = vsel %vm734, %v1699, %v1678
        %v1701 = vrot.slane %v1678, 4
        %v1702 = vsel %vm734, %v1682, %v1701
        %v1704 = vunpack.c.l.s4 1983009808
        %v1705 = vunpack.c.0.s8 %v1704
        %v1706 = vperm.slane %v1700, %v1705
        %v1708 = vunpack.c.l.s4 1983009808
        %v1709 = vunpack.c.0.s8 %v1708
        %v1710 = vperm.slane %v1702, %v1709
        %v1711 = vrot.slane %v1706, 4
        %v1712 = vsel %vm734, %v1711, %v1694
        %v1713 = vrot.slane %v1694, 4
        %v1714 = vsel %vm734, %v1706, %v1713
        %v1716 = vunpack.c.l.s4 1934713408
        %v1717 = vunpack.c.0.s8 %v1716
        %v1718 = vperm.slane %v1712, %v1717
        %v1720 = vunpack.c.l.s4 1934713408
        %v1721 = vunpack.c.0.s8 %v1720
        %v1722 = vperm.slane %v1714, %v1721
        %v1723 = vrot.slane %v1710, 4
        %v1724 = vsel %vm734, %v1723, %v1698
        %v1725 = vrot.slane %v1698, 4
        %v1726 = vsel %vm734, %v1710, %v1725
        %v1728 = vunpack.c.l.s4 1934713408
        %v1729 = vunpack.c.0.s8 %v1728
        %v1730 = vperm.slane %v1724, %v1729
        %v1732 = vunpack.c.l.s4 1934713408
        %v1733 = vunpack.c.0.s8 %v1732
        %v1734 = vperm.slane %v1726, %v1733
        %v1735 = vrot.slane %v1718, 4
        %v1736 = vsel %vm734, 0.0, %v1735
        %v1737 = vrot.slane %v1722, 4
        %v1738 = vsel %vm734, 0.0, %v1737
        %v1739 = vrot.slane %v1730, 4
        %v1740 = vsel %vm734, 0.0, %v1739
        %v1741 = vrot.slane %v1734, 4
        %v1742 = vsel %vm734, 0.0, %v1741
        %v1743 = vsel %vm734, %v1737, %v1718
        %v1745 = vunpack.c.l.s4 1983009808
        %v1746 = vunpack.c.0.s8 %v1745
        %v1747 = vperm.slane %v1743, %v1746
        %v1748 = vrot.slane %v1738, 4
        %v1749 = vsel %vm734, %v1748, %v1736
        %v1751 = vunpack.c.l.s4 1983009808
        %v1752 = vunpack.c.0.s8 %v1751
        %v1753 = vperm.slane %v1749, %v1752
        %v1754 = vsel %vm734, %v1741, %v1730
        %v1756 = vunpack.c.l.s4 1983009808
        %v1757 = vunpack.c.0.s8 %v1756
        %v1758 = vperm.slane %v1754, %v1757
        %v1759 = vrot.slane %v1742, 4
        %v1760 = vsel %vm734, %v1759, %v1740
        %v1762 = vunpack.c.l.s4 1983009808
        %v1763 = vunpack.c.0.s8 %v1762
        %v1764 = vperm.slane %v1760, %v1763
        %v1765 = vrot.slane %v1753, 4
        %v1766 = vsel %vm734, %v1765, %v1747
        %v1767 = vrot.slane %v1747, 4
        %v1768 = vsel %vm734, %v1753, %v1767
        %v1770 = vunpack.c.l.s4 1934713408
        %v1771 = vunpack.c.0.s8 %v1770
        %v1772 = vperm.slane %v1766, %v1771
        %v1774 = vunpack.c.l.s4 1934713408
        %v1775 = vunpack.c.0.s8 %v1774
        %v1776 = vperm.slane %v1768, %v1775
        %v1777 = vrot.slane %v1764, 4
        %v1778 = vsel %vm734, %v1777, %v1758
        %v1779 = vrot.slane %v1758, 4
        %v1780 = vsel %vm734, %v1764, %v1779
        %v1782 = vunpack.c.l.s4 1934713408
        %v1783 = vunpack.c.0.s8 %v1782
        %v1784 = vperm.slane %v1778, %v1783
        %v1786 = vunpack.c.l.s4 1934713408
        %v1787 = vunpack.c.0.s8 %v1786
        %v1788 = vperm.slane %v1780, %v1787
        %v1789 = vrot.slane %v1784, 4
        %v1790 = vsel %vm734, %v1789, %v1772
        %v1791 = vrot.slane %v1772, 4
        %v1792 = vsel %vm734, %v1784, %v1791
        %v1793 = vrot.slane %v1788, 4
        %v1794 = vsel %vm734, %v1793, %v1776
        %v1795 = vrot.slane %v1776, 4
        %v1796 = vsel %vm734, %v1788, %v1795
        %v1797 = vpack.c.bf16 %v1546, %v1546
        %v1798 = vpack.c.bf16 %v1548, %v1548
        %v1799 = vpack.c.bf16 %v1550, %v1550
        %v1800 = vpack.c.bf16 %v1552, %v1552
        %v1801 = vpack.c.bf16 %v1668, %v1668
        %v1802 = vpack.c.bf16 %v1670, %v1670
        %v1803 = vpack.c.bf16 %v1672, %v1672
        %v1804 = vpack.c.bf16 %v1674, %v1674
        %v1806 = vsel %vm1096, %v1797, 0
        %v1809 = vsel %vm1096, %v1801, 0
        %1811 = vmatpush.bf16.xpose.msra.mxu0 0
        %1812 = vmatpush.bf16.xpose.msra.mxu0 0
        %1813 = vmatpush.bf16.xpose.msra.mxu0 0
        %1814 = vmatpush.bf16.xpose.msra.mxu0 0
        %1815 = vmatpush.bf16.xpose.msra.mxu0 0
        %1816 = vmatpush.bf16.xpose.msra.mxu0 0
        %1817 = vmatpush.bf16.xpose.msra.mxu0 0
        %1818 = vmatpush.bf16.xpose.msra.mxu0 %v1809
        %1819 = vmatmul.bf16.gmra.mxu0 %v1806
        %v1820 = vpop.f32.mrf.mxu0
        %v1821 = vadd.f32 0.0, %v1820
        %v1822 = vpop.f32.mrf.mxu0
        %1823 = vdwg.mxu0
        %v1825 = vsel %vm1096, %v1798, 0
        %v1828 = vsel %vm1096, %v1802, 0
        %1830 = vmatpush.bf16.xpose.msra.mxu0 0
        %1831 = vmatpush.bf16.xpose.msra.mxu0 0
        %1832 = vmatpush.bf16.xpose.msra.mxu0 0
        %1833 = vmatpush.bf16.xpose.msra.mxu0 0
        %1834 = vmatpush.bf16.xpose.msra.mxu0 0
        %1835 = vmatpush.bf16.xpose.msra.mxu0 0
        %1836 = vmatpush.bf16.xpose.msra.mxu0 0
        %1837 = vmatpush.bf16.xpose.msra.mxu0 %v1828
        %1838 = vmatmul.bf16.gmra.mxu0 %v1825
        %v1839 = vpop.f32.mrf.mxu0
        %v1840 = vadd.f32 0.0, %v1839
        %v1841 = vpop.f32.mrf.mxu0
        %1842 = vdwg.mxu0
        %v1844 = vsel %vm1096, %v1799, 0
        %v1847 = vsel %vm1096, %v1803, 0
        %1849 = vmatpush.bf16.xpose.msra.mxu0 0
        %1850 = vmatpush.bf16.xpose.msra.mxu0 0
        %1851 = vmatpush.bf16.xpose.msra.mxu0 0
        %1852 = vmatpush.bf16.xpose.msra.mxu0 0
        %1853 = vmatpush.bf16.xpose.msra.mxu0 0
        %1854 = vmatpush.bf16.xpose.msra.mxu0 0
        %1855 = vmatpush.bf16.xpose.msra.mxu0 0
        %1856 = vmatpush.bf16.xpose.msra.mxu0 %v1847
        %1857 = vmatmul.bf16.gmra.mxu0 %v1844
        %v1858 = vpop.f32.mrf.mxu0
        %v1859 = vadd.f32 0.0, %v1858
        %v1860 = vpop.f32.mrf.mxu0
        %1861 = vdwg.mxu0
        %v1863 = vsel %vm1096, %v1800, 0
        %v1866 = vsel %vm1096, %v1804, 0
        %1868 = vmatpush.bf16.xpose.msra.mxu0 0
        %1869 = vmatpush.bf16.xpose.msra.mxu0 0
        %1870 = vmatpush.bf16.xpose.msra.mxu0 0
        %1871 = vmatpush.bf16.xpose.msra.mxu0 0
        %1872 = vmatpush.bf16.xpose.msra.mxu0 0
        %1873 = vmatpush.bf16.xpose.msra.mxu0 0
        %1874 = vmatpush.bf16.xpose.msra.mxu0 0
        %1875 = vmatpush.bf16.xpose.msra.mxu0 %v1866
        %1876 = vmatmul.bf16.gmra.mxu0 %v1863
        %v1877 = vpop.f32.mrf.mxu0
        %v1878 = vadd.f32 0.0, %v1877
        %v1879 = vpop.f32.mrf.mxu0
        %1880 = vdwg.mxu0
        %v1881 = vsel %vm722, %v1821, -1e+30
        %v1882 = vsel %vm722, %v1840, -1e+30
        %v1883 = vsel %vm722, %v1859, -1e+30
        %v1884 = vsel %vm722, %v1878, -1e+30
        %v1885 = vsel %vm1096, %v1881, -inf
        %1886 = vmax.xlane.f32.xlu0 %v1885
        %v1887 = vpop.xlane.xlu0 %1886
        %v1888 = vsel %vm1096, %v1882, -inf
        %1889 = vmax.xlane.f32.xlu0 %v1888
        %v1890 = vpop.xlane.xlu0 %1889
        %v1891 = vsel %vm1096, %v1883, -inf
        %1892 = vmax.xlane.f32.xlu0 %v1891
        %v1893 = vpop.xlane.xlu0 %1892
        %v1894 = vsel %vm1096, %v1884, -inf
        %1895 = vmax.xlane.f32.xlu0 %v1894
        %v1896 = vpop.xlane.xlu0 %1895
        %v1897 = vsub.f32 %v1881, %v1887
        %v1898 = vsub.f32 %v1882, %v1890
        %v1899 = vsub.f32 %v1883, %v1893
        %v1900 = vsub.f32 %v1884, %v1896
        %v1901 = vmul.f32 %v1897, 1.442695
        %v1902 = vpow.pop %v1901
        %v1903 = vmul.f32 %v1898, 1.442695
        %v1904 = vpow.pop %v1903
        %v1905 = vmul.f32 %v1899, 1.442695
        %v1906 = vpow.pop %v1905
        %v1907 = vmul.f32 %v1900, 1.442695
        %v1908 = vpow.pop %v1907
        %v1909 = vsel %vm1096, %v1902, 0.0
        %1910 = vadd.xlane.f32.xlu0 %v1909
        %v1911 = vpop.xlane.xlu0 %1910
        %v1912 = vsel %vm1096, %v1904, 0.0
        %1913 = vadd.xlane.f32.xlu0 %v1912
        %v1914 = vpop.xlane.xlu0 %1913
        %v1915 = vsel %vm1096, %v1906, 0.0
        %1916 = vadd.xlane.f32.xlu0 %v1915
        %v1917 = vpop.xlane.xlu0 %1916
        %v1918 = vsel %vm1096, %v1908, 0.0
        %1919 = vadd.xlane.f32.xlu0 %v1918
        %v1920 = vpop.xlane.xlu0 %1919
        %v1921 = vrcp.pop %v1911
        %v1922 = vrcp.pop %v1914
        %v1923 = vrcp.pop %v1917
        %v1924 = vrcp.pop %v1920
        %v1925 = vmul.f32 %v1902, %v1921
        %v1926 = vmul.f32 %v1904, %v1922
        %v1927 = vmul.f32 %v1906, %v1923
        %v1928 = vmul.f32 %v1908, %v1924
        %v1929 = vpack.c.bf16 %v1925, %v1925
        %v1930 = vpack.c.bf16 %v1926, %v1926
        %v1931 = vpack.c.bf16 %v1927, %v1927
        %v1932 = vpack.c.bf16 %v1928, %v1928
        %v1933 = vpack.c.bf16 %v1790, %v1790
        %v1934 = vpack.c.bf16 %v1792, %v1792
        %v1935 = vpack.c.bf16 %v1794, %v1794
        %v1936 = vpack.c.bf16 %v1796, %v1796
        %v1938 = vsel %vm1096, %v1929, 0
        %v1941 = vsel %vm1232, %v1933, 0
        %1943 = vmatpush.bf16.msra.mxu0 0
        %1944 = vmatpush.bf16.msra.mxu0 0
        %1945 = vmatpush.bf16.msra.mxu0 0
        %1946 = vmatpush.bf16.msra.mxu0 0
        %1947 = vmatpush.bf16.msra.mxu0 0
        %1948 = vmatpush.bf16.msra.mxu0 0
        %1949 = vmatpush.bf16.msra.mxu0 0
        %1950 = vmatpush.bf16.msra.mxu0 %v1941
        %1951 = vmatmul.bf16.gmra.mxu0 %v1938
        %v1952 = vpop.f32.mrf.mxu0
        %v1953 = vadd.f32 0.0, %v1952
        %v1954 = vpop.f32.mrf.mxu0
        %1955 = vdwg.mxu0
        %v1957 = vsel %vm1096, %v1930, 0
        %v1960 = vsel %vm1232, %v1934, 0
        %1962 = vmatpush.bf16.msra.mxu0 0
        %1963 = vmatpush.bf16.msra.mxu0 0
        %1964 = vmatpush.bf16.msra.mxu0 0
        %1965 = vmatpush.bf16.msra.mxu0 0
        %1966 = vmatpush.bf16.msra.mxu0 0
        %1967 = vmatpush.bf16.msra.mxu0 0
        %1968 = vmatpush.bf16.msra.mxu0 0
        %1969 = vmatpush.bf16.msra.mxu0 %v1960
        %1970 = vmatmul.bf16.gmra.mxu0 %v1957
        %v1971 = vpop.f32.mrf.mxu0
        %v1972 = vadd.f32 0.0, %v1971
        %v1973 = vpop.f32.mrf.mxu0
        %1974 = vdwg.mxu0
        %v1976 = vsel %vm1096, %v1931, 0
        %v1979 = vsel %vm1232, %v1935, 0
        %1981 = vmatpush.bf16.msra.mxu0 0
        %1982 = vmatpush.bf16.msra.mxu0 0
        %1983 = vmatpush.bf16.msra.mxu0 0
        %1984 = vmatpush.bf16.msra.mxu0 0
        %1985 = vmatpush.bf16.msra.mxu0 0
        %1986 = vmatpush.bf16.msra.mxu0 0
        %1987 = vmatpush.bf16.msra.mxu0 0
        %1988 = vmatpush.bf16.msra.mxu0 %v1979
        %1989 = vmatmul.bf16.gmra.mxu0 %v1976
        %v1990 = vpop.f32.mrf.mxu0
        %v1991 = vadd.f32 0.0, %v1990
        %v1992 = vpop.f32.mrf.mxu0
        %1993 = vdwg.mxu0
        %v1995 = vsel %vm1096, %v1932, 0
        %v1998 = vsel %vm1232, %v1936, 0
        %2000 = vmatpush.bf16.msra.mxu0 0
        %2001 = vmatpush.bf16.msra.mxu0 0
        %2002 = vmatpush.bf16.msra.mxu0 0
        %2003 = vmatpush.bf16.msra.mxu0 0
        %2004 = vmatpush.bf16.msra.mxu0 0
        %2005 = vmatpush.bf16.msra.mxu0 0
        %2006 = vmatpush.bf16.msra.mxu0 0
        %2007 = vmatpush.bf16.msra.mxu0 %v1998
        %2008 = vmatmul.bf16.gmra.mxu0 %v1995
        %v2009 = vpop.f32.mrf.mxu0
        %v2010 = vadd.f32 0.0, %v2009
        %v2011 = vpop.f32.mrf.mxu0
        %2012 = vdwg.mxu0
        %v2013 = vrot.slane %v1991, 4
        %v2014 = vsel %vm734, %v2013, %v1953
        %v2015 = vrot.slane %v1953, 4
        %v2016 = vsel %vm734, %v1991, %v2015
        %v2018 = vunpack.c.l.s4 1983009808
        %v2019 = vunpack.c.0.s8 %v2018
        %v2020 = vperm.slane %v2014, %v2019
        %v2022 = vunpack.c.l.s4 1983009808
        %v2023 = vunpack.c.0.s8 %v2022
        %v2024 = vperm.slane %v2016, %v2023
        %v2025 = vrot.slane %v2010, 4
        %v2026 = vsel %vm734, %v2025, %v1972
        %v2027 = vrot.slane %v1972, 4
        %v2028 = vsel %vm734, %v2010, %v2027
        %v2030 = vunpack.c.l.s4 1983009808
        %v2031 = vunpack.c.0.s8 %v2030
        %v2032 = vperm.slane %v2026, %v2031
        %v2034 = vunpack.c.l.s4 1983009808
        %v2035 = vunpack.c.0.s8 %v2034
        %v2036 = vperm.slane %v2028, %v2035
        %v2037 = vrot.slane %v2032, 4
        %v2038 = vsel %vm734, %v2037, %v2020
        %v2039 = vrot.slane %v2020, 4
        %v2040 = vsel %vm734, %v2032, %v2039
        %v2042 = vunpack.c.l.s4 1934713408
        %v2043 = vunpack.c.0.s8 %v2042
        %v2044 = vperm.slane %v2038, %v2043
        %v2046 = vunpack.c.l.s4 1934713408
        %v2047 = vunpack.c.0.s8 %v2046
        %v2048 = vperm.slane %v2040, %v2047
        %v2049 = vrot.slane %v2036, 4
        %v2050 = vsel %vm734, %v2049, %v2024
        %v2051 = vrot.slane %v2024, 4
        %v2052 = vsel %vm734, %v2036, %v2051
        %v2054 = vunpack.c.l.s4 1934713408
        %v2055 = vunpack.c.0.s8 %v2054
        %v2056 = vperm.slane %v2050, %v2055
        %v2058 = vunpack.c.l.s4 1934713408
        %v2059 = vunpack.c.0.s8 %v2058
        %v2060 = vperm.slane %v2052, %v2059
        %v2061 = vrot.slane %v2044, 4
        %v2062 = vsel %vm734, 0.0, %v2061
        %v2063 = vrot.slane %v2048, 4
        %v2064 = vsel %vm734, 0.0, %v2063
        %v2065 = vrot.slane %v2056, 4
        %v2066 = vsel %vm734, 0.0, %v2065
        %v2067 = vrot.slane %v2060, 4
        %v2068 = vsel %vm734, 0.0, %v2067
        %v2069 = vsel %vm734, %v2063, %v2044
        %v2071 = vunpack.c.l.s4 1983009808
        %v2072 = vunpack.c.0.s8 %v2071
        %v2073 = vperm.slane %v2069, %v2072
        %v2074 = vrot.slane %v2064, 4
        %v2075 = vsel %vm734, %v2074, %v2062
        %v2077 = vunpack.c.l.s4 1983009808
        %v2078 = vunpack.c.0.s8 %v2077
        %v2079 = vperm.slane %v2075, %v2078
        %v2080 = vsel %vm734, %v2067, %v2056
        %v2082 = vunpack.c.l.s4 1983009808
        %v2083 = vunpack.c.0.s8 %v2082
        %v2084 = vperm.slane %v2080, %v2083
        %v2085 = vrot.slane %v2068, 4
        %v2086 = vsel %vm734, %v2085, %v2066
        %v2088 = vunpack.c.l.s4 1983009808
        %v2089 = vunpack.c.0.s8 %v2088
        %v2090 = vperm.slane %v2086, %v2089
        %v2091 = vrot.slane %v2079, 4
        %v2092 = vsel %vm734, %v2091, %v2073
        %v2093 = vrot.slane %v2073, 4
        %v2094 = vsel %vm734, %v2079, %v2093
        %v2096 = vunpack.c.l.s4 1934713408
        %v2097 = vunpack.c.0.s8 %v2096
        %v2098 = vperm.slane %v2092, %v2097
        %v2100 = vunpack.c.l.s4 1934713408
        %v2101 = vunpack.c.0.s8 %v2100
        %v2102 = vperm.slane %v2094, %v2101
        %v2103 = vrot.slane %v2090, 4
        %v2104 = vsel %vm734, %v2103, %v2084
        %v2105 = vrot.slane %v2084, 4
        %v2106 = vsel %vm734, %v2090, %v2105
        %v2108 = vunpack.c.l.s4 1934713408
        %v2109 = vunpack.c.0.s8 %v2108
        %v2110 = vperm.slane %v2104, %v2109
        %v2112 = vunpack.c.l.s4 1934713408
        %v2113 = vunpack.c.0.s8 %v2112
        %v2114 = vperm.slane %v2106, %v2113
        %v2115 = vrot.slane %v2110, 4
        %v2116 = vsel %vm734, %v2115, %v2098
        %v2117 = vrot.slane %v2098, 4
        %v2118 = vsel %vm734, %v2110, %v2117
        %v2119 = vrot.slane %v2114, 4
        %v2120 = vsel %vm734, %v2119, %v2102
        %v2121 = vrot.slane %v2102, 4
        %v2122 = vsel %vm734, %v2114, %v2121
        %2124 = vrot.lane.b32.xlu0 %v2118, 8
        %v2125 = vpop.permute.xlu0 %2124
        %2128 = vrot.lane.b32.xlu0 %v2120, 16
        %v2129 = vpop.permute.xlu0 %2128
        %2132 = vrot.lane.b32.xlu0 %v2122, 24
        %v2133 = vpop.permute.xlu0 %2132
        %v2135 = vsel %vm1096, %v2116, %v2125
        %v2136 = vsel %vm1429, %v2135, %v2129
        %v2137 = vsel %vm1431, %v2136, %v2133
        %v2138 = vpack.c.bf16 %v2137, %v1432
        %v2139 = vperm.slane %v673, 0
        %v2144 = vunpack.c.l.b16 %v714
        %v2145 = vunpack.c.l.b16 %v715
        %v2146 = vunpack.c.l.b16 %v716
        %v2147 = vunpack.c.l.b16 %v717
        %v2148 = vpack.c.b16 %v2145, %v2144
        %v2149 = vpack.c.b16 %v2147, %v2146
        %v2153 = vsel %vm696, %v2138, 0
        %2155 = vmatpush.bf16.msra.mxu0 0
        %2156 = vmatpush.bf16.msra.mxu0 0
        %2157 = vmatpush.bf16.msra.mxu0 0
        %2158 = vmatpush.bf16.msra.mxu0 0
        %2159 = vmatpush.bf16.msra.mxu0 0
        %2160 = vmatpush.bf16.msra.mxu0 0
        %2161 = vmatpush.bf16.msra.mxu0 %v2149
        %2162 = vmatpush.bf16.msra.mxu0 %v2148
        %2163 = vmatmul.bf16.gmra.mxu0 %v2153
        %v2164 = vpop.f32.mrf.mxu0
        %v2165 = vadd.f32 %v2139, %v2164
        %v2166 = vpop.f32.mrf.mxu0
        %v2167 = vadd.f32 %v2139, %v2166
        %2168 = vdwg.mxu0
        %v2169 = vadd.f32 %v668, %v2165
        %v2170 = vadd.f32 %v669, %v2167
        %v2171 = vsel %vm696, %v2169, 0.0
        %2172 = vadd.xlane.f32.xlu0 %v2171
        %v2173 = vpop.xlane.xlu0 %2172
        %v2174 = vsel %vm696, %v2170, 0.0
        %2175 = vadd.xlane.f32.xlu0 %v2174
        %v2176 = vpop.xlane.xlu0 %2175
        %v2177 = vrcp.pop 32.0
        %v2178 = vmul.f32 32.0, %v2177
        %v2179 = vsub.f32 1.0, %v2178
        %v2180 = vmul.f32 %v2177, %v2179
        %v2181 = vadd.f32 %v2177, %v2180
        %vm2182 = vweird.f32 %v2177
        %v2183 = vsel %vm2182, %v2177, %v2181
        %v2184 = vmul.f32 %v2173, %v2183
        %v2185 = vmul.f32 %v2176, %v2183
        %v2186 = vsub.f32 %v2169, %v2184
        %v2187 = vsub.f32 %v2170, %v2185
        %v2188 = vmul.f32 %v2186, %v2186
        %v2189 = vmul.f32 %v2187, %v2187
        %v2190 = vsel %vm696, %v2188, 0.0
        %2191 = vadd.xlane.f32.xlu0 %v2190
        %v2192 = vpop.xlane.xlu0 %2191
        %v2193 = vsel %vm696, %v2189, 0.0
        %2194 = vadd.xlane.f32.xlu0 %v2193
        %v2195 = vpop.xlane.xlu0 %2194
        %v2196 = vmul.f32 %v2192, %v2183
        %v2197 = vmul.f32 %v2195, %v2183
        %v2198 = vadd.f32 %v2196, 1e-05
        %v2199 = vadd.f32 %v2197, 1e-05
        %v2200 = vrsqrt.pop %v2198
        %v2201 = vmul.f32 %v2200, %v2198
        %v2202 = vmul.f32 %v2201, %v2200
        %v2203 = vmul.f32 0.5, %v2202
        %v2204 = vsub.f32 1.5, %v2203
        %v2205 = vmul.f32 %v2200, %v2204
        %vm2206 = vweird.f32 %v2198
        %vm2207 = vweird.f32 %v2200
        %vm2208 = vmor %vm2206, %vm2207
        %v2209 = vsel %vm2208, %v2200, %v2205
        %v2210 = vrsqrt.pop %v2199
        %v2211 = vmul.f32 %v2210, %v2199
        %v2212 = vmul.f32 %v2211, %v2210
        %v2213 = vmul.f32 0.5, %v2212
        %v2214 = vsub.f32 1.5, %v2213
        %v2215 = vmul.f32 %v2210, %v2214
        %vm2216 = vweird.f32 %v2199
        %vm2217 = vweird.f32 %v2210
        %vm2218 = vmor %vm2216, %vm2217
        %v2219 = vsel %vm2218, %v2210, %v2215
        %v2220 = vmul.f32 %v2186, %v2209
        %v2221 = vmul.f32 %v2187, %v2219
        %v2222 = vperm.slane %v673, 4
        %v2223 = vmul.f32 %v2220, %v2222
        %v2224 = vmul.f32 %v2221, %v2222
        %v2225 = vperm.slane %v673, 5
        %v2226 = vadd.f32 %v2223, %v2225
        %v2227 = vadd.f32 %v2224, %v2225
        %v2228 = vpack.c.bf16 %v2227, %v2226
        %v2229 = vld [vmem:[%s631] sm:$0xf]
        %v2230 = vld [vmem:[%s631 + $0x4] sm:$0xf]
        %v2231 = vld [vmem:[%s631 + $0x8] sm:$0xf]
        %v2232 = vld [vmem:[%s631 + $0xc] sm:$0xf]
        %v2233 = vperm.slane %v673, 1
        %v2238 = vunpack.c.l.b16 %v2229
        %v2239 = vunpack.c.l.b16 %v2230
        %v2240 = vunpack.c.l.b16 %v2231
        %v2241 = vunpack.c.l.b16 %v2232
        %v2242 = vpack.c.b16 %v2239, %v2238
        %v2243 = vpack.c.b16 %v2241, %v2240
        %v2247 = vsel %vm696, %v2228, 0
        %2249 = vmatpush.bf16.msra.mxu0 0
        %2250 = vmatpush.bf16.msra.mxu0 0
        %2251 = vmatpush.bf16.msra.mxu0 0
        %2252 = vmatpush.bf16.msra.mxu0 0
        %2253 = vmatpush.bf16.msra.mxu0 0
        %2254 = vmatpush.bf16.msra.mxu0 0
        %2255 = vmatpush.bf16.msra.mxu0 %v2243
        %2256 = vmatpush.bf16.msra.mxu0 %v2242
        %2257 = vmatmul.bf16.gmra.mxu0 %v2247
        %v2258 = vpop.f32.mrf.mxu0
        %v2259 = vadd.f32 %v2233, %v2258
        %v2260 = vpop.f32.mrf.mxu0
        %v2261 = vadd.f32 %v2233, %v2260
        %2262 = vdwg.mxu0
        %v2263 = vld [vmem:[%s636] sm:$0xf]
        %v2264 = vld [vmem:[%s636 + $0x4] sm:$0xf]
        %v2265 = vld [vmem:[%s636 + $0x8] sm:$0xf]
        %v2266 = vld [vmem:[%s636 + $0xc] sm:$0xf]
        %v2267 = vld [vmem:[%s639] sm:$0x1]
        %v2269 = vperm.slane %v2267, 0
        %v2274 = vunpack.c.l.b16 %v670
        %v2275 = vunpack.c.l.b16 %v671
        %v2276 = vunpack.c.l.b16 %v672
        %v2277 = vpack.c.b16 %v2275, %v2274
        %v2278 = vpack.c.b16 %v2276, %v2276
        %v2283 = vunpack.c.l.b16 %v2263
        %v2284 = vunpack.c.l.b16 %v2264
        %v2285 = vunpack.c.l.b16 %v2265
        %v2286 = vunpack.c.l.b16 %v2266
        %v2287 = vpack.c.b16 %v2284, %v2283
        %v2288 = vpack.c.b16 %v2286, %v2285
        %v2292 = vsel %vm696, %v2277, 0
        %v2295 = vsel %vm696, %v2278, 0
        %2297 = vmatpush.bf16.msra.mxu0 0
        %2298 = vmatpush.bf16.msra.mxu0 0
        %2299 = vmatpush.bf16.msra.mxu0 0
        %2300 = vmatpush.bf16.msra.mxu0 0
        %2301 = vmatpush.bf16.msra.mxu0 0
        %2302 = vmatpush.bf16.msra.mxu0 0
        %2303 = vmatpush.bf16.msra.mxu0 %v2288
        %2304 = vmatpush.bf16.msra.mxu0 %v2287
        %2305 = vmatmul.bf16.gmra.mxu0 %v2292
        %v2306 = vpop.f32.mrf.mxu0
        %v2307 = vadd.f32 %v2269, %v2306
        %v2308 = vpop.f32.mrf.mxu0
        %v2309 = vadd.f32 %v2269, %v2308
        %2310 = vmatmul.bf16.gmra.mxu0 %v2295
        %v2311 = vpop.f32.mrf.mxu0
        %v2312 = vadd.f32 %v2269, %v2311
        %v2313 = vpop.f32.mrf.mxu0
        %2314 = vdwg.mxu0
        %v2315 = vld [vmem:[%s644] sm:$0xf]
        %v2316 = vld [vmem:[%s644 + $0x4] sm:$0xf]
        %v2317 = vld [vmem:[%s644 + $0x8] sm:$0xf]
        %v2318 = vld [vmem:[%s644 + $0xc] sm:$0xf]
        %2320 = vrot.lane.b32.xlu0 %v2259, 120
        %v2321 = vpop.permute.xlu0 %2320
        %2323 = vrot.lane.b32.xlu0 %v2259, 112
        %v2324 = vpop.permute.xlu0 %2323
        %2326 = vrot.lane.b32.xlu0 %v2259, 104
        %v2327 = vpop.permute.xlu0 %2326
        %v2329 = vrot.slane %v2324, 4
        %v2330 = vsel %vm734, %v2329, %v2259
        %v2331 = vrot.slane %v2259, 4
        %v2332 = vsel %vm734, %v2324, %v2331
        %v2334 = vunpack.c.l.s4 1983009808
        %v2335 = vunpack.c.0.s8 %v2334
        %v2336 = vperm.slane %v2330, %v2335
        %v2338 = vunpack.c.l.s4 1983009808
        %v2339 = vunpack.c.0.s8 %v2338
        %v2340 = vperm.slane %v2332, %v2339
        %v2341 = vrot.slane %v2327, 4
        %v2342 = vsel %vm734, %v2341, %v2321
        %v2343 = vrot.slane %v2321, 4
        %v2344 = vsel %vm734, %v2327, %v2343
        %v2346 = vunpack.c.l.s4 1983009808
        %v2347 = vunpack.c.0.s8 %v2346
        %v2348 = vperm.slane %v2342, %v2347
        %v2350 = vunpack.c.l.s4 1983009808
        %v2351 = vunpack.c.0.s8 %v2350
        %v2352 = vperm.slane %v2344, %v2351
        %v2353 = vrot.slane %v2348, 4
        %v2354 = vsel %vm734, %v2353, %v2336
        %v2355 = vrot.slane %v2336, 4
        %v2356 = vsel %vm734, %v2348, %v2355
        %v2358 = vunpack.c.l.s4 1934713408
        %v2359 = vunpack.c.0.s8 %v2358
        %v2360 = vperm.slane %v2354, %v2359
        %v2362 = vunpack.c.l.s4 1934713408
        %v2363 = vunpack.c.0.s8 %v2362
        %v2364 = vperm.slane %v2356, %v2363
        %v2365 = vrot.slane %v2352, 4
        %v2366 = vsel %vm734, %v2365, %v2340
        %v2367 = vrot.slane %v2340, 4
        %v2368 = vsel %vm734, %v2352, %v2367
        %v2370 = vunpack.c.l.s4 1934713408
        %v2371 = vunpack.c.0.s8 %v2370
        %v2372 = vperm.slane %v2366, %v2371
        %v2374 = vunpack.c.l.s4 1934713408
        %v2375 = vunpack.c.0.s8 %v2374
        %v2376 = vperm.slane %v2368, %v2375
        %v2377 = vrot.slane %v2360, 4
        %v2378 = vsel %vm734, 0.0, %v2377
        %v2379 = vrot.slane %v2364, 4
        %v2380 = vsel %vm734, 0.0, %v2379
        %v2381 = vrot.slane %v2372, 4
        %v2382 = vsel %vm734, 0.0, %v2381
        %v2383 = vrot.slane %v2376, 4
        %v2384 = vsel %vm734, 0.0, %v2383
        %v2385 = vsel %vm734, %v2379, %v2360
        %v2387 = vunpack.c.l.s4 1983009808
        %v2388 = vunpack.c.0.s8 %v2387
        %v2389 = vperm.slane %v2385, %v2388
        %v2390 = vrot.slane %v2380, 4
        %v2391 = vsel %vm734, %v2390, %v2378
        %v2393 = vunpack.c.l.s4 1983009808
        %v2394 = vunpack.c.0.s8 %v2393
        %v2395 = vperm.slane %v2391, %v2394
        %v2396 = vsel %vm734, %v2383, %v2372
        %v2398 = vunpack.c.l.s4 1983009808
        %v2399 = vunpack.c.0.s8 %v2398
        %v2400 = vperm.slane %v2396, %v2399
        %v2401 = vrot.slane %v2384, 4
        %v2402 = vsel %vm734, %v2401, %v2382
        %v2404 = vunpack.c.l.s4 1983009808
        %v2405 = vunpack.c.0.s8 %v2404
        %v2406 = vperm.slane %v2402, %v2405
        %v2407 = vrot.slane %v2395, 4
        %v2408 = vsel %vm734, %v2407, %v2389
        %v2409 = vrot.slane %v2389, 4
        %v2410 = vsel %vm734, %v2395, %v2409
        %v2412 = vunpack.c.l.s4 1934713408
        %v2413 = vunpack.c.0.s8 %v2412
        %v2414 = vperm.slane %v2408, %v2413
        %v2416 = vunpack.c.l.s4 1934713408
        %v2417 = vunpack.c.0.s8 %v2416
        %v2418 = vperm.slane %v2410, %v2417
        %v2419 = vrot.slane %v2406, 4
        %v2420 = vsel %vm734, %v2419, %v2400
        %v2421 = vrot.slane %v2400, 4
        %v2422 = vsel %vm734, %v2406, %v2421
        %v2424 = vunpack.c.l.s4 1934713408
        %v2425 = vunpack.c.0.s8 %v2424
        %v2426 = vperm.slane %v2420, %v2425
        %v2428 = vunpack.c.l.s4 1934713408
        %v2429 = vunpack.c.0.s8 %v2428
        %v2430 = vperm.slane %v2422, %v2429
        %v2431 = vrot.slane %v2426, 4
        %v2432 = vsel %vm734, %v2431, %v2414
        %v2433 = vrot.slane %v2414, 4
        %v2434 = vsel %vm734, %v2426, %v2433
        %v2435 = vrot.slane %v2430, 4
        %v2436 = vsel %vm734, %v2435, %v2418
        %v2437 = vrot.slane %v2418, 4
        %v2438 = vsel %vm734, %v2430, %v2437
        %2441 = vrot.lane.b32.xlu0 %v2307, 120
        %v2442 = vpop.permute.xlu0 %2441
        %2443 = vrot.lane.b32.xlu0 %v2309, 120
        %v2444 = vpop.permute.xlu0 %2443
        %2447 = vrot.lane.b32.xlu0 %v2307, 112
        %v2448 = vpop.permute.xlu0 %2447
        %2449 = vrot.lane.b32.xlu0 %v2309, 112
        %v2450 = vpop.permute.xlu0 %2449
        %2453 = vrot.lane.b32.xlu0 %v2307, 104
        %v2454 = vpop.permute.xlu0 %2453
        %2455 = vrot.lane.b32.xlu0 %v2309, 104
        %v2456 = vpop.permute.xlu0 %2455
        %v2459 = vrot.slane %v2448, 4
        %v2460 = vsel %vm734, %v2459, %v2307
        %v2461 = vrot.slane %v2307, 4
        %v2462 = vsel %vm734, %v2448, %v2461
        %v2464 = vunpack.c.l.s4 1983009808
        %v2465 = vunpack.c.0.s8 %v2464
        %v2466 = vperm.slane %v2460, %v2465
        %v2468 = vunpack.c.l.s4 1983009808
        %v2469 = vunpack.c.0.s8 %v2468
        %v2470 = vperm.slane %v2462, %v2469
        %v2471 = vrot.slane %v2454, 4
        %v2472 = vsel %vm734, %v2471, %v2442
        %v2473 = vrot.slane %v2442, 4
        %v2474 = vsel %vm734, %v2454, %v2473
        %v2476 = vunpack.c.l.s4 1983009808
        %v2477 = vunpack.c.0.s8 %v2476
        %v2478 = vperm.slane %v2472, %v2477
        %v2480 = vunpack.c.l.s4 1983009808
        %v2481 = vunpack.c.0.s8 %v2480
        %v2482 = vperm.slane %v2474, %v2481
        %v2483 = vrot.slane %v2478, 4
        %v2484 = vsel %vm734, %v2483, %v2466
        %v2485 = vrot.slane %v2466, 4
        %v2486 = vsel %vm734, %v2478, %v2485
        %v2488 = vunpack.c.l.s4 1934713408
        %v2489 = vunpack.c.0.s8 %v2488
        %v2490 = vperm.slane %v2484, %v2489
        %v2492 = vunpack.c.l.s4 1934713408
        %v2493 = vunpack.c.0.s8 %v2492
        %v2494 = vperm.slane %v2486, %v2493
        %v2495 = vrot.slane %v2482, 4
        %v2496 = vsel %vm734, %v2495, %v2470
        %v2497 = vrot.slane %v2470, 4
        %v2498 = vsel %vm734, %v2482, %v2497
        %v2500 = vunpack.c.l.s4 1934713408
        %v2501 = vunpack.c.0.s8 %v2500
        %v2502 = vperm.slane %v2496, %v2501
        %v2504 = vunpack.c.l.s4 1934713408
        %v2505 = vunpack.c.0.s8 %v2504
        %v2506 = vperm.slane %v2498, %v2505
        %v2507 = vrot.slane %v2490, 4
        %v2508 = vsel %vm734, 0.0, %v2507
        %v2509 = vrot.slane %v2494, 4
        %v2510 = vsel %vm734, 0.0, %v2509
        %v2511 = vrot.slane %v2502, 4
        %v2512 = vsel %vm734, 0.0, %v2511
        %v2513 = vrot.slane %v2506, 4
        %v2514 = vsel %vm734, 0.0, %v2513
        %v2515 = vrot.slane %v2450, 4
        %v2516 = vsel %vm734, %v2515, %v2309
        %v2518 = vunpack.c.l.s4 1983009808
        %v2519 = vunpack.c.0.s8 %v2518
        %v2520 = vperm.slane %v2516, %v2519
        %v2521 = vrot.slane %v2456, 4
        %v2522 = vsel %vm734, %v2521, %v2444
        %v2524 = vunpack.c.l.s4 1983009808
        %v2525 = vunpack.c.0.s8 %v2524
        %v2526 = vperm.slane %v2522, %v2525
        %v2527 = vrot.slane %v2526, 4
        %v2528 = vsel %vm734, %v2527, %v2520
        %v2529 = vrot.slane %v2520, 4
        %v2530 = vsel %vm734, %v2526, %v2529
        %v2532 = vunpack.c.l.s4 1934713408
        %v2533 = vunpack.c.0.s8 %v2532
        %v2534 = vperm.slane %v2528, %v2533
        %v2536 = vunpack.c.l.s4 1934713408
        %v2537 = vunpack.c.0.s8 %v2536
        %v2538 = vperm.slane %v2530, %v2537
        %v2539 = vrot.slane %v2534, 4
        %v2540 = vsel %vm734, 0.0, %v2539
        %v2541 = vrot.slane %v2538, 4
        %v2542 = vsel %vm734, 0.0, %v2541
        %v2543 = vsel %vm734, %v2509, %v2490
        %v2545 = vunpack.c.l.s4 1983009808
        %v2546 = vunpack.c.0.s8 %v2545
        %v2547 = vperm.slane %v2543, %v2546
        %v2548 = vrot.slane %v2510, 4
        %v2549 = vsel %vm734, %v2548, %v2508
        %v2551 = vunpack.c.l.s4 1983009808
        %v2552 = vunpack.c.0.s8 %v2551
        %v2553 = vperm.slane %v2549, %v2552
        %v2554 = vsel %vm734, %v2513, %v2502
        %v2556 = vunpack.c.l.s4 1983009808
        %v2557 = vunpack.c.0.s8 %v2556
        %v2558 = vperm.slane %v2554, %v2557
        %v2559 = vrot.slane %v2514, 4
        %v2560 = vsel %vm734, %v2559, %v2512
        %v2562 = vunpack.c.l.s4 1983009808
        %v2563 = vunpack.c.0.s8 %v2562
        %v2564 = vperm.slane %v2560, %v2563
        %v2565 = vrot.slane %v2553, 4
        %v2566 = vsel %vm734, %v2565, %v2547
        %v2567 = vrot.slane %v2547, 4
        %v2568 = vsel %vm734, %v2553, %v2567
        %v2570 = vunpack.c.l.s4 1934713408
        %v2571 = vunpack.c.0.s8 %v2570
        %v2572 = vperm.slane %v2566, %v2571
        %v2574 = vunpack.c.l.s4 1934713408
        %v2575 = vunpack.c.0.s8 %v2574
        %v2576 = vperm.slane %v2568, %v2575
        %v2577 = vrot.slane %v2564, 4
        %v2578 = vsel %vm734, %v2577, %v2558
        %v2579 = vrot.slane %v2558, 4
        %v2580 = vsel %vm734, %v2564, %v2579
        %v2582 = vunpack.c.l.s4 1934713408
        %v2583 = vunpack.c.0.s8 %v2582
        %v2584 = vperm.slane %v2578, %v2583
        %v2586 = vunpack.c.l.s4 1934713408
        %v2587 = vunpack.c.0.s8 %v2586
        %v2588 = vperm.slane %v2580, %v2587
        %v2589 = vrot.slane %v2584, 4
        %v2590 = vsel %vm734, %v2589, %v2572
        %v2591 = vrot.slane %v2572, 4
        %v2592 = vsel %vm734, %v2584, %v2591
        %v2593 = vrot.slane %v2588, 4
        %v2594 = vsel %vm734, %v2593, %v2576
        %v2595 = vrot.slane %v2576, 4
        %v2596 = vsel %vm734, %v2588, %v2595
        %v2597 = vsel %vm734, %v2541, %v2534
        %v2599 = vunpack.c.l.s4 1983009808
        %v2600 = vunpack.c.0.s8 %v2599
        %v2601 = vperm.slane %v2597, %v2600
        %v2602 = vrot.slane %v2542, 4
        %v2603 = vsel %vm734, %v2602, %v2540
        %v2605 = vunpack.c.l.s4 1983009808
        %v2606 = vunpack.c.0.s8 %v2605
        %v2607 = vperm.slane %v2603, %v2606
        %v2608 = vrot.slane %v2607, 4
        %v2609 = vsel %vm734, %v2608, %v2601
        %v2610 = vrot.slane %v2601, 4
        %v2611 = vsel %vm734, %v2607, %v2610
        %v2613 = vunpack.c.l.s4 1934713408
        %v2614 = vunpack.c.0.s8 %v2613
        %v2615 = vperm.slane %v2609, %v2614
        %v2617 = vunpack.c.l.s4 1934713408
        %v2618 = vunpack.c.0.s8 %v2617
        %v2619 = vperm.slane %v2611, %v2618
        %v2620 = vrot.slane %v2615, 4
        %v2621 = vsel %vm734, 0.0, %v2620
        %v2622 = vrot.slane %v2619, 4
        %v2623 = vsel %vm734, 0.0, %v2622
        %2624 = vrot.lane.b32.xlu0 %v2307, 96
        %v2625 = vpop.permute.xlu0 %2624
        %2626 = vrot.lane.b32.xlu0 %v2309, 96
        %v2627 = vpop.permute.xlu0 %2626
        %2628 = vrot.lane.b32.xlu0 %v2442, 96
        %v2629 = vpop.permute.xlu0 %2628
        %2630 = vrot.lane.b32.xlu0 %v2444, 96
        %v2631 = vpop.permute.xlu0 %2630
        %2632 = vrot.lane.b32.xlu0 %v2448, 96
        %v2633 = vpop.permute.xlu0 %2632
        %2634 = vrot.lane.b32.xlu0 %v2450, 96
        %v2635 = vpop.permute.xlu0 %2634
        %2636 = vrot.lane.b32.xlu0 %v2454, 96
        %v2637 = vpop.permute.xlu0 %2636
        %2638 = vrot.lane.b32.xlu0 %v2456, 96
        %v2639 = vpop.permute.xlu0 %2638
        %v2648 = vrot.slane %v2633, 4
        %v2649 = vsel %vm734, %v2648, %v2625
        %v2650 = vrot.slane %v2625, 4
        %v2651 = vsel %vm734, %v2633, %v2650
        %v2653 = vunpack.c.l.s4 1983009808
        %v2654 = vunpack.c.0.s8 %v2653
        %v2655 = vperm.slane %v2649, %v2654
        %v2657 = vunpack.c.l.s4 1983009808
        %v2658 = vunpack.c.0.s8 %v2657
        %v2659 = vperm.slane %v2651, %v2658
        %v2660 = vrot.slane %v2637, 4
        %v2661 = vsel %vm734, %v2660, %v2629
        %v2662 = vrot.slane %v2629, 4
        %v2663 = vsel %vm734, %v2637, %v2662
        %v2665 = vunpack.c.l.s4 1983009808
        %v2666 = vunpack.c.0.s8 %v2665
        %v2667 = vperm.slane %v2661, %v2666
        %v2669 = vunpack.c.l.s4 1983009808
        %v2670 = vunpack.c.0.s8 %v2669
        %v2671 = vperm.slane %v2663, %v2670
        %v2672 = vrot.slane %v2667, 4
        %v2673 = vsel %vm734, %v2672, %v2655
        %v2674 = vrot.slane %v2655, 4
        %v2675 = vsel %vm734, %v2667, %v2674
        %v2677 = vunpack.c.l.s4 1934713408
        %v2678 = vunpack.c.0.s8 %v2677
        %v2679 = vperm.slane %v2673, %v2678
        %v2681 = vunpack.c.l.s4 1934713408
        %v2682 = vunpack.c.0.s8 %v2681
        %v2683 = vperm.slane %v2675, %v2682
        %v2684 = vrot.slane %v2671, 4
        %v2685 = vsel %vm734, %v2684, %v2659
        %v2686 = vrot.slane %v2659, 4
        %v2687 = vsel %vm734, %v2671, %v2686
        %v2689 = vunpack.c.l.s4 1934713408
        %v2690 = vunpack.c.0.s8 %v2689
        %v2691 = vperm.slane %v2685, %v2690
        %v2693 = vunpack.c.l.s4 1934713408
        %v2694 = vunpack.c.0.s8 %v2693
        %v2695 = vperm.slane %v2687, %v2694
        %v2696 = vrot.slane %v2679, 4
        %v2697 = vsel %vm734, 0.0, %v2696
        %v2698 = vrot.slane %v2683, 4
        %v2699 = vsel %vm734, 0.0, %v2698
        %v2700 = vrot.slane %v2691, 4
        %v2701 = vsel %vm734, 0.0, %v2700
        %v2702 = vrot.slane %v2695, 4
        %v2703 = vsel %vm734, 0.0, %v2702
        %v2704 = vrot.slane %v2635, 4
        %v2705 = vsel %vm734, %v2704, %v2627
        %v2707 = vunpack.c.l.s4 1983009808
        %v2708 = vunpack.c.0.s8 %v2707
        %v2709 = vperm.slane %v2705, %v2708
        %v2710 = vrot.slane %v2639, 4
        %v2711 = vsel %vm734, %v2710, %v2631
        %v2713 = vunpack.c.l.s4 1983009808
        %v2714 = vunpack.c.0.s8 %v2713
        %v2715 = vperm.slane %v2711, %v2714
        %v2716 = vrot.slane %v2715, 4
        %v2717 = vsel %vm734, %v2716, %v2709
        %v2718 = vrot.slane %v2709, 4
        %v2719 = vsel %vm734, %v2715, %v2718
        %v2721 = vunpack.c.l.s4 1934713408
        %v2722 = vunpack.c.0.s8 %v2721
        %v2723 = vperm.slane %v2717, %v2722
        %v2725 = vunpack.c.l.s4 1934713408
        %v2726 = vunpack.c.0.s8 %v2725
        %v2727 = vperm.slane %v2719, %v2726
        %v2728 = vrot.slane %v2723, 4
        %v2729 = vsel %vm734, 0.0, %v2728
        %v2730 = vrot.slane %v2727, 4
        %v2731 = vsel %vm734, 0.0, %v2730
        %v2732 = vsel %vm734, %v2698, %v2679
        %v2734 = vunpack.c.l.s4 1983009808
        %v2735 = vunpack.c.0.s8 %v2734
        %v2736 = vperm.slane %v2732, %v2735
        %v2737 = vrot.slane %v2699, 4
        %v2738 = vsel %vm734, %v2737, %v2697
        %v2740 = vunpack.c.l.s4 1983009808
        %v2741 = vunpack.c.0.s8 %v2740
        %v2742 = vperm.slane %v2738, %v2741
        %v2743 = vsel %vm734, %v2702, %v2691
        %v2745 = vunpack.c.l.s4 1983009808
        %v2746 = vunpack.c.0.s8 %v2745
        %v2747 = vperm.slane %v2743, %v2746
        %v2748 = vrot.slane %v2703, 4
        %v2749 = vsel %vm734, %v2748, %v2701
        %v2751 = vunpack.c.l.s4 1983009808
        %v2752 = vunpack.c.0.s8 %v2751
        %v2753 = vperm.slane %v2749, %v2752
        %v2754 = vrot.slane %v2742, 4
        %v2755 = vsel %vm734, %v2754, %v2736
        %v2756 = vrot.slane %v2736, 4
        %v2757 = vsel %vm734, %v2742, %v2756
        %v2759 = vunpack.c.l.s4 1934713408
        %v2760 = vunpack.c.0.s8 %v2759
        %v2761 = vperm.slane %v2755, %v2760
        %v2763 = vunpack.c.l.s4 1934713408
        %v2764 = vunpack.c.0.s8 %v2763
        %v2765 = vperm.slane %v2757, %v2764
        %v2766 = vrot.slane %v2753, 4
        %v2767 = vsel %vm734, %v2766, %v2747
        %v2768 = vrot.slane %v2747, 4
        %v2769 = vsel %vm734, %v2753, %v2768
        %v2771 = vunpack.c.l.s4 1934713408
        %v2772 = vunpack.c.0.s8 %v2771
        %v2773 = vperm.slane %v2767, %v2772
        %v2775 = vunpack.c.l.s4 1934713408
        %v2776 = vunpack.c.0.s8 %v2775
        %v2777 = vperm.slane %v2769, %v2776
        %v2778 = vrot.slane %v2773, 4
        %v2779 = vsel %vm734, %v2778, %v2761
        %v2780 = vrot.slane %v2761, 4
        %v2781 = vsel %vm734, %v2773, %v2780
        %v2782 = vrot.slane %v2777, 4
        %v2783 = vsel %vm734, %v2782, %v2765
        %v2784 = vrot.slane %v2765, 4
        %v2785 = vsel %vm734, %v2777, %v2784
        %v2786 = vsel %vm734, %v2730, %v2723
        %v2788 = vunpack.c.l.s4 1983009808
        %v2789 = vunpack.c.0.s8 %v2788
        %v2790 = vperm.slane %v2786, %v2789
        %v2791 = vrot.slane %v2731, 4
        %v2792 = vsel %vm734, %v2791, %v2729
        %v2794 = vunpack.c.l.s4 1983009808
        %v2795 = vunpack.c.0.s8 %v2794
        %v2796 = vperm.slane %v2792, %v2795
        %v2797 = vrot.slane %v2796, 4
        %v2798 = vsel %vm734, %v2797, %v2790
        %v2799 = vrot.slane %v2790, 4
        %v2800 = vsel %vm734, %v2796, %v2799
        %v2802 = vunpack.c.l.s4 1934713408
        %v2803 = vunpack.c.0.s8 %v2802
        %v2804 = vperm.slane %v2798, %v2803
        %v2806 = vunpack.c.l.s4 1934713408
        %v2807 = vunpack.c.0.s8 %v2806
        %v2808 = vperm.slane %v2800, %v2807
        %v2809 = vrot.slane %v2804, 4
        %v2810 = vsel %vm734, 0.0, %v2809
        %v2811 = vrot.slane %v2808, 4
        %v2812 = vsel %vm734, 0.0, %v2811
        %v2813 = vpack.c.bf16 %v2432, %v2432
        %v2814 = vpack.c.bf16 %v2434, %v2434
        %v2815 = vpack.c.bf16 %v2436, %v2436
        %v2816 = vpack.c.bf16 %v2438, %v2438
        %v2817 = vpack.c.bf16 %v2590, %v2590
        %v2818 = vpack.c.bf16 %v2615, %v2615
        %v2819 = vpack.c.bf16 %v2592, %v2592
        %v2820 = vpack.c.bf16 %v2621, %v2621
        %v2821 = vpack.c.bf16 %v2594, %v2594
        %v2822 = vpack.c.bf16 %v2619, %v2619
        %v2823 = vpack.c.bf16 %v2596, %v2596
        %v2824 = vpack.c.bf16 %v2623, %v2623
        %v2827 = vunpack.c.l.b16 %v2817
        %v2828 = vunpack.c.l.b16 %v2818
        %v2829 = vpack.c.b16 %v2828, %v2827
        %v2831 = vsel %vm1096, %v2813, 0
        %v2834 = vsel %vm1096, %v2829, 0
        %2836 = vmatpush.bf16.xpose.msra.mxu0 0
        %2837 = vmatpush.bf16.xpose.msra.mxu0 0
        %2838 = vmatpush.bf16.xpose.msra.mxu0 0
        %2839 = vmatpush.bf16.xpose.msra.mxu0 0
        %2840 = vmatpush.bf16.xpose.msra.mxu0 0
        %2841 = vmatpush.bf16.xpose.msra.mxu0 0
        %2842 = vmatpush.bf16.xpose.msra.mxu0 0
        %2843 = vmatpush.bf16.xpose.msra.mxu0 %v2834
        %2844 = vmatmul.bf16.gmra.mxu0 %v2831
        %v2845 = vpop.f32.mrf.mxu0
        %v2846 = vadd.f32 0.0, %v2845
        %v2847 = vpop.f32.mrf.mxu0
        %2848 = vdwg.mxu0
        %v2851 = vunpack.c.l.b16 %v2819
        %v2852 = vunpack.c.l.b16 %v2820
        %v2853 = vpack.c.b16 %v2852, %v2851
        %v2855 = vsel %vm1096, %v2814, 0
        %v2858 = vsel %vm1096, %v2853, 0
        %2860 = vmatpush.bf16.xpose.msra.mxu0 0
        %2861 = vmatpush.bf16.xpose.msra.mxu0 0
        %2862 = vmatpush.bf16.xpose.msra.mxu0 0
        %2863 = vmatpush.bf16.xpose.msra.mxu0 0
        %2864 = vmatpush.bf16.xpose.msra.mxu0 0
        %2865 = vmatpush.bf16.xpose.msra.mxu0 0
        %2866 = vmatpush.bf16.xpose.msra.mxu0 0
        %2867 = vmatpush.bf16.xpose.msra.mxu0 %v2858
        %2868 = vmatmul.bf16.gmra.mxu0 %v2855
        %v2869 = vpop.f32.mrf.mxu0
        %v2870 = vadd.f32 0.0, %v2869
        %v2871 = vpop.f32.mrf.mxu0
        %2872 = vdwg.mxu0
        %v2875 = vunpack.c.l.b16 %v2821
        %v2876 = vunpack.c.l.b16 %v2822
        %v2877 = vpack.c.b16 %v2876, %v2875
        %v2879 = vsel %vm1096, %v2815, 0
        %v2882 = vsel %vm1096, %v2877, 0
        %2884 = vmatpush.bf16.xpose.msra.mxu0 0
        %2885 = vmatpush.bf16.xpose.msra.mxu0 0
        %2886 = vmatpush.bf16.xpose.msra.mxu0 0
        %2887 = vmatpush.bf16.xpose.msra.mxu0 0
        %2888 = vmatpush.bf16.xpose.msra.mxu0 0
        %2889 = vmatpush.bf16.xpose.msra.mxu0 0
        %2890 = vmatpush.bf16.xpose.msra.mxu0 0
        %2891 = vmatpush.bf16.xpose.msra.mxu0 %v2882
        %2892 = vmatmul.bf16.gmra.mxu0 %v2879
        %v2893 = vpop.f32.mrf.mxu0
        %v2894 = vadd.f32 0.0, %v2893
        %v2895 = vpop.f32.mrf.mxu0
        %2896 = vdwg.mxu0
        %v2899 = vunpack.c.l.b16 %v2823
        %v2900 = vunpack.c.l.b16 %v2824
        %v2901 = vpack.c.b16 %v2900, %v2899
        %v2903 = vsel %vm1096, %v2816, 0
        %v2906 = vsel %vm1096, %v2901, 0
        %2908 = vmatpush.bf16.xpose.msra.mxu0 0
        %2909 = vmatpush.bf16.xpose.msra.mxu0 0
        %2910 = vmatpush.bf16.xpose.msra.mxu0 0
        %2911 = vmatpush.bf16.xpose.msra.mxu0 0
        %2912 = vmatpush.bf16.xpose.msra.mxu0 0
        %2913 = vmatpush.bf16.xpose.msra.mxu0 0
        %2914 = vmatpush.bf16.xpose.msra.mxu0 0
        %2915 = vmatpush.bf16.xpose.msra.mxu0 %v2906
        %2916 = vmatmul.bf16.gmra.mxu0 %v2903
        %v2917 = vpop.f32.mrf.mxu0
        %v2918 = vadd.f32 0.0, %v2917
        %v2919 = vpop.f32.mrf.mxu0
        %2920 = vdwg.mxu0
        %vm2921 = vcmask 97280
        %v2922 = vsel %vm2921, %v2846, -inf
        %2923 = vmax.xlane.f32.xlu0 %v2922
        %v2924 = vpop.xlane.xlu0 %2923
        %v2925 = vsel %vm2921, %v2870, -inf
        %2926 = vmax.xlane.f32.xlu0 %v2925
        %v2927 = vpop.xlane.xlu0 %2926
        %v2928 = vsel %vm2921, %v2894, -inf
        %2929 = vmax.xlane.f32.xlu0 %v2928
        %v2930 = vpop.xlane.xlu0 %2929
        %v2931 = vsel %vm2921, %v2918, -inf
        %2932 = vmax.xlane.f32.xlu0 %v2931
        %v2933 = vpop.xlane.xlu0 %2932
        %v2934 = vsub.f32 %v2846, %v2924
        %v2935 = vsub.f32 %v2870, %v2927
        %v2936 = vsub.f32 %v2894, %v2930
        %v2937 = vsub.f32 %v2918, %v2933
        %v2938 = vmul.f32 %v2934, 1.442695
        %v2939 = vpow.pop %v2938
        %v2940 = vmul.f32 %v2935, 1.442695
        %v2941 = vpow.pop %v2940
        %v2942 = vmul.f32 %v2936, 1.442695
        %v2943 = vpow.pop %v2942
        %v2944 = vmul.f32 %v2937, 1.442695
        %v2945 = vpow.pop %v2944
        %v2946 = vsel %vm2921, %v2939, 0.0
        %2947 = vadd.xlane.f32.xlu0 %v2946
        %v2948 = vpop.xlane.xlu0 %2947
        %v2949 = vsel %vm2921, %v2941, 0.0
        %2950 = vadd.xlane.f32.xlu0 %v2949
        %v2951 = vpop.xlane.xlu0 %2950
        %v2952 = vsel %vm2921, %v2943, 0.0
        %2953 = vadd.xlane.f32.xlu0 %v2952
        %v2954 = vpop.xlane.xlu0 %2953
        %v2955 = vsel %vm2921, %v2945, 0.0
        %2956 = vadd.xlane.f32.xlu0 %v2955
        %v2957 = vpop.xlane.xlu0 %2956
        %v2958 = vrcp.pop %v2948
        %v2959 = vrcp.pop %v2951
        %v2960 = vrcp.pop %v2954
        %v2961 = vrcp.pop %v2957
        %v2962 = vmul.f32 %v2939, %v2958
        %v2963 = vmul.f32 %v2941, %v2959
        %v2964 = vmul.f32 %v2943, %v2960
        %v2965 = vmul.f32 %v2945, %v2961
        %v2966 = vpack.c.bf16 %v2962, %v2962
        %v2967 = vpack.c.bf16 %v2963, %v2963
        %v2968 = vpack.c.bf16 %v2964, %v2964
        %v2969 = vpack.c.bf16 %v2965, %v2965
        %v2970 = vpack.c.bf16 %v2779, %v2779
        %v2971 = vpack.c.bf16 %v2804, %v2804
        %v2972 = vpack.c.bf16 %v2781, %v2781
        %v2973 = vpack.c.bf16 %v2810, %v2810
        %v2974 = vpack.c.bf16 %v2783, %v2783
        %v2975 = vpack.c.bf16 %v2808, %v2808
        %v2976 = vpack.c.bf16 %v2785, %v2785
        %v2977 = vpack.c.bf16 %v2812, %v2812
        %v2980 = vunpack.c.l.b16 %v2970
        %v2981 = vunpack.c.l.b16 %v2971
        %v2982 = vpack.c.b16 %v2981, %v2980
        %v2984 = vsel %vm2921, %v2966, 0
        %vm2986 = vcmask 1045504
        %v2988 = vsel %vm2986, %v2982, 0
        %2990 = vmatpush.bf16.msra.mxu0 0
        %2991 = vmatpush.bf16.msra.mxu0 0
        %2992 = vmatpush.bf16.msra.mxu0 0
        %2993 = vmatpush.bf16.msra.mxu0 0
        %2994 = vmatpush.bf16.msra.mxu0 0
        %2995 = vmatpush.bf16.msra.mxu0 0
        %2996 = vmatpush.bf16.msra.mxu0 0
        %2997 = vmatpush.bf16.msra.mxu0 %v2988
        %2998 = vmatmul.bf16.gmra.mxu0 %v2984
        %v2999 = vpop.f32.mrf.mxu0
        %v3000 = vadd.f32 0.0, %v2999
        %v3001 = vpop.f32.mrf.mxu0
        %3002 = vdwg.mxu0
        %v3005 = vunpack.c.l.b16 %v2972
        %v3006 = vunpack.c.l.b16 %v2973
        %v3007 = vpack.c.b16 %v3006, %v3005
        %v3009 = vsel %vm2921, %v2967, 0
        %v3012 = vsel %vm2986, %v3007, 0
        %3014 = vmatpush.bf16.msra.mxu0 0
        %3015 = vmatpush.bf16.msra.mxu0 0
        %3016 = vmatpush.bf16.msra.mxu0 0
        %3017 = vmatpush.bf16.msra.mxu0 0
        %3018 = vmatpush.bf16.msra.mxu0 0
        %3019 = vmatpush.bf16.msra.mxu0 0
        %3020 = vmatpush.bf16.msra.mxu0 0
        %3021 = vmatpush.bf16.msra.mxu0 %v3012
        %3022 = vmatmul.bf16.gmra.mxu0 %v3009
        %v3023 = vpop.f32.mrf.mxu0
        %v3024 = vadd.f32 0.0, %v3023
        %v3025 = vpop.f32.mrf.mxu0
        %3026 = vdwg.mxu0
        %v3029 = vunpack.c.l.b16 %v2974
        %v3030 = vunpack.c.l.b16 %v2975
        %v3031 = vpack.c.b16 %v3030, %v3029
        %v3033 = vsel %vm2921, %v2968, 0
        %v3036 = vsel %vm2986, %v3031, 0
        %3038 = vmatpush.bf16.msra.mxu0 0
        %3039 = vmatpush.bf16.msra.mxu0 0
        %3040 = vmatpush.bf16.msra.mxu0 0
        %3041 = vmatpush.bf16.msra.mxu0 0
        %3042 = vmatpush.bf16.msra.mxu0 0
        %3043 = vmatpush.bf16.msra.mxu0 0
        %3044 = vmatpush.bf16.msra.mxu0 0
        %3045 = vmatpush.bf16.msra.mxu0 %v3036
        %3046 = vmatmul.bf16.gmra.mxu0 %v3033
        %v3047 = vpop.f32.mrf.mxu0
        %v3048 = vadd.f32 0.0, %v3047
        %v3049 = vpop.f32.mrf.mxu0
        %3050 = vdwg.mxu0
        %v3053 = vunpack.c.l.b16 %v2976
        %v3054 = vunpack.c.l.b16 %v2977
        %v3055 = vpack.c.b16 %v3054, %v3053
        %v3057 = vsel %vm2921, %v2969, 0
        %v3060 = vsel %vm2986, %v3055, 0
        %3062 = vmatpush.bf16.msra.mxu0 0
        %3063 = vmatpush.bf16.msra.mxu0 0
        %3064 = vmatpush.bf16.msra.mxu0 0
        %3065 = vmatpush.bf16.msra.mxu0 0
        %3066 = vmatpush.bf16.msra.mxu0 0
        %3067 = vmatpush.bf16.msra.mxu0 0
        %3068 = vmatpush.bf16.msra.mxu0 0
        %3069 = vmatpush.bf16.msra.mxu0 %v3060
        %3070 = vmatmul.bf16.gmra.mxu0 %v3057
        %v3071 = vpop.f32.mrf.mxu0
        %v3072 = vadd.f32 0.0, %v3071
        %v3073 = vpop.f32.mrf.mxu0
        %3074 = vdwg.mxu0
        %v3075 = vrot.slane %v3048, 4
        %v3076 = vsel %vm734, %v3075, %v3000
        %v3077 = vrot.slane %v3000, 4
        %v3078 = vsel %vm734, %v3048, %v3077
        %v3080 = vunpack.c.l.s4 1983009808
        %v3081 = vunpack.c.0.s8 %v3080
        %v3082 = vperm.slane %v3076, %v3081
        %v3084 = vunpack.c.l.s4 1983009808
        %v3085 = vunpack.c.0.s8 %v3084
        %v3086 = vperm.slane %v3078, %v3085
        %v3087 = vrot.slane %v3072, 4
        %v3088 = vsel %vm734, %v3087, %v3024
        %v3089 = vrot.slane %v3024, 4
        %v3090 = vsel %vm734, %v3072, %v3089
        %v3092 = vunpack.c.l.s4 1983009808
        %v3093 = vunpack.c.0.s8 %v3092
        %v3094 = vperm.slane %v3088, %v3093
        %v3096 = vunpack.c.l.s4 1983009808
        %v3097 = vunpack.c.0.s8 %v3096
        %v3098 = vperm.slane %v3090, %v3097
        %v3099 = vrot.slane %v3094, 4
        %v3100 = vsel %vm734, %v3099, %v3082
        %v3101 = vrot.slane %v3082, 4
        %v3102 = vsel %vm734, %v3094, %v3101
        %v3104 = vunpack.c.l.s4 1934713408
        %v3105 = vunpack.c.0.s8 %v3104
        %v3106 = vperm.slane %v3100, %v3105
        %v3108 = vunpack.c.l.s4 1934713408
        %v3109 = vunpack.c.0.s8 %v3108
        %v3110 = vperm.slane %v3102, %v3109
        %v3111 = vrot.slane %v3098, 4
        %v3112 = vsel %vm734, %v3111, %v3086
        %v3113 = vrot.slane %v3086, 4
        %v3114 = vsel %vm734, %v3098, %v3113
        %v3116 = vunpack.c.l.s4 1934713408
        %v3117 = vunpack.c.0.s8 %v3116
        %v3118 = vperm.slane %v3112, %v3117
        %v3120 = vunpack.c.l.s4 1934713408
        %v3121 = vunpack.c.0.s8 %v3120
        %v3122 = vperm.slane %v3114, %v3121
        %v3123 = vrot.slane %v3106, 4
        %v3124 = vsel %vm734, 0.0, %v3123
        %v3125 = vrot.slane %v3110, 4
        %v3126 = vsel %vm734, 0.0, %v3125
        %v3127 = vrot.slane %v3118, 4
        %v3128 = vsel %vm734, 0.0, %v3127
        %v3129 = vrot.slane %v3122, 4
        %v3130 = vsel %vm734, 0.0, %v3129
        %v3131 = vsel %vm734, %v3125, %v3106
        %v3133 = vunpack.c.l.s4 1983009808
        %v3134 = vunpack.c.0.s8 %v3133
        %v3135 = vperm.slane %v3131, %v3134
        %v3136 = vrot.slane %v3126, 4
        %v3137 = vsel %vm734, %v3136, %v3124
        %v3139 = vunpack.c.l.s4 1983009808
        %v3140 = vunpack.c.0.s8 %v3139
        %v3141 = vperm.slane %v3137, %v3140
        %v3142 = vsel %vm734, %v3129, %v3118
        %v3144 = vunpack.c.l.s4 1983009808
        %v3145 = vunpack.c.0.s8 %v3144
        %v3146 = vperm.slane %v3142, %v3145
        %v3147 = vrot.slane %v3130, 4
        %v3148 = vsel %vm734, %v3147, %v3128
        %v3150 = vunpack.c.l.s4 1983009808
        %v3151 = vunpack.c.0.s8 %v3150
        %v3152 = vperm.slane %v3148, %v3151
        %v3153 = vrot.slane %v3141, 4
        %v3154 = vsel %vm734, %v3153, %v3135
        %v3155 = vrot.slane %v3135, 4
        %v3156 = vsel %vm734, %v3141, %v3155
        %v3158 = vunpack.c.l.s4 1934713408
        %v3159 = vunpack.c.0.s8 %v3158
        %v3160 = vperm.slane %v3154, %v3159
        %v3162 = vunpack.c.l.s4 1934713408
        %v3163 = vunpack.c.0.s8 %v3162
        %v3164 = vperm.slane %v3156, %v3163
        %v3165 = vrot.slane %v3152, 4
        %v3166 = vsel %vm734, %v3165, %v3146
        %v3167 = vrot.slane %v3146, 4
        %v3168 = vsel %vm734, %v3152, %v3167
        %v3170 = vunpack.c.l.s4 1934713408
        %v3171 = vunpack.c.0.s8 %v3170
        %v3172 = vperm.slane %v3166, %v3171
        %v3174 = vunpack.c.l.s4 1934713408
        %v3175 = vunpack.c.0.s8 %v3174
        %v3176 = vperm.slane %v3168, %v3175
        %v3177 = vrot.slane %v3172, 4
        %v3178 = vsel %vm734, %v3177, %v3160
        %v3179 = vrot.slane %v3160, 4
        %v3180 = vsel %vm734, %v3172, %v3179
        %v3181 = vrot.slane %v3176, 4
        %v3182 = vsel %vm734, %v3181, %v3164
        %v3183 = vrot.slane %v3164, 4
        %v3184 = vsel %vm734, %v3176, %v3183
        %3186 = vrot.lane.b32.xlu0 %v3180, 8
        %v3187 = vpop.permute.xlu0 %3186
        %3190 = vrot.lane.b32.xlu0 %v3182, 16
        %v3191 = vpop.permute.xlu0 %3190
        %3194 = vrot.lane.b32.xlu0 %v3184, 24
        %v3195 = vpop.permute.xlu0 %3194
        %v3197 = vsel %vm1096, %v3178, %v3187
        %v3198 = vsel %vm1429, %v3197, %v3191
        %v3199 = vsel %vm1431, %v3198, %v3195
        %3201 = vrot.lane.b32.xlu0 %v2261, 120
        %v3202 = vpop.permute.xlu0 %3201
        %3204 = vrot.lane.b32.xlu0 %v2261, 112
        %v3205 = vpop.permute.xlu0 %3204
        %3207 = vrot.lane.b32.xlu0 %v2261, 104
        %v3208 = vpop.permute.xlu0 %3207
        %v3210 = vrot.slane %v3205, 4
        %v3211 = vsel %vm734, %v3210, %v2261
        %v3212 = vrot.slane %v2261, 4
        %v3213 = vsel %vm734, %v3205, %v3212
        %v3215 = vunpack.c.l.s4 1983009808
        %v3216 = vunpack.c.0.s8 %v3215
        %v3217 = vperm.slane %v3211, %v3216
        %v3219 = vunpack.c.l.s4 1983009808
        %v3220 = vunpack.c.0.s8 %v3219
        %v3221 = vperm.slane %v3213, %v3220
        %v3222 = vrot.slane %v3208, 4
        %v3223 = vsel %vm734, %v3222, %v3202
        %v3224 = vrot.slane %v3202, 4
        %v3225 = vsel %vm734, %v3208, %v3224
        %v3227 = vunpack.c.l.s4 1983009808
        %v3228 = vunpack.c.0.s8 %v3227
        %v3229 = vperm.slane %v3223, %v3228
        %v3231 = vunpack.c.l.s4 1983009808
        %v3232 = vunpack.c.0.s8 %v3231
        %v3233 = vperm.slane %v3225, %v3232
        %v3234 = vrot.slane %v3229, 4
        %v3235 = vsel %vm734, %v3234, %v3217
        %v3236 = vrot.slane %v3217, 4
        %v3237 = vsel %vm734, %v3229, %v3236
        %v3239 = vunpack.c.l.s4 1934713408
        %v3240 = vunpack.c.0.s8 %v3239
        %v3241 = vperm.slane %v3235, %v3240
        %v3243 = vunpack.c.l.s4 1934713408
        %v3244 = vunpack.c.0.s8 %v3243
        %v3245 = vperm.slane %v3237, %v3244
        %v3246 = vrot.slane %v3233, 4
        %v3247 = vsel %vm734, %v3246, %v3221
        %v3248 = vrot.slane %v3221, 4
        %v3249 = vsel %vm734, %v3233, %v3248
        %v3251 = vunpack.c.l.s4 1934713408
        %v3252 = vunpack.c.0.s8 %v3251
        %v3253 = vperm.slane %v3247, %v3252
        %v3255 = vunpack.c.l.s4 1934713408
        %v3256 = vunpack.c.0.s8 %v3255
        %v3257 = vperm.slane %v3249, %v3256
        %v3258 = vrot.slane %v3241, 4
        %v3259 = vsel %vm734, 0.0, %v3258
        %v3260 = vrot.slane %v3245, 4
        %v3261 = vsel %vm734, 0.0, %v3260
        %v3262 = vrot.slane %v3253, 4
        %v3263 = vsel %vm734, 0.0, %v3262
        %v3264 = vrot.slane %v3257, 4
        %v3265 = vsel %vm734, 0.0, %v3264
        %v3266 = vsel %vm734, %v3260, %v3241
        %v3268 = vunpack.c.l.s4 1983009808
        %v3269 = vunpack.c.0.s8 %v3268
        %v3270 = vperm.slane %v3266, %v3269
        %v3271 = vrot.slane %v3261, 4
        %v3272 = vsel %vm734, %v3271, %v3259
        %v3274 = vunpack.c.l.s4 1983009808
        %v3275 = vunpack.c.0.s8 %v3274
        %v3276 = vperm.slane %v3272, %v3275
        %v3277 = vsel %vm734, %v3264, %v3253
        %v3279 = vunpack.c.l.s4 1983009808
        %v3280 = vunpack.c.0.s8 %v3279
        %v3281 = vperm.slane %v3277, %v3280
        %v3282 = vrot.slane %v3265, 4
        %v3283 = vsel %vm734, %v3282, %v3263
        %v3285 = vunpack.c.l.s4 1983009808
        %v3286 = vunpack.c.0.s8 %v3285
        %v3287 = vperm.slane %v3283, %v3286
        %v3288 = vrot.slane %v3276, 4
        %v3289 = vsel %vm734, %v3288, %v3270
        %v3290 = vrot.slane %v3270, 4
        %v3291 = vsel %vm734, %v3276, %v3290
        %v3293 = vunpack.c.l.s4 1934713408
        %v3294 = vunpack.c.0.s8 %v3293
        %v3295 = vperm.slane %v3289, %v3294
        %v3297 = vunpack.c.l.s4 1934713408
        %v3298 = vunpack.c.0.s8 %v3297
        %v3299 = vperm.slane %v3291, %v3298
        %v3300 = vrot.slane %v3287, 4
        %v3301 = vsel %vm734, %v3300, %v3281
        %v3302 = vrot.slane %v3281, 4
        %v3303 = vsel %vm734, %v3287, %v3302
        %v3305 = vunpack.c.l.s4 1934713408
        %v3306 = vunpack.c.0.s8 %v3305
        %v3307 = vperm.slane %v3301, %v3306
        %v3309 = vunpack.c.l.s4 1934713408
        %v3310 = vunpack.c.0.s8 %v3309
        %v3311 = vperm.slane %v3303, %v3310
        %v3312 = vrot.slane %v3307, 4
        %v3313 = vsel %vm734, %v3312, %v3295
        %v3314 = vrot.slane %v3295, 4
        %v3315 = vsel %vm734, %v3307, %v3314
        %v3316 = vrot.slane %v3311, 4
        %v3317 = vsel %vm734, %v3316, %v3299
        %v3318 = vrot.slane %v3299, 4
        %v3319 = vsel %vm734, %v3311, %v3318
        %3321 = vrot.lane.b32.xlu0 %v2312, 120
        %v3322 = vpop.permute.xlu0 %3321
        %3323 = vrot.lane.b32.xlu0 %v2312, 112
        %v3324 = vpop.permute.xlu0 %3323
        %3325 = vrot.lane.b32.xlu0 %v2312, 104
        %v3326 = vpop.permute.xlu0 %3325
        %v3327 = vrot.slane %v2309, 4
        %v3328 = vrot.slane %v2312, 4
        %v3329 = vsel %vm1232, %v3327, %v3328
        %v3330 = vrot.slane %v2444, 4
        %v3331 = vrot.slane %v3322, 4
        %v3332 = vsel %vm1232, %v3330, %v3331
        %v3333 = vrot.slane %v2450, 4
        %v3334 = vrot.slane %v3324, 4
        %v3335 = vsel %vm1232, %v3333, %v3334
        %v3336 = vrot.slane %v2456, 4
        %v3337 = vrot.slane %v3326, 4
        %v3338 = vsel %vm1232, %v3336, %v3337
        %v3347 = vrot.slane %v3335, 4
        %v3348 = vsel %vm734, %v3347, %v3329
        %v3349 = vrot.slane %v3329, 4
        %v3350 = vsel %vm734, %v3335, %v3349
        %v3352 = vunpack.c.l.s4 1983009808
        %v3353 = vunpack.c.0.s8 %v3352
        %v3354 = vperm.slane %v3348, %v3353
        %v3356 = vunpack.c.l.s4 1983009808
        %v3357 = vunpack.c.0.s8 %v3356
        %v3358 = vperm.slane %v3350, %v3357
        %v3359 = vrot.slane %v3338, 4
        %v3360 = vsel %vm734, %v3359, %v3332
        %v3361 = vrot.slane %v3332, 4
        %v3362 = vsel %vm734, %v3338, %v3361
        %v3364 = vunpack.c.l.s4 1983009808
        %v3365 = vunpack.c.0.s8 %v3364
        %v3366 = vperm.slane %v3360, %v3365
        %v3368 = vunpack.c.l.s4 1983009808
        %v3369 = vunpack.c.0.s8 %v3368
        %v3370 = vperm.slane %v3362, %v3369
        %v3371 = vrot.slane %v3366, 4
        %v3372 = vsel %vm734, %v3371, %v3354
        %v3373 = vrot.slane %v3354, 4
        %v3374 = vsel %vm734, %v3366, %v3373
        %v3376 = vunpack.c.l.s4 1934713408
        %v3377 = vunpack.c.0.s8 %v3376
        %v3378 = vperm.slane %v3372, %v3377
        %v3380 = vunpack.c.l.s4 1934713408
        %v3381 = vunpack.c.0.s8 %v3380
        %v3382 = vperm.slane %v3374, %v3381
        %v3383 = vrot.slane %v3370, 4
        %v3384 = vsel %vm734, %v3383, %v3358
        %v3385 = vrot.slane %v3358, 4
        %v3386 = vsel %vm734, %v3370, %v3385
        %v3388 = vunpack.c.l.s4 1934713408
        %v3389 = vunpack.c.0.s8 %v3388
        %v3390 = vperm.slane %v3384, %v3389
        %v3392 = vunpack.c.l.s4 1934713408
        %v3393 = vunpack.c.0.s8 %v3392
        %v3394 = vperm.slane %v3386, %v3393
        %v3395 = vrot.slane %v3378, 4
        %v3396 = vsel %vm734, 0.0, %v3395
        %v3397 = vrot.slane %v3382, 4
        %v3398 = vsel %vm734, 0.0, %v3397
        %v3399 = vrot.slane %v3390, 4
        %v3400 = vsel %vm734, 0.0, %v3399
        %v3401 = vrot.slane %v3394, 4
        %v3402 = vsel %vm734, 0.0, %v3401
        %v3403 = vrot.slane %v3334, 4
        %v3404 = vsel %vm734, %v3403, %v3328
        %v3406 = vunpack.c.l.s4 1983009808
        %v3407 = vunpack.c.0.s8 %v3406
        %v3408 = vperm.slane %v3404, %v3407
        %v3409 = vrot.slane %v3337, 4
        %v3410 = vsel %vm734, %v3409, %v3331
        %v3412 = vunpack.c.l.s4 1983009808
        %v3413 = vunpack.c.0.s8 %v3412
        %v3414 = vperm.slane %v3410, %v3413
        %v3415 = vrot.slane %v3414, 4
        %v3416 = vsel %vm734, %v3415, %v3408
        %v3417 = vrot.slane %v3408, 4
        %v3418 = vsel %vm734, %v3414, %v3417
        %v3420 = vunpack.c.l.s4 1934713408
        %v3421 = vunpack.c.0.s8 %v3420
        %v3422 = vperm.slane %v3416, %v3421
        %v3424 = vunpack.c.l.s4 1934713408
        %v3425 = vunpack.c.0.s8 %v3424
        %v3426 = vperm.slane %v3418, %v3425
        %v3427 = vrot.slane %v3422, 4
        %v3428 = vsel %vm734, 0.0, %v3427
        %v3429 = vrot.slane %v3426, 4
        %v3430 = vsel %vm734, 0.0, %v3429
        %v3431 = vsel %vm734, %v3397, %v3378
        %v3433 = vunpack.c.l.s4 1983009808
        %v3434 = vunpack.c.0.s8 %v3433
        %v3435 = vperm.slane %v3431, %v3434
        %v3436 = vrot.slane %v3398, 4
        %v3437 = vsel %vm734, %v3436, %v3396
        %v3439 = vunpack.c.l.s4 1983009808
        %v3440 = vunpack.c.0.s8 %v3439
        %v3441 = vperm.slane %v3437, %v3440
        %v3442 = vsel %vm734, %v3401, %v3390
        %v3444 = vunpack.c.l.s4 1983009808
        %v3445 = vunpack.c.0.s8 %v3444
        %v3446 = vperm.slane %v3442, %v3445
        %v3447 = vrot.slane %v3402, 4
        %v3448 = vsel %vm734, %v3447, %v3400
        %v3450 = vunpack.c.l.s4 1983009808
        %v3451 = vunpack.c.0.s8 %v3450
        %v3452 = vperm.slane %v3448, %v3451
        %v3453 = vrot.slane %v3441, 4
        %v3454 = vsel %vm734, %v3453, %v3435
        %v3455 = vrot.slane %v3435, 4
        %v3456 = vsel %vm734, %v3441, %v3455
        %v3458 = vunpack.c.l.s4 1934713408
        %v3459 = vunpack.c.0.s8 %v3458
        %v3460 = vperm.slane %v3454, %v3459
        %v3462 = vunpack.c.l.s4 1934713408
        %v3463 = vunpack.c.0.s8 %v3462
        %v3464 = vperm.slane %v3456, %v3463
        %v3465 = vrot.slane %v3452, 4
        %v3466 = vsel %vm734, %v3465, %v3446
        %v3467 = vrot.slane %v3446, 4
        %v3468 = vsel %vm734, %v3452, %v3467
        %v3470 = vunpack.c.l.s4 1934713408
        %v3471 = vunpack.c.0.s8 %v3470
        %v3472 = vperm.slane %v3466, %v3471
        %v3474 = vunpack.c.l.s4 1934713408
        %v3475 = vunpack.c.0.s8 %v3474
        %v3476 = vperm.slane %v3468, %v3475
        %v3477 = vrot.slane %v3472, 4
        %v3478 = vsel %vm734, %v3477, %v3460
        %v3479 = vrot.slane %v3460, 4
        %v3480 = vsel %vm734, %v3472, %v3479
        %v3481 = vrot.slane %v3476, 4
        %v3482 = vsel %vm734, %v3481, %v3464
        %v3483 = vrot.slane %v3464, 4
        %v3484 = vsel %vm734, %v3476, %v3483
        %v3485 = vsel %vm734, %v3429, %v3422
        %v3487 = vunpack.c.l.s4 1983009808
        %v3488 = vunpack.c.0.s8 %v3487
        %v3489 = vperm.slane %v3485, %v3488
        %v3490 = vrot.slane %v3430, 4
        %v3491 = vsel %vm734, %v3490, %v3428
        %v3493 = vunpack.c.l.s4 1983009808
        %v3494 = vunpack.c.0.s8 %v3493
        %v3495 = vperm.slane %v3491, %v3494
        %v3496 = vrot.slane %v3495, 4
        %v3497 = vsel %vm734, %v3496, %v3489
        %v3498 = vrot.slane %v3489, 4
        %v3499 = vsel %vm734, %v3495, %v3498
        %v3501 = vunpack.c.l.s4 1934713408
        %v3502 = vunpack.c.0.s8 %v3501
        %v3503 = vperm.slane %v3497, %v3502
        %v3505 = vunpack.c.l.s4 1934713408
        %v3506 = vunpack.c.0.s8 %v3505
        %v3507 = vperm.slane %v3499, %v3506
        %v3508 = vrot.slane %v3503, 4
        %v3509 = vsel %vm734, 0.0, %v3508
        %v3510 = vrot.slane %v3507, 4
        %v3511 = vsel %vm734, 0.0, %v3510
        %3512 = vrot.lane.b32.xlu0 %v3329, 96
        %v3513 = vpop.permute.xlu0 %3512
        %3514 = vrot.lane.b32.xlu0 %v3328, 96
        %v3515 = vpop.permute.xlu0 %3514
        %3516 = vrot.lane.b32.xlu0 %v3332, 96
        %v3517 = vpop.permute.xlu0 %3516
        %3518 = vrot.lane.b32.xlu0 %v3331, 96
        %v3519 = vpop.permute.xlu0 %3518
        %3520 = vrot.lane.b32.xlu0 %v3335, 96
        %v3521 = vpop.permute.xlu0 %3520
        %3522 = vrot.lane.b32.xlu0 %v3334, 96
        %v3523 = vpop.permute.xlu0 %3522
        %3524 = vrot.lane.b32.xlu0 %v3338, 96
        %v3525 = vpop.permute.xlu0 %3524
        %3526 = vrot.lane.b32.xlu0 %v3337, 96
        %v3527 = vpop.permute.xlu0 %3526
        %v3536 = vrot.slane %v3521, 4
        %v3537 = vsel %vm734, %v3536, %v3513
        %v3538 = vrot.slane %v3513, 4
        %v3539 = vsel %vm734, %v3521, %v3538
        %v3541 = vunpack.c.l.s4 1983009808
        %v3542 = vunpack.c.0.s8 %v3541
        %v3543 = vperm.slane %v3537, %v3542
        %v3545 = vunpack.c.l.s4 1983009808
        %v3546 = vunpack.c.0.s8 %v3545
        %v3547 = vperm.slane %v3539, %v3546
        %v3548 = vrot.slane %v3525, 4
        %v3549 = vsel %vm734, %v3548, %v3517
        %v3550 = vrot.slane %v3517, 4
        %v3551 = vsel %vm734, %v3525, %v3550
        %v3553 = vunpack.c.l.s4 1983009808
        %v3554 = vunpack.c.0.s8 %v3553
        %v3555 = vperm.slane %v3549, %v3554
        %v3557 = vunpack.c.l.s4 1983009808
        %v3558 = vunpack.c.0.s8 %v3557
        %v3559 = vperm.slane %v3551, %v3558
        %v3560 = vrot.slane %v3555, 4
        %v3561 = vsel %vm734, %v3560, %v3543
        %v3562 = vrot.slane %v3543, 4
        %v3563 = vsel %vm734, %v3555, %v3562
        %v3565 = vunpack.c.l.s4 1934713408
        %v3566 = vunpack.c.0.s8 %v3565
        %v3567 = vperm.slane %v3561, %v3566
        %v3569 = vunpack.c.l.s4 1934713408
        %v3570 = vunpack.c.0.s8 %v3569
        %v3571 = vperm.slane %v3563, %v3570
        %v3572 = vrot.slane %v3559, 4
        %v3573 = vsel %vm734, %v3572, %v3547
        %v3574 = vrot.slane %v3547, 4
        %v3575 = vsel %vm734, %v3559, %v3574
        %v3577 = vunpack.c.l.s4 1934713408
        %v3578 = vunpack.c.0.s8 %v3577
        %v3579 = vperm.slane %v3573, %v3578
        %v3581 = vunpack.c.l.s4 1934713408
        %v3582 = vunpack.c.0.s8 %v3581
        %v3583 = vperm.slane %v3575, %v3582
        %v3584 = vrot.slane %v3567, 4
        %v3585 = vsel %vm734, 0.0, %v3584
        %v3586 = vrot.slane %v3571, 4
        %v3587 = vsel %vm734, 0.0, %v3586
        %v3588 = vrot.slane %v3579, 4
        %v3589 = vsel %vm734, 0.0, %v3588
        %v3590 = vrot.slane %v3583, 4
        %v3591 = vsel %vm734, 0.0, %v3590
        %v3592 = vrot.slane %v3523, 4
        %v3593 = vsel %vm734, %v3592, %v3515
        %v3595 = vunpack.c.l.s4 1983009808
        %v3596 = vunpack.c.0.s8 %v3595
        %v3597 = vperm.slane %v3593, %v3596
        %v3598 = vrot.slane %v3527, 4
        %v3599 = vsel %vm734, %v3598, %v3519
        %v3601 = vunpack.c.l.s4 1983009808
        %v3602 = vunpack.c.0.s8 %v3601
        %v3603 = vperm.slane %v3599, %v3602
        %v3604 = vrot.slane %v3603, 4
        %v3605 = vsel %vm734, %v3604, %v3597
        %v3606 = vrot.slane %v3597, 4
        %v3607 = vsel %vm734, %v3603, %v3606
        %v3609 = vunpack.c.l.s4 1934713408
        %v3610 = vunpack.c.0.s8 %v3609
        %v3611 = vperm.slane %v3605, %v3610
        %v3613 = vunpack.c.l.s4 1934713408
        %v3614 = vunpack.c.0.s8 %v3613
        %v3615 = vperm.slane %v3607, %v3614
        %v3616 = vrot.slane %v3611, 4
        %v3617 = vsel %vm734, 0.0, %v3616
        %v3618 = vrot.slane %v3615, 4
        %v3619 = vsel %vm734, 0.0, %v3618
        %v3620 = vsel %vm734, %v3586, %v3567
        %v3622 = vunpack.c.l.s4 1983009808
        %v3623 = vunpack.c.0.s8 %v3622
        %v3624 = vperm.slane %v3620, %v3623
        %v3625 = vrot.slane %v3587, 4
        %v3626 = vsel %vm734, %v3625, %v3585
        %v3628 = vunpack.c.l.s4 1983009808
        %v3629 = vunpack.c.0.s8 %v3628
        %v3630 = vperm.slane %v3626, %v3629
        %v3631 = vsel %vm734, %v3590, %v3579
        %v3633 = vunpack.c.l.s4 1983009808
        %v3634 = vunpack.c.0.s8 %v3633
        %v3635 = vperm.slane %v3631, %v3634
        %v3636 = vrot.slane %v3591, 4
        %v3637 = vsel %vm734, %v3636, %v3589
        %v3639 = vunpack.c.l.s4 1983009808
        %v3640 = vunpack.c.0.s8 %v3639
        %v3641 = vperm.slane %v3637, %v3640
        %v3642 = vrot.slane %v3630, 4
        %v3643 = vsel %vm734, %v3642, %v3624
        %v3644 = vrot.slane %v3624, 4
        %v3645 = vsel %vm734, %v3630, %v3644
        %v3647 = vunpack.c.l.s4 1934713408
        %v3648 = vunpack.c.0.s8 %v3647
        %v3649 = vperm.slane %v3643, %v3648
        %v3651 = vunpack.c.l.s4 1934713408
        %v3652 = vunpack.c.0.s8 %v3651
        %v3653 = vperm.slane %v3645, %v3652
        %v3654 = vrot.slane %v3641, 4
        %v3655 = vsel %vm734, %v3654, %v3635
        %v3656 = vrot.slane %v3635, 4
        %v3657 = vsel %vm734, %v3641, %v3656
        %v3659 = vunpack.c.l.s4 1934713408
        %v3660 = vunpack.c.0.s8 %v3659
        %v3661 = vperm.slane %v3655, %v3660
        %v3663 = vunpack.c.l.s4 1934713408
        %v3664 = vunpack.c.0.s8 %v3663
        %v3665 = vperm.slane %v3657, %v3664
        %v3666 = vrot.slane %v3661, 4
        %v3667 = vsel %vm734, %v3666, %v3649
        %v3668 = vrot.slane %v3649, 4
        %v3669 = vsel %vm734, %v3661, %v3668
        %v3670 = vrot.slane %v3665, 4
        %v3671 = vsel %vm734, %v3670, %v3653
        %v3672 = vrot.slane %v3653, 4
        %v3673 = vsel %vm734, %v3665, %v3672
        %v3674 = vsel %vm734, %v3618, %v3611
        %v3676 = vunpack.c.l.s4 1983009808
        %v3677 = vunpack.c.0.s8 %v3676
        %v3678 = vperm.slane %v3674, %v3677
        %v3679 = vrot.slane %v3619, 4
        %v3680 = vsel %vm734, %v3679, %v3617
        %v3682 = vunpack.c.l.s4 1983009808
        %v3683 = vunpack.c.0.s8 %v3682
        %v3684 = vperm.slane %v3680, %v3683
        %v3685 = vrot.slane %v3684, 4
        %v3686 = vsel %vm734, %v3685, %v3678
        %v3687 = vrot.slane %v3678, 4
        %v3688 = vsel %vm734, %v3684, %v3687
        %v3690 = vunpack.c.l.s4 1934713408
        %v3691 = vunpack.c.0.s8 %v3690
        %v3692 = vperm.slane %v3686, %v3691
        %v3694 = vunpack.c.l.s4 1934713408
        %v3695 = vunpack.c.0.s8 %v3694
        %v3696 = vperm.slane %v3688, %v3695
        %v3697 = vrot.slane %v3692, 4
        %v3698 = vsel %vm734, 0.0, %v3697
        %v3699 = vrot.slane %v3696, 4
        %v3700 = vsel %vm734, 0.0, %v3699
        %v3701 = vpack.c.bf16 %v3313, %v3313
        %v3702 = vpack.c.bf16 %v3315, %v3315
        %v3703 = vpack.c.bf16 %v3317, %v3317
        %v3704 = vpack.c.bf16 %v3319, %v3319
        %v3705 = vpack.c.bf16 %v3478, %v3478
        %v3706 = vpack.c.bf16 %v3503, %v3503
        %v3707 = vpack.c.bf16 %v3480, %v3480
        %v3708 = vpack.c.bf16 %v3509, %v3509
        %v3709 = vpack.c.bf16 %v3482, %v3482
        %v3710 = vpack.c.bf16 %v3507, %v3507
        %v3711 = vpack.c.bf16 %v3484, %v3484
        %v3712 = vpack.c.bf16 %v3511, %v3511
        %v3715 = vunpack.c.l.b16 %v3705
        %v3716 = vunpack.c.l.b16 %v3706
        %v3717 = vpack.c.b16 %v3716, %v3715
        %v3719 = vsel %vm1096, %v3701, 0
        %v3722 = vsel %vm1096, %v3717, 0
        %3724 = vmatpush.bf16.xpose.msra.mxu0 0
        %3725 = vmatpush.bf16.xpose.msra.mxu0 0
        %3726 = vmatpush.bf16.xpose.msra.mxu0 0
        %3727 = vmatpush.bf16.xpose.msra.mxu0 0
        %3728 = vmatpush.bf16.xpose.msra.mxu0 0
        %3729 = vmatpush.bf16.xpose.msra.mxu0 0
        %3730 = vmatpush.bf16.xpose.msra.mxu0 0
        %3731 = vmatpush.bf16.xpose.msra.mxu0 %v3722
        %3732 = vmatmul.bf16.gmra.mxu0 %v3719
        %v3733 = vpop.f32.mrf.mxu0
        %v3734 = vadd.f32 0.0, %v3733
        %v3735 = vpop.f32.mrf.mxu0
        %3736 = vdwg.mxu0
        %v3739 = vunpack.c.l.b16 %v3707
        %v3740 = vunpack.c.l.b16 %v3708
        %v3741 = vpack.c.b16 %v3740, %v3739
        %v3743 = vsel %vm1096, %v3702, 0
        %v3746 = vsel %vm1096, %v3741, 0
        %3748 = vmatpush.bf16.xpose.msra.mxu0 0
        %3749 = vmatpush.bf16.xpose.msra.mxu0 0
        %3750 = vmatpush.bf16.xpose.msra.mxu0 0
        %3751 = vmatpush.bf16.xpose.msra.mxu0 0
        %3752 = vmatpush.bf16.xpose.msra.mxu0 0
        %3753 = vmatpush.bf16.xpose.msra.mxu0 0
        %3754 = vmatpush.bf16.xpose.msra.mxu0 0
        %3755 = vmatpush.bf16.xpose.msra.mxu0 %v3746
        %3756 = vmatmul.bf16.gmra.mxu0 %v3743
        %v3757 = vpop.f32.mrf.mxu0
        %v3758 = vadd.f32 0.0, %v3757
        %v3759 = vpop.f32.mrf.mxu0
        %3760 = vdwg.mxu0
        %v3763 = vunpack.c.l.b16 %v3709
        %v3764 = vunpack.c.l.b16 %v3710
        %v3765 = vpack.c.b16 %v3764, %v3763
        %v3767 = vsel %vm1096, %v3703, 0
        %v3770 = vsel %vm1096, %v3765, 0
        %3772 = vmatpush.bf16.xpose.msra.mxu0 0
        %3773 = vmatpush.bf16.xpose.msra.mxu0 0
        %3774 = vmatpush.bf16.xpose.msra.mxu0 0
        %3775 = vmatpush.bf16.xpose.msra.mxu0 0
        %3776 = vmatpush.bf16.xpose.msra.mxu0 0
        %3777 = vmatpush.bf16.xpose.msra.mxu0 0
        %3778 = vmatpush.bf16.xpose.msra.mxu0 0
        %3779 = vmatpush.bf16.xpose.msra.mxu0 %v3770
        %3780 = vmatmul.bf16.gmra.mxu0 %v3767
        %v3781 = vpop.f32.mrf.mxu0
        %v3782 = vadd.f32 0.0, %v3781
        %v3783 = vpop.f32.mrf.mxu0
        %3784 = vdwg.mxu0
        %v3787 = vunpack.c.l.b16 %v3711
        %v3788 = vunpack.c.l.b16 %v3712
        %v3789 = vpack.c.b16 %v3788, %v3787
        %v3791 = vsel %vm1096, %v3704, 0
        %v3794 = vsel %vm1096, %v3789, 0
        %3796 = vmatpush.bf16.xpose.msra.mxu0 0
        %3797 = vmatpush.bf16.xpose.msra.mxu0 0
        %3798 = vmatpush.bf16.xpose.msra.mxu0 0
        %3799 = vmatpush.bf16.xpose.msra.mxu0 0
        %3800 = vmatpush.bf16.xpose.msra.mxu0 0
        %3801 = vmatpush.bf16.xpose.msra.mxu0 0
        %3802 = vmatpush.bf16.xpose.msra.mxu0 0
        %3803 = vmatpush.bf16.xpose.msra.mxu0 %v3794
        %3804 = vmatmul.bf16.gmra.mxu0 %v3791
        %v3805 = vpop.f32.mrf.mxu0
        %v3806 = vadd.f32 0.0, %v3805
        %v3807 = vpop.f32.mrf.mxu0
        %3808 = vdwg.mxu0
        %v3809 = vsel %vm2921, %v3734, -inf
        %3810 = vmax.xlane.f32.xlu0 %v3809
        %v3811 = vpop.xlane.xlu0 %3810
        %v3812 = vsel %vm2921, %v3758, -inf
        %3813 = vmax.xlane.f32.xlu0 %v3812
        %v3814 = vpop.xlane.xlu0 %3813
        %v3815 = vsel %vm2921, %v3782, -inf
        %3816 = vmax.xlane.f32.xlu0 %v3815
        %v3817 = vpop.xlane.xlu0 %3816
        %v3818 = vsel %vm2921, %v3806, -inf
        %3819 = vmax.xlane.f32.xlu0 %v3818
        %v3820 = vpop.xlane.xlu0 %3819
        %v3821 = vsub.f32 %v3734, %v3811
        %v3822 = vsub.f32 %v3758, %v3814
        %v3823 = vsub.f32 %v3782, %v3817
        %v3824 = vsub.f32 %v3806, %v3820
        %v3825 = vmul.f32 %v3821, 1.442695
        %v3826 = vpow.pop %v3825
        %v3827 = vmul.f32 %v3822, 1.442695
        %v3828 = vpow.pop %v3827
        %v3829 = vmul.f32 %v3823, 1.442695
        %v3830 = vpow.pop %v3829
        %v3831 = vmul.f32 %v3824, 1.442695
        %v3832 = vpow.pop %v3831
        %v3833 = vsel %vm2921, %v3826, 0.0
        %3834 = vadd.xlane.f32.xlu0 %v3833
        %v3835 = vpop.xlane.xlu0 %3834
        %v3836 = vsel %vm2921, %v3828, 0.0
        %3837 = vadd.xlane.f32.xlu0 %v3836
        %v3838 = vpop.xlane.xlu0 %3837
        %v3839 = vsel %vm2921, %v3830, 0.0
        %3840 = vadd.xlane.f32.xlu0 %v3839
        %v3841 = vpop.xlane.xlu0 %3840
        %v3842 = vsel %vm2921, %v3832, 0.0
        %3843 = vadd.xlane.f32.xlu0 %v3842
        %v3844 = vpop.xlane.xlu0 %3843
        %v3845 = vrcp.pop %v3835
        %v3846 = vrcp.pop %v3838
        %v3847 = vrcp.pop %v3841
        %v3848 = vrcp.pop %v3844
        %v3849 = vmul.f32 %v3826, %v3845
        %v3850 = vmul.f32 %v3828, %v3846
        %v3851 = vmul.f32 %v3830, %v3847
        %v3852 = vmul.f32 %v3832, %v3848
        %v3853 = vpack.c.bf16 %v3849, %v3849
        %v3854 = vpack.c.bf16 %v3850, %v3850
        %v3855 = vpack.c.bf16 %v3851, %v3851
        %v3856 = vpack.c.bf16 %v3852, %v3852
        %v3857 = vpack.c.bf16 %v3667, %v3667
        %v3858 = vpack.c.bf16 %v3692, %v3692
        %v3859 = vpack.c.bf16 %v3669, %v3669
        %v3860 = vpack.c.bf16 %v3698, %v3698
        %v3861 = vpack.c.bf16 %v3671, %v3671
        %v3862 = vpack.c.bf16 %v3696, %v3696
        %v3863 = vpack.c.bf16 %v3673, %v3673
        %v3864 = vpack.c.bf16 %v3700, %v3700
        %v3867 = vunpack.c.l.b16 %v3857
        %v3868 = vunpack.c.l.b16 %v3858
        %v3869 = vpack.c.b16 %v3868, %v3867
        %v3871 = vsel %vm2921, %v3853, 0
        %v3874 = vsel %vm2986, %v3869, 0
        %3876 = vmatpush.bf16.msra.mxu0 0
        %3877 = vmatpush.bf16.msra.mxu0 0
        %3878 = vmatpush.bf16.msra.mxu0 0
        %3879 = vmatpush.bf16.msra.mxu0 0
        %3880 = vmatpush.bf16.msra.mxu0 0
        %3881 = vmatpush.bf16.msra.mxu0 0
        %3882 = vmatpush.bf16.msra.mxu0 0
        %3883 = vmatpush.bf16.msra.mxu0 %v3874
        %3884 = vmatmul.bf16.gmra.mxu0 %v3871
        %v3885 = vpop.f32.mrf.mxu0
        %v3886 = vadd.f32 0.0, %v3885
        %v3887 = vpop.f32.mrf.mxu0
        %3888 = vdwg.mxu0
        %v3891 = vunpack.c.l.b16 %v3859
        %v3892 = vunpack.c.l.b16 %v3860
        %v3893 = vpack.c.b16 %v3892, %v3891
        %v3895 = vsel %vm2921, %v3854, 0
        %v3898 = vsel %vm2986, %v3893, 0
        %3900 = vmatpush.bf16.msra.mxu0 0
        %3901 = vmatpush.bf16.msra.mxu0 0
        %3902 = vmatpush.bf16.msra.mxu0 0
        %3903 = vmatpush.bf16.msra.mxu0 0
        %3904 = vmatpush.bf16.msra.mxu0 0
        %3905 = vmatpush.bf16.msra.mxu0 0
        %3906 = vmatpush.bf16.msra.mxu0 0
        %3907 = vmatpush.bf16.msra.mxu0 %v3898
        %3908 = vmatmul.bf16.gmra.mxu0 %v3895
        %v3909 = vpop.f32.mrf.mxu0
        %v3910 = vadd.f32 0.0, %v3909
        %v3911 = vpop.f32.mrf.mxu0
        %3912 = vdwg.mxu0
        %v3915 = vunpack.c.l.b16 %v3861
        %v3916 = vunpack.c.l.b16 %v3862
        %v3917 = vpack.c.b16 %v3916, %v3915
        %v3919 = vsel %vm2921, %v3855, 0
        %v3922 = vsel %vm2986, %v3917, 0
        %3924 = vmatpush.bf16.msra.mxu0 0
        %3925 = vmatpush.bf16.msra.mxu0 0
        %3926 = vmatpush.bf16.msra.mxu0 0
        %3927 = vmatpush.bf16.msra.mxu0 0
        %3928 = vmatpush.bf16.msra.mxu0 0
        %3929 = vmatpush.bf16.msra.mxu0 0
        %3930 = vmatpush.bf16.msra.mxu0 0
        %3931 = vmatpush.bf16.msra.mxu0 %v3922
        %3932 = vmatmul.bf16.gmra.mxu0 %v3919
        %v3933 = vpop.f32.mrf.mxu0
        %v3934 = vadd.f32 0.0, %v3933
        %v3935 = vpop.f32.mrf.mxu0
        %3936 = vdwg.mxu0
        %v3939 = vunpack.c.l.b16 %v3863
        %v3940 = vunpack.c.l.b16 %v3864
        %v3941 = vpack.c.b16 %v3940, %v3939
        %v3943 = vsel %vm2921, %v3856, 0
        %v3946 = vsel %vm2986, %v3941, 0
        %3948 = vmatpush.bf16.msra.mxu0 0
        %3949 = vmatpush.bf16.msra.mxu0 0
        %3950 = vmatpush.bf16.msra.mxu0 0
        %3951 = vmatpush.bf16.msra.mxu0 0
        %3952 = vmatpush.bf16.msra.mxu0 0
        %3953 = vmatpush.bf16.msra.mxu0 0
        %3954 = vmatpush.bf16.msra.mxu0 0
        %3955 = vmatpush.bf16.msra.mxu0 %v3946
        %3956 = vmatmul.bf16.gmra.mxu0 %v3943
        %v3957 = vpop.f32.mrf.mxu0
        %v3958 = vadd.f32 0.0, %v3957
        %v3959 = vpop.f32.mrf.mxu0
        %3960 = vdwg.mxu0
        %v3961 = vrot.slane %v3934, 4
        %v3962 = vsel %vm734, %v3961, %v3886
        %v3963 = vrot.slane %v3886, 4
        %v3964 = vsel %vm734, %v3934, %v3963
        %v3966 = vunpack.c.l.s4 1983009808
        %v3967 = vunpack.c.0.s8 %v3966
        %v3968 = vperm.slane %v3962, %v3967
        %v3970 = vunpack.c.l.s4 1983009808
        %v3971 = vunpack.c.0.s8 %v3970
        %v3972 = vperm.slane %v3964, %v3971
        %v3973 = vrot.slane %v3958, 4
        %v3974 = vsel %vm734, %v3973, %v3910
        %v3975 = vrot.slane %v3910, 4
        %v3976 = vsel %vm734, %v3958, %v3975
        %v3978 = vunpack.c.l.s4 1983009808
        %v3979 = vunpack.c.0.s8 %v3978
        %v3980 = vperm.slane %v3974, %v3979
        %v3982 = vunpack.c.l.s4 1983009808
        %v3983 = vunpack.c.0.s8 %v3982
        %v3984 = vperm.slane %v3976, %v3983
        %v3985 = vrot.slane %v3980, 4
        %v3986 = vsel %vm734, %v3985, %v3968
        %v3987 = vrot.slane %v3968, 4
        %v3988 = vsel %vm734, %v3980, %v3987
        %v3990 = vunpack.c.l.s4 1934713408
        %v3991 = vunpack.c.0.s8 %v3990
        %v3992 = vperm.slane %v3986, %v3991
        %v3994 = vunpack.c.l.s4 1934713408
        %v3995 = vunpack.c.0.s8 %v3994
        %v3996 = vperm.slane %v3988, %v3995
        %v3997 = vrot.slane %v3984, 4
        %v3998 = vsel %vm734, %v3997, %v3972
        %v3999 = vrot.slane %v3972, 4
        %v4000 = vsel %vm734, %v3984, %v3999
        %v4002 = vunpack.c.l.s4 1934713408
        %v4003 = vunpack.c.0.s8 %v4002
        %v4004 = vperm.slane %v3998, %v4003
        %v4006 = vunpack.c.l.s4 1934713408
        %v4007 = vunpack.c.0.s8 %v4006
        %v4008 = vperm.slane %v4000, %v4007
        %v4009 = vrot.slane %v3992, 4
        %v4010 = vsel %vm734, 0.0, %v4009
        %v4011 = vrot.slane %v3996, 4
        %v4012 = vsel %vm734, 0.0, %v4011
        %v4013 = vrot.slane %v4004, 4
        %v4014 = vsel %vm734, 0.0, %v4013
        %v4015 = vrot.slane %v4008, 4
        %v4016 = vsel %vm734, 0.0, %v4015
        %v4017 = vsel %vm734, %v4011, %v3992
        %v4019 = vunpack.c.l.s4 1983009808
        %v4020 = vunpack.c.0.s8 %v4019
        %v4021 = vperm.slane %v4017, %v4020
        %v4022 = vrot.slane %v4012, 4
        %v4023 = vsel %vm734, %v4022, %v4010
        %v4025 = vunpack.c.l.s4 1983009808
        %v4026 = vunpack.c.0.s8 %v4025
        %v4027 = vperm.slane %v4023, %v4026
        %v4028 = vsel %vm734, %v4015, %v4004
        %v4030 = vunpack.c.l.s4 1983009808
        %v4031 = vunpack.c.0.s8 %v4030
        %v4032 = vperm.slane %v4028, %v4031
        %v4033 = vrot.slane %v4016, 4
        %v4034 = vsel %vm734, %v4033, %v4014
        %v4036 = vunpack.c.l.s4 1983009808
        %v4037 = vunpack.c.0.s8 %v4036
        %v4038 = vperm.slane %v4034, %v4037
        %v4039 = vrot.slane %v4027, 4
        %v4040 = vsel %vm734, %v4039, %v4021
        %v4041 = vrot.slane %v4021, 4
        %v4042 = vsel %vm734, %v4027, %v4041
        %v4044 = vunpack.c.l.s4 1934713408
        %v4045 = vunpack.c.0.s8 %v4044
        %v4046 = vperm.slane %v4040, %v4045
        %v4048 = vunpack.c.l.s4 1934713408
        %v4049 = vunpack.c.0.s8 %v4048
        %v4050 = vperm.slane %v4042, %v4049
        %v4051 = vrot.slane %v4038, 4
        %v4052 = vsel %vm734, %v4051, %v4032
        %v4053 = vrot.slane %v4032, 4
        %v4054 = vsel %vm734, %v4038, %v4053
        %v4056 = vunpack.c.l.s4 1934713408
        %v4057 = vunpack.c.0.s8 %v4056
        %v4058 = vperm.slane %v4052, %v4057
        %v4060 = vunpack.c.l.s4 1934713408
        %v4061 = vunpack.c.0.s8 %v4060
        %v4062 = vperm.slane %v4054, %v4061
        %v4063 = vrot.slane %v4058, 4
        %v4064 = vsel %vm734, %v4063, %v4046
        %v4065 = vrot.slane %v4046, 4
        %v4066 = vsel %vm734, %v4058, %v4065
        %v4067 = vrot.slane %v4062, 4
        %v4068 = vsel %vm734, %v4067, %v4050
        %v4069 = vrot.slane %v4050, 4
        %v4070 = vsel %vm734, %v4062, %v4069
        %4072 = vrot.lane.b32.xlu0 %v4066, 8
        %v4073 = vpop.permute.xlu0 %4072
        %4076 = vrot.lane.b32.xlu0 %v4068, 16
        %v4077 = vpop.permute.xlu0 %4076
        %4080 = vrot.lane.b32.xlu0 %v4070, 24
        %v4081 = vpop.permute.xlu0 %4080
        %v4083 = vsel %vm1096, %v4064, %v4073
        %v4084 = vsel %vm1429, %v4083, %v4077
        %v4085 = vsel %vm1431, %v4084, %v4081
        %v4086 = vpack.c.bf16 %v4085, %v3199
        %v4087 = vperm.slane %v673, 2
        %v4092 = vunpack.c.l.b16 %v2315
        %v4093 = vunpack.c.l.b16 %v2316
        %v4094 = vunpack.c.l.b16 %v2317
        %v4095 = vunpack.c.l.b16 %v2318
        %v4096 = vpack.c.b16 %v4093, %v4092
        %v4097 = vpack.c.b16 %v4095, %v4094
        %v4101 = vsel %vm696, %v4086, 0
        %4103 = vmatpush.bf16.msra.mxu0 0
        %4104 = vmatpush.bf16.msra.mxu0 0
        %4105 = vmatpush.bf16.msra.mxu0 0
        %4106 = vmatpush.bf16.msra.mxu0 0
        %4107 = vmatpush.bf16.msra.mxu0 0
        %4108 = vmatpush.bf16.msra.mxu0 0
        %4109 = vmatpush.bf16.msra.mxu0 %v4097
        %4110 = vmatpush.bf16.msra.mxu0 %v4096
        %4111 = vmatmul.bf16.gmra.mxu0 %v4101
        %v4112 = vpop.f32.mrf.mxu0
        %v4113 = vadd.f32 %v4087, %v4112
        %v4114 = vpop.f32.mrf.mxu0
        %v4115 = vadd.f32 %v4087, %v4114
        %4116 = vdwg.mxu0
        %v4117 = vadd.f32 %v2226, %v4113
        %v4118 = vadd.f32 %v2227, %v4115
        %v4119 = vsel %vm696, %v4117, 0.0
        %4120 = vadd.xlane.f32.xlu0 %v4119
        %v4121 = vpop.xlane.xlu0 %4120
        %v4122 = vsel %vm696, %v4118, 0.0
        %4123 = vadd.xlane.f32.xlu0 %v4122
        %v4124 = vpop.xlane.xlu0 %4123
        %v4125 = vmul.f32 %v4121, %v2183
        %v4126 = vmul.f32 %v4124, %v2183
        %v4127 = vsub.f32 %v4117, %v4125
        %v4128 = vsub.f32 %v4118, %v4126
        %v4129 = vmul.f32 %v4127, %v4127
        %v4130 = vmul.f32 %v4128, %v4128
        %v4131 = vsel %vm696, %v4129, 0.0
        %4132 = vadd.xlane.f32.xlu0 %v4131
        %v4133 = vpop.xlane.xlu0 %4132
        %v4134 = vsel %vm696, %v4130, 0.0
        %4135 = vadd.xlane.f32.xlu0 %v4134
        %v4136 = vpop.xlane.xlu0 %4135
        %v4137 = vmul.f32 %v4133, %v2183
        %v4138 = vmul.f32 %v4136, %v2183
        %v4139 = vadd.f32 %v4137, 1e-05
        %v4140 = vadd.f32 %v4138, 1e-05
        %v4141 = vrsqrt.pop %v4139
        %v4142 = vmul.f32 %v4141, %v4139
        %v4143 = vmul.f32 %v4142, %v4141
        %v4144 = vmul.f32 0.5, %v4143
        %v4145 = vsub.f32 1.5, %v4144
        %v4146 = vmul.f32 %v4141, %v4145
        %vm4147 = vweird.f32 %v4139
        %vm4148 = vweird.f32 %v4141
        %vm4149 = vmor %vm4147, %vm4148
        %v4150 = vsel %vm4149, %v4141, %v4146
        %v4151 = vrsqrt.pop %v4140
        %v4152 = vmul.f32 %v4151, %v4140
        %v4153 = vmul.f32 %v4152, %v4151
        %v4154 = vmul.f32 0.5, %v4153
        %v4155 = vsub.f32 1.5, %v4154
        %v4156 = vmul.f32 %v4151, %v4155
        %vm4157 = vweird.f32 %v4140
        %vm4158 = vweird.f32 %v4151
        %vm4159 = vmor %vm4157, %vm4158
        %v4160 = vsel %vm4159, %v4151, %v4156
        %v4161 = vmul.f32 %v4127, %v4150
        %v4162 = vmul.f32 %v4128, %v4160
        %v4163 = vperm.slane %v673, 6
        %v4164 = vmul.f32 %v4161, %v4163
        %v4165 = vmul.f32 %v4162, %v4163
        %v4166 = vperm.slane %v673, 7
        %v4167 = vadd.f32 %v4164, %v4166
        %v4168 = vadd.f32 %v4165, %v4166
        %v4169 = vpack.c.bf16 %v4168, %v4167
        %v4170 = vld [vmem:[%s529] sm:$0xf]
        %v4171 = vld [vmem:[%s529 + $0x4] sm:$0xf]
        %v4172 = vld [vmem:[%s529 + $0x8] sm:$0xf]
        %v4173 = vld [vmem:[%s529 + $0xc] sm:$0xf]
        %v4174 = vld [vmem:[%s647] sm:$0x1]
        %v4176 = vperm.slane %v4174, 0
        %v4182 = vunpack.c.l.b16 %v4170
        %v4183 = vunpack.c.l.b16 %v4171
        %v4184 = vunpack.c.l.b16 %v4172
        %v4185 = vunpack.c.l.b16 %v4173
        %v4186 = vpack.c.b16 %v4183, %v4182
        %v4187 = vpack.c.b16 %v4185, %v4184
        %v4191 = vsel %vm696, %v4169, 0
        %4193 = vmatpush.bf16.msra.mxu0 0
        %4194 = vmatpush.bf16.msra.mxu0 0
        %4195 = vmatpush.bf16.msra.mxu0 0
        %4196 = vmatpush.bf16.msra.mxu0 0
        %4197 = vmatpush.bf16.msra.mxu0 0
        %4198 = vmatpush.bf16.msra.mxu0 0
        %4199 = vmatpush.bf16.msra.mxu0 %v4187
        %4200 = vmatpush.bf16.msra.mxu0 %v4186
        %4201 = vmatmul.bf16.gmra.mxu0 %v4191
        %v4202 = vpop.f32.mrf.mxu0
        %v4203 = vadd.f32 %v4176, %v4202
        %v4204 = vpop.f32.mrf.mxu0
        %v4205 = vadd.f32 %v4176, %v4204
        %4206 = vdwg.mxu0
        %v4207 = vmax.f32 %v4203, 0.0
        %v4208 = vmax.f32 %v4205, 0.0
        %v4209 = vpack.c.bf16 %v4208, %v4207
        %v4210 = vld [vmem:[%s652] sm:$0xf]
        %v4211 = vld [vmem:[%s652 + $0x4] sm:$0xf]
        %v4212 = vld [vmem:[%s652 + $0x8] sm:$0xf]
        %v4213 = vld [vmem:[%s652 + $0xc] sm:$0xf]
        %v4214 = vld [vmem:[%s652 + $0x10] sm:$0xf]
        %v4215 = vld [vmem:[%s652 + $0x14] sm:$0xf]
        %v4216 = vld [vmem:[%s652 + $0x18] sm:$0xf]
        %v4217 = vld [vmem:[%s652 + $0x1c] sm:$0xf]
        %v4218 = vperm.slane %v673, 3
        %v4227 = vunpack.c.l.b16 %v4210
        %v4228 = vunpack.c.l.b16 %v4211
        %v4229 = vunpack.c.l.b16 %v4212
        %v4230 = vunpack.c.l.b16 %v4213
        %v4231 = vunpack.c.l.b16 %v4214
        %v4232 = vunpack.c.l.b16 %v4215
        %v4233 = vunpack.c.l.b16 %v4216
        %v4234 = vunpack.c.l.b16 %v4217
        %v4235 = vpack.c.b16 %v4228, %v4227
        %v4236 = vpack.c.b16 %v4230, %v4229
        %v4237 = vpack.c.b16 %v4232, %v4231
        %v4238 = vpack.c.b16 %v4234, %v4233
        %vm4243 = vcmask 523264
        %v4245 = vsel %vm4243, %v4209, 0
        %4247 = vmatpush.bf16.msra.mxu0 0
        %4248 = vmatpush.bf16.msra.mxu0 0
        %4249 = vmatpush.bf16.msra.mxu0 0
        %4250 = vmatpush.bf16.msra.mxu0 0
        %4251 = vmatpush.bf16.msra.mxu0 %v4238
        %4252 = vmatpush.bf16.msra.mxu0 %v4237
        %4253 = vmatpush.bf16.msra.mxu0 %v4236
        %4254 = vmatpush.bf16.msra.mxu0 %v4235
        %4255 = vmatmul.bf16.gmra.mxu0 %v4245
        %v4256 = vpop.f32.mrf.mxu0
        %v4257 = vadd.f32 %v4218, %v4256
        %v4258 = vpop.f32.mrf.mxu0
        %v4259 = vadd.f32 %v4218, %v4258
        %4260 = vdwg.mxu0
        %v4261 = vadd.f32 %v4167, %v4257
        %v4262 = vadd.f32 %v4168, %v4259
        %v4263 = vsel %vm696, %v4261, 0.0
        %4264 = vadd.xlane.f32.xlu0 %v4263
        %v4265 = vpop.xlane.xlu0 %4264
        %v4266 = vsel %vm696, %v4262, 0.0
        %4267 = vadd.xlane.f32.xlu0 %v4266
        %v4268 = vpop.xlane.xlu0 %4267
        %v4269 = vmul.f32 %v4265, %v2183
        %v4270 = vmul.f32 %v4268, %v2183
        %v4271 = vsub.f32 %v4261, %v4269
        %v4272 = vsub.f32 %v4262, %v4270
        %v4273 = vmul.f32 %v4271, %v4271
        %v4274 = vmul.f32 %v4272, %v4272
        %v4275 = vsel %vm696, %v4273, 0.0
        %4276 = vadd.xlane.f32.xlu0 %v4275
        %v4277 = vpop.xlane.xlu0 %4276
        %v4278 = vsel %vm696, %v4274, 0.0
        %4279 = vadd.xlane.f32.xlu0 %v4278
        %v4280 = vpop.xlane.xlu0 %4279
        %v4281 = vmul.f32 %v4277, %v2183
        %v4282 = vmul.f32 %v4280, %v2183
        %v4283 = vadd.f32 %v4281, 1e-05
        %v4284 = vadd.f32 %v4282, 1e-05
        %v4285 = vrsqrt.pop %v4283
        %v4286 = vmul.f32 %v4285, %v4283
        %v4287 = vmul.f32 %v4286, %v4285
        %v4288 = vmul.f32 0.5, %v4287
        %v4289 = vsub.f32 1.5, %v4288
        %v4290 = vmul.f32 %v4285, %v4289
        %vm4291 = vweird.f32 %v4283
        %vm4292 = vweird.f32 %v4285
        %vm4293 = vmor %vm4291, %vm4292
        %v4294 = vsel %vm4293, %v4285, %v4290
        %v4295 = vrsqrt.pop %v4284
        %v4296 = vmul.f32 %v4295, %v4284
        %v4297 = vmul.f32 %v4296, %v4295
        %v4298 = vmul.f32 0.5, %v4297
        %v4299 = vsub.f32 1.5, %v4298
        %v4300 = vmul.f32 %v4295, %v4299
        %vm4301 = vweird.f32 %v4284
        %vm4302 = vweird.f32 %v4295
        %vm4303 = vmor %vm4301, %vm4302
        %v4304 = vsel %vm4303, %v4295, %v4300
        %v4305 = vmul.f32 %v4271, %v4294
        %v4306 = vmul.f32 %v4272, %v4304
        %v4307 = vperm.slane %v674, 0
        %v4308 = vmul.f32 %v4305, %v4307
        %v4309 = vmul.f32 %v4306, %v4307
        %v4310 = vperm.slane %v674, 1
        %v4311 = vadd.f32 %v4308, %v4310
        %v4312 = vadd.f32 %v4309, %v4310
        %4313 = vst.msk [vmem:[#allocation2] sm:$0xff] %vm696, %v4311
        %4314 = vst.msk [vmem:[#allocation2 + $0x8] sm:$0xff] %vm696, %v4312
        %p4315 = scmp.eq.s32.totalorder %s29, 1
        // Predicated region
        $region85: #{_decoder_forward_jit.1} parent=75 // pred_check
          %p4316 = pneg %p4315
        $region86: #{_decoder_forward_jit.1} parent=75 // pred_check_branch
          %4318 = sbr.rel (%p4316) target = $region88
        $region87: #{_decoder_forward_jit.1} parent=75 // pred_region
          %v4319 = vld [vmem:[%s13] sm:$0x3]
          %v4320 = vsel %vm696, %v4311, 0.0
          %4321 = vadd.xlane.f32.xlu0 %v4320
          %v4322 = vpop.xlane.xlu0 %4321
          %v4323 = vsel %vm696, %v4312, 0.0
          %4324 = vadd.xlane.f32.xlu0 %v4323
          %v4325 = vpop.xlane.xlu0 %4324
          %v4326 = vmul.f32 %v4322, %v2183
          %v4327 = vmul.f32 %v4325, %v2183
          %v4328 = vsub.f32 %v4311, %v4326
          %v4329 = vsub.f32 %v4312, %v4327
          %v4330 = vmul.f32 %v4328, %v4328
          %v4331 = vmul.f32 %v4329, %v4329
          %v4332 = vsel %vm696, %v4330, 0.0
          %4333 = vadd.xlane.f32.xlu0 %v4332
          %v4334 = vpop.xlane.xlu0 %4333
          %v4335 = vsel %vm696, %v4331, 0.0
          %4336 = vadd.xlane.f32.xlu0 %v4335
          %v4337 = vpop.xlane.xlu0 %4336
          %v4338 = vmul.f32 %v4334, %v2183
          %v4339 = vmul.f32 %v4337, %v2183
          %v4340 = vadd.f32 %v4338, 1e-05
          %v4341 = vadd.f32 %v4339, 1e-05
          %v4342 = vrsqrt.pop %v4340
          %v4343 = vmul.f32 %v4342, %v4340
          %v4344 = vmul.f32 %v4343, %v4342
          %v4345 = vmul.f32 0.5, %v4344
          %v4346 = vsub.f32 1.5, %v4345
          %v4347 = vmul.f32 %v4342, %v4346
          %vm4348 = vweird.f32 %v4340
          %vm4349 = vweird.f32 %v4342
          %vm4350 = vmor %vm4348, %vm4349
          %v4351 = vsel %vm4350, %v4342, %v4347
          %v4352 = vrsqrt.pop %v4341
          %v4353 = vmul.f32 %v4352, %v4341
          %v4354 = vmul.f32 %v4353, %v4352
          %v4355 = vmul.f32 0.5, %v4354
          %v4356 = vsub.f32 1.5, %v4355
          %v4357 = vmul.f32 %v4352, %v4356
          %vm4358 = vweird.f32 %v4341
          %vm4359 = vweird.f32 %v4352
          %vm4360 = vmor %vm4358, %vm4359
          %v4361 = vsel %vm4360, %v4352, %v4357
          %v4362 = vmul.f32 %v4328, %v4351
          %v4363 = vmul.f32 %v4329, %v4361
          %v4364 = vperm.slane %v4319, 0
          %v4365 = vmul.f32 %v4362, %v4364
          %v4366 = vmul.f32 %v4363, %v4364
          %v4367 = vperm.slane %v4319, 1
          %v4368 = vadd.f32 %v4365, %v4367
          %v4369 = vadd.f32 %v4366, %v4367
          %4370 = vst.msk [vmem:[#allocation6] sm:$0xff] %vm696, %v4368
          %4371 = vst.msk [vmem:[#allocation6 + $0x8] sm:$0xff] %vm696, %v4369
        $region88: #{_decoder_forward_jit.1} parent=75 // pred_fallthru
          _
        // Predicated region
        $region89: #{_decoder_forward_jit.1} parent=75 // pred_check
          %p4372 = pneg %p391
        $region90: #{_decoder_forward_jit.1} parent=75 // pred_check_branch
          %4374 = sbr.rel (%p4372) target = $region92
        $region91: #{_decoder_forward_jit.1} parent=75 // pred_region
          %4376 = vsyncadd [#allocation5], 0
          %s4377 = sshll.u32 [#allocation6], 4
          %s4378 = int_to_ptr.vmem [resolvable:$true] %s4377
          %s4379 = sshll.u32 %s14, 4
          %s4380 = int_to_ptr.hbm [resolvable:$true] %s4379
          %4385 = dma.vmem_to_hbm [thread:$0]  %s4378, 256, %s4380, [#allocation5], 128, 128, 8
        $region92: #{_decoder_forward_jit.1} parent=75 // pred_fallthru
          _
        // Predicated region
        $region93: #{_decoder_forward_jit.1} parent=75 // pred_check
          %p4386 = pneg %p391
        $region94: #{_decoder_forward_jit.1} parent=75 // pred_check_branch
          %4388 = sbr.rel (%p4386) target = $region96
        $region95: #{_decoder_forward_jit.1} parent=75 // pred_region
          %4390 = dma.done [#allocation5], 256
        $region96: #{_decoder_forward_jit.1} parent=75 // pred_fallthru
          _
      $region76: #{_decoder_forward_jit.1} parent=5 // pred_fallthru
        _
      %p4391 = scmp.le.s32.totalorder 2, %s24
      // Predicated region
      $region97: #{_decoder_forward_jit.1} parent=5 // pred_check
        %p4392 = pneg %p4391
      $region98: #{_decoder_forward_jit.1} parent=5 // pred_check_branch
        %4394 = sbr.rel (%p4392) target = $region100
      $region99: #{_decoder_forward_jit.1} parent=5 // pred_region
        %s4395 = ssub.s32 %s24, 2
      $region100: #{_decoder_forward_jit.1} parent=5 // pred_fallthru
        _
    $region6: #{_decoder_forward_jit.1} parent=1 // loop_footer
      %s28 = sadd.s32 1, %s24
    $region7: #{_decoder_forward_jit.1} parent=1 // loop_footer_branch
      %23 = sbr.rel target = $region3
    $region8: #{_decoder_forward_jit.1} parent=1 // loop_exit
      _
    %4396 = vsyncpa [#allocation4], 1
    %s4397 = scalar_lea.sflag [#allocation4], 1
    %4398 = vsyncpa %s4397, 1
    %4399 = vsyncpa [#allocation5], 1
    %s4400 = scalar_lea.sflag [#allocation5], 1
    %4401 = vsyncpa %s4400, 1

</llo_original>
